<compile_context>
chip_gen: v6e
topology: v6e:2x2x1
jax: 0.10.0
libtpu: 0.0.40
codegen_flags: <defaults>
</compile_context>

<pallas_src>
import functools

import jax
import jax.numpy as jnp
import numpy as np
from jax import lax
from jax.experimental import pallas as pl
from jax.experimental.pallas import tpu as pltpu


# ----------------------------- shared math ----------------------------------

def _hard_sigm(alpha, x):
    # hard_sigm(a, x) = clamp((a*x + 1)/2, 0, 1)
    return jnp.clip((alpha * x + 1.0) * 0.5, 0.0, 1.0)


# ----------------------------- Pallas kernel --------------------------------

def _scd_kernel(xpg_ref, xpz_ref, w1r_ref, w1z_ref, w2r_ref, w2z_ref,
                b2g_ref, b2z_ref, out_ref,
                *, h1_size, h2_size, alpha, batch, n_groups, group, unroll):
    """Transposed layout: activations are (batch, feature) — batch on
    sublanes, gates on lanes (4*H = 128 lanes, dense)."""
    H1, H2, B, G = h1_size, h2_size, batch, group

    # Recurrent weights / biases read once from VMEM (~16 vregs at H=32;
    # fine here, see matmul_push_rhs TODO above for larger H).
    W1r = w1r_ref[...]                                   # (H1+H2, 4*H1)
    w1z = w1z_ref[...]                                   # (1, H1+H2)
    W2r = w2r_ref[...]                                   # (H2+H1, 4*H2)
    w2z = w2z_ref[...]                                   # (1, H2+H1)
    b2g = jnp.broadcast_to(b2g_ref[...], (B, 4 * H2))    # hoisted broadcasts
    b2z = jnp.broadcast_to(b2z_ref[...], (B, 1))

    def cell_step(t, carry):
        h1, c1, z1, h2, c2, z2 = carry

        # -------- layer 1 (z_bottom == 1) -----------------------------------
        # Input projection (W_01 @ x_t + bias) was precomputed in the wrapper;
        # the per-step matmul contracts only the recurrent K = H1 + H2 rows.
        a1 = jnp.concatenate([(1.0 - z1) * h1, z1 * h2], axis=-1)   # (B, H1+H2)
        g1 = jnp.dot(a1, W1r, preferred_element_type=jnp.float32) + xpg_ref[t]
        zl1 = jnp.sum(a1 * w1z, axis=-1, keepdims=True) + xpz_ref[t]  # VPU/XLU
        sg1 = jax.nn.sigmoid(g1[:, 0:3 * H1])            # one EUP pass: f,i,o
        f1 = sg1[:, 0:H1]
        i1 = sg1[:, H1:2 * H1]
        o1 = sg1[:, 2 * H1:3 * H1]
        gg1 = jnp.tanh(g1[:, 3 * H1:4 * H1])
        z1n = _hard_sigm(alpha, zl1)
        # HM-LSTM update specialized for z_bottom == 1:
        c1n = i1 * gg1 + (1.0 - z1) * (f1 * c1)
        h1n = o1 * jnp.tanh(c1n)

        # -------- layer 2 (last layer, z_bottom == new z1) -------------------
        a2 = jnp.concatenate([(1.0 - z2) * h2, z1n * h1n], axis=-1)  # (B, H2+H1)
        g2 = jnp.dot(a2, W2r, preferred_element_type=jnp.float32) + b2g
        zl2 = jnp.sum(a2 * w2z, axis=-1, keepdims=True) + b2z
        sg2 = jax.nn.sigmoid(g2[:, 0:3 * H2])
        f2 = sg2[:, 0:H2]
        i2 = sg2[:, H2:2 * H2]
        o2 = sg2[:, 2 * H2:3 * H2]
        gg2 = jnp.tanh(g2[:, 3 * H2:4 * H2])
        z2n = _hard_sigm(alpha, zl2)
        ig2 = i2 * gg2
        w21 = (1.0 - z2) * z1n
        keep = (1.0 - z2) - w21                          # = (1-z2)*(1-z1n)
        c2n = z2 * ig2 + keep * c2 + w21 * (f2 * c2 + ig2)
        h2n = (1.0 - keep) * o2 * jnp.tanh(c2n) + keep * h2

        out_t = (h2n * z2n).astype(out_ref.dtype)        # opts[t] (dropout=id)
        return (h1n, c1n, z1n, h2n, c2n, z2n), out_t

    def group_step(g, carry):
        outs = []
        for j in range(G):                 # static inner unroll over the group
            carry, out_t = cell_step(g * G + j, carry)
            outs.append(out_t)
        # One lane-dense (B, G*H2) = (B, 128) store per group.
        out_ref[g] = jnp.concatenate(outs, axis=-1)
        return carry

    carry0 = (jnp.zeros((B, H1), jnp.float32),
              jnp.zeros((B, H1), jnp.float32),
              jnp.zeros((B, 1), jnp.float32),
              jnp.zeros((B, H2), jnp.float32),
              jnp.zeros((B, H2), jnp.float32),
              jnp.zeros((B, 1), jnp.float32))
    lax.fori_loop(0, n_groups, group_step, carry0, unroll=unroll)


def scd_forward(x, params, *, size_list, alpha):
    """x: (B, T, F) float32.  Returns (B, T, size_list[1])."""
    B, T, F = x.shape
    H1, H2 = size_list
    (u11_1, u21_1, w01_1, b1, u11_2, w01_2, b2) = params
    f32 = jnp.float32

    # Pack G timesteps along lanes so each output store is 128 lanes wide.
    G = (128 // H2) if (H2 <= 128 and 128 % H2 == 0) else 1
    Tp = ((T + G - 1) // G) * G
    n_groups = Tp // G

    # Time-major, batch-on-sublanes, features-on-lanes kernel layout.
    xt = jnp.transpose(x, (1, 0, 2)).astype(f32)                 # (T, B, F)

    # Hoist the carry-independent layer-1 input projection out of the
    # recurrence: one (T*B, F) x (F, 4*H1+1) matmul, bias folded in.
    xp = (jnp.dot(xt.reshape(T * B, F), w01_1.T.astype(f32),
                  preferred_element_type=f32)
          + b1.astype(f32)[None, :]).reshape(T, B, 4 * H1 + 1)
    if Tp != T:
        xp = jnp.pad(xp, ((0, Tp - T), (0, 0), (0, 0)))          # padded steps
    xpg = xp[:, :, :4 * H1]                                      # (Tp, B, 4H1)
    xpz = xp[:, :, 4 * H1:]                                      # (Tp, B, 1)

    # Recurrent weights: fuse [U_11 | U_21] and [U_11 | W_01] along the
    # contraction axis once; split the z_hat row out (computed on the VPU so
    # the gate matmul output stays exactly 4*H lane-dense on all chips).
    w1cat = jnp.concatenate([u11_1, u21_1], axis=1).astype(f32)  # (4H1+1, H1+H2)
    w1r = w1cat[:4 * H1, :].T                                    # (H1+H2, 4H1)
    w1z = w1cat[4 * H1:4 * H1 + 1, :]                            # (1, H1+H2)

    w2cat = jnp.concatenate([u11_2, w01_2], axis=1).astype(f32)  # (4H2+1, H2+H1)
    w2r = w2cat[:4 * H2, :].T                                    # (H2+H1, 4H2)
    w2z = w2cat[4 * H2:4 * H2 + 1, :]                            # (1, H2+H1)
    b2g = b2[:4 * H2].reshape(1, 4 * H2).astype(f32)
    b2z = b2[4 * H2:].reshape(1, 1).astype(f32)

    kernel = functools.partial(
        _scd_kernel, h1_size=H1, h2_size=H2, alpha=alpha, batch=B,
        n_groups=n_groups, group=G,
        unroll=True if n_groups <= 8 else 2)

    vmem = lambda: pl.BlockSpec(memory_space=pltpu.MemorySpace.VMEM)

    out = pl.pallas_call(
        kernel,
        out_shape=jax.ShapeDtypeStruct((n_groups, B, G * H2), f32),
        in_specs=[vmem() for _ in range(8)],
        out_specs=vmem(),
    )(xpg, xpz, w1r, w1z, w2r, w2z, b2g, b2z)

    # Un-pack the lane-grouped output: (n_groups, B, G*H2) -> (B, T, H2).
    out = out.reshape(n_groups, B, G, H2).transpose(1, 0, 2, 3)
    out = out.reshape(B, Tp, H2)[:, :T, :]
    return out.astype(x.dtype)


# ----------------------------- pure-JAX reference ----------------------------
# Mirrors the PyTorch module: column-major (feature, batch) matrices and the
# original three un-fused matmuls — an independent check of the fused kernel.

def _scd_cell_ref(U11, U21, W01, bias, c, h_bottom, h, h_top, z, z_bottom,
                  H, alpha):
    s_recur = (1.0 - z) * jnp.dot(U11, h)
    s_topdown = z * jnp.dot(U21, h_top) if U21 is not None else 0.0
    s_bottomup = z_bottom * jnp.dot(W01, h_bottom)
    f_s = s_recur + s_topdown + s_bottomup + bias[:, None]
    f = jax.nn.sigmoid(f_s[0:H, :])
    i = jax.nn.sigmoid(f_s[H:2 * H, :])
    o = jax.nn.sigmoid(f_s[2 * H:3 * H, :])
    g = jnp.tanh(f_s[3 * H:4 * H, :])
    z_hat = _hard_sigm(alpha, f_s[4 * H:4 * H + 1, :])
    c_new = (z * (i * g)
             + (1.0 - z) * (1.0 - z_bottom) * c
             + (1.0 - z) * z_bottom * (f * c + i * g))
    tanh_c = jnp.tanh(c_new)
    h_new = (z * o * tanh_c
             + (1.0 - z) * (1.0 - z_bottom) * h
             + (1.0 - z) * z_bottom * o * tanh_c)
    return h_new, c_new, z_hat


def scd_reference(x, params, *, size_list, alpha):
    (u11_1, u21_1, w01_1, b1, u11_2, w01_2, b2) = params
    B, T, F = x.shape
    H1, H2 = size_list
    h1 = jnp.zeros((H1, B)); c1 = jnp.zeros((H1, B)); z1 = jnp.zeros((1, B))
    h2 = jnp.zeros((H2, B)); c2 = jnp.zeros((H2, B)); z2 = jnp.zeros((1, B))
    z_one = jnp.ones((1, B))
    outs = []
    for t in range(T):
        xt = x[:, t, :].T
        h1, c1, z1 = _scd_cell_ref(u11_1, u21_1, w01_1, b1, c1, xt, h1, h2,
                                   z1, z_one, H1, alpha)
        h2, c2, z2 = _scd_cell_ref(u11_2, None, w01_2, b2, c2, h1, h2, None,
                                   z2, z1, H2, alpha)
        outs.append((h2 * z2).T)
    return jnp.stack(outs, axis=1)  # (B, T, H2)


# ----------------------------- parameter init --------------------------------

def init_params(key, input_size, size_list):
    H1, H2 = size_list
    ks = jax.random.split(key, 7)
    u = lambda k, shape: jax.random.uniform(k, shape, jnp.float32, -0.1, 0.1)
    u11_1 = u(ks[0], (4 * H1 + 1, H1))
    u21_1 = u(ks[1], (4 * H1 + 1, H2))
    w01_1 = u(ks[2], (4 * H1 + 1, input_size))
    b1 = u(ks[3], (4 * H1 + 1,))
    u11_2 = u(ks[4], (4 * H2 + 1, H2))
    w01_2 = u(ks[5], (4 * H2 + 1, H1))
    b2 = u(ks[6], (4 * H2 + 1,))
    return (u11_1, u21_1, w01_1, b1, u11_2, w01_2, b2)


# ----------------------------- main -----------------------------------------

if __name__ == "__main__":
    B, T, F = 2, 8, 16
    size_list = (32, 32)
    alpha = 1.0

    key = jax.random.PRNGKey(0)
    k_x, k_p = jax.random.split(key)
    x = jax.random.normal(k_x, (B, T, F), dtype=jnp.float32)
    params = init_params(k_p, F, size_list)

    out = scd_forward(x, params, size_list=size_list, alpha=alpha)
    out = jax.block_until_ready(out)

    ref = jax.block_until_ready(
        scd_reference(x, params, size_list=size_list, alpha=alpha))

    assert out.shape == (B, T, size_list[1]), out.shape
    np.testing.assert_allclose(np.asarray(out), np.asarray(ref),
                               rtol=2e-4, atol=2e-4)
    print("KERNEL_OK")
</pallas_src>

<mosaic_0001>
module attributes {stable_mosaic.version = 11 : i64} {
  func.func @_scd_kernel(%arg0: memref<8x2x128xf32, #tpu.memory_space<vmem>>, %arg1: memref<8x2x1xf32, #tpu.memory_space<vmem>>, %arg2: memref<64x128xf32, #tpu.memory_space<vmem>>, %arg3: memref<1x64xf32, #tpu.memory_space<vmem>>, %arg4: memref<64x128xf32, #tpu.memory_space<vmem>>, %arg5: memref<1x64xf32, #tpu.memory_space<vmem>>, %arg6: memref<1x128xf32, #tpu.memory_space<vmem>>, %arg7: memref<1x1xf32, #tpu.memory_space<vmem>>, %arg8: memref<2x2x128xf32, #tpu.memory_space<vmem>>) attributes {dimension_semantics = [], scalar_prefetch = 0 : i64, scratch_operands = 0 : i64, tpu.core_type = #tpu.core_type<tc>} {
    %c0 = arith.constant 0 : index
    %c0_0 = arith.constant 0 : index
    %0 = vector.load %arg2[%c0, %c0_0] : memref<64x128xf32, #tpu.memory_space<vmem>>, vector<64x128xf32>
    %c0_1 = arith.constant 0 : index
    %c0_2 = arith.constant 0 : index
    %1 = vector.load %arg3[%c0_1, %c0_2] : memref<1x64xf32, #tpu.memory_space<vmem>>, vector<1x64xf32>
    %c0_3 = arith.constant 0 : index
    %c0_4 = arith.constant 0 : index
    %2 = vector.load %arg4[%c0_3, %c0_4] : memref<64x128xf32, #tpu.memory_space<vmem>>, vector<64x128xf32>
    %c0_5 = arith.constant 0 : index
    %c0_6 = arith.constant 0 : index
    %3 = vector.load %arg5[%c0_5, %c0_6] : memref<1x64xf32, #tpu.memory_space<vmem>>, vector<1x64xf32>
    %c0_7 = arith.constant 0 : index
    %c0_8 = arith.constant 0 : index
    %4 = vector.load %arg6[%c0_7, %c0_8] : memref<1x128xf32, #tpu.memory_space<vmem>>, vector<1x128xf32>
    %5 = vector.shape_cast %4 : vector<1x128xf32> to vector<1x128xf32>
    %6 = vector.broadcast %5 : vector<1x128xf32> to vector<2x128xf32>
    %c0_9 = arith.constant 0 : index
    %c0_10 = arith.constant 0 : index
    %7 = vector.load %arg7[%c0_9, %c0_10] : memref<1x1xf32, #tpu.memory_space<vmem>>, vector<1x1xf32>
    %8 = vector.shape_cast %7 : vector<1x1xf32> to vector<1x1xf32>
    %9 = vector.broadcast %8 : vector<1x1xf32> to vector<2x1xf32>
    %cst = arith.constant 0.000000e+00 : f32
    %10 = vector.broadcast %cst : f32 to vector<2x32xf32>
    %cst_11 = arith.constant 0.000000e+00 : f32
    %11 = vector.broadcast %cst_11 : f32 to vector<2x32xf32>
    %cst_12 = arith.constant 0.000000e+00 : f32
    %12 = vector.broadcast %cst_12 : f32 to vector<2x1xf32>
    %cst_13 = arith.constant 0.000000e+00 : f32
    %13 = vector.broadcast %cst_13 : f32 to vector<2x32xf32>
    %cst_14 = arith.constant 0.000000e+00 : f32
    %14 = vector.broadcast %cst_14 : f32 to vector<2x32xf32>
    %cst_15 = arith.constant 0.000000e+00 : f32
    %15 = vector.broadcast %cst_15 : f32 to vector<2x1xf32>
    %c0_i32 = arith.constant 0 : i32
    %c4_i32 = arith.constant 4 : i32
    %16 = arith.muli %c0_i32, %c4_i32 : i32
    %c0_i32_16 = arith.constant 0 : i32
    %17 = arith.addi %16, %c0_i32_16 : i32
    %cst_17 = arith.constant 1.000000e+00 : f32
    %18 = vector.broadcast %cst_17 : f32 to vector<2x1xf32>
    %19 = arith.subf %18, %12 : vector<2x1xf32>
    %20 = vector.broadcast %19 : vector<2x1xf32> to vector<2x32xf32>
    %21 = arith.mulf %20, %10 : vector<2x32xf32>
    %22 = vector.broadcast %12 : vector<2x1xf32> to vector<2x32xf32>
    %23 = arith.mulf %22, %13 : vector<2x32xf32>
    %24 = tpu.concatenate %21, %23 in 1 : vector<2x32xf32>, vector<2x32xf32> -> vector<2x64xf32>
    %cst_18 = arith.constant dense<0.000000e+00> : vector<2x128xf32>
    %25 = tpu.matmul %24, %0, %cst_18 {dimension_numbers = #tpu.dot_dimension_numbers<[1], [0], [0], [1], [0, 0, 1, 1], [], []>} : vector<2x64xf32>, vector<64x128xf32>, vector<2x128xf32> -> vector<2x128xf32>
    %26 = arith.index_cast %17 : i32 to index
    %c0_19 = arith.constant 0 : index
    %c0_20 = arith.constant 0 : index
    %27 = vector.load %arg0[%26, %c0_19, %c0_20] : memref<8x2x128xf32, #tpu.memory_space<vmem>>, vector<1x2x128xf32>
    %28 = vector.shape_cast %27 : vector<1x2x128xf32> to vector<2x128xf32>
    %29 = arith.addf %25, %28 : vector<2x128xf32>
    %30 = vector.broadcast %1 : vector<1x64xf32> to vector<2x64xf32>
    %31 = arith.mulf %24, %30 : vector<2x64xf32>
    %cst_21 = arith.constant dense<0.000000e+00> : vector<2xf32>
    %32 = vector.multi_reduction <add>, %31, %cst_21 [1] : vector<2x64xf32> to vector<2xf32>
    %33 = vector.shape_cast %32 : vector<2xf32> to vector<2x1xf32>
    %34 = arith.index_cast %17 : i32 to index
    %c0_22 = arith.constant 0 : index
    %c0_23 = arith.constant 0 : index
    %35 = vector.load %arg1[%34, %c0_22, %c0_23] : memref<8x2x1xf32, #tpu.memory_space<vmem>>, vector<1x2x1xf32>
    %36 = vector.shape_cast %35 : vector<1x2x1xf32> to vector<2x1xf32>
    %37 = arith.addf %33, %36 : vector<2x1xf32>
    %38 = vector.extract_strided_slice %29 {offsets = [0, 0], sizes = [2, 96], strides = [1, 1]} : vector<2x128xf32> to vector<2x96xf32>
    %39 = arith.negf %38 : vector<2x96xf32>
    %40 = math.exp %39 : vector<2x96xf32>
    %cst_24 = arith.constant 1.000000e+00 : f32
    %41 = vector.broadcast %cst_24 : f32 to vector<2x96xf32>
    %42 = arith.addf %41, %40 : vector<2x96xf32>
    %43 = arith.divf %41, %42 : vector<2x96xf32>
    %44 = vector.extract_strided_slice %43 {offsets = [0, 0], sizes = [2, 32], strides = [1, 1]} : vector<2x96xf32> to vector<2x32xf32>
    %45 = vector.extract_strided_slice %43 {offsets = [0, 32], sizes = [2, 32], strides = [1, 1]} : vector<2x96xf32> to vector<2x32xf32>
    %46 = vector.extract_strided_slice %43 {offsets = [0, 64], sizes = [2, 32], strides = [1, 1]} : vector<2x96xf32> to vector<2x32xf32>
    %47 = vector.extract_strided_slice %29 {offsets = [0, 96], sizes = [2, 32], strides = [1, 1]} : vector<2x128xf32> to vector<2x32xf32>
    %48 = math.tanh %47 : vector<2x32xf32>
    %cst_25 = arith.constant 1.000000e+00 : f32
    %49 = vector.broadcast %cst_25 : f32 to vector<2x1xf32>
    %50 = arith.mulf %49, %37 : vector<2x1xf32>
    %cst_26 = arith.constant 1.000000e+00 : f32
    %51 = vector.broadcast %cst_26 : f32 to vector<2x1xf32>
    %52 = arith.addf %50, %51 : vector<2x1xf32>
    %cst_27 = arith.constant 5.000000e-01 : f32
    %53 = vector.broadcast %cst_27 : f32 to vector<2x1xf32>
    %54 = arith.mulf %52, %53 : vector<2x1xf32>
    %cst_28 = arith.constant 0.000000e+00 : f32
    %cst_29 = arith.constant 1.000000e+00 : f32
    %55 = vector.broadcast %cst_28 : f32 to vector<2x1xf32>
    %56 = arith.maximumf %55, %54 : vector<2x1xf32>
    %57 = vector.broadcast %cst_29 : f32 to vector<2x1xf32>
    %58 = arith.minimumf %57, %56 : vector<2x1xf32>
    %59 = arith.mulf %45, %48 : vector<2x32xf32>
    %cst_30 = arith.constant 1.000000e+00 : f32
    %60 = vector.broadcast %cst_30 : f32 to vector<2x1xf32>
    %61 = arith.subf %60, %12 : vector<2x1xf32>
    %62 = arith.mulf %44, %11 : vector<2x32xf32>
    %63 = vector.broadcast %61 : vector<2x1xf32> to vector<2x32xf32>
    %64 = arith.mulf %63, %62 : vector<2x32xf32>
    %65 = arith.addf %59, %64 : vector<2x32xf32>
    %66 = math.tanh %65 : vector<2x32xf32>
    %67 = arith.mulf %46, %66 : vector<2x32xf32>
    %cst_31 = arith.constant 1.000000e+00 : f32
    %68 = vector.broadcast %cst_31 : f32 to vector<2x1xf32>
    %69 = arith.subf %68, %15 : vector<2x1xf32>
    %70 = vector.broadcast %69 : vector<2x1xf32> to vector<2x32xf32>
    %71 = arith.mulf %70, %13 : vector<2x32xf32>
    %72 = vector.broadcast %58 : vector<2x1xf32> to vector<2x32xf32>
    %73 = arith.mulf %72, %67 : vector<2x32xf32>
    %74 = tpu.concatenate %71, %73 in 1 : vector<2x32xf32>, vector<2x32xf32> -> vector<2x64xf32>
    %cst_32 = arith.constant dense<0.000000e+00> : vector<2x128xf32>
    %75 = tpu.matmul %74, %2, %cst_32 {dimension_numbers = #tpu.dot_dimension_numbers<[1], [0], [0], [1], [0, 0, 1, 1], [], []>} : vector<2x64xf32>, vector<64x128xf32>, vector<2x128xf32> -> vector<2x128xf32>
    %76 = arith.addf %75, %6 : vector<2x128xf32>
    %77 = vector.broadcast %3 : vector<1x64xf32> to vector<2x64xf32>
    %78 = arith.mulf %74, %77 : vector<2x64xf32>
    %cst_33 = arith.constant dense<0.000000e+00> : vector<2xf32>
    %79 = vector.multi_reduction <add>, %78, %cst_33 [1] : vector<2x64xf32> to vector<2xf32>
    %80 = vector.shape_cast %79 : vector<2xf32> to vector<2x1xf32>
    %81 = arith.addf %80, %9 : vector<2x1xf32>
    %82 = vector.extract_strided_slice %76 {offsets = [0, 0], sizes = [2, 96], strides = [1, 1]} : vector<2x128xf32> to vector<2x96xf32>
    %83 = arith.negf %82 : vector<2x96xf32>
    %84 = math.exp %83 : vector<2x96xf32>
    %cst_34 = arith.constant 1.000000e+00 : f32
    %85 = vector.broadcast %cst_34 : f32 to vector<2x96xf32>
    %86 = arith.addf %85, %84 : vector<2x96xf32>
    %87 = arith.divf %85, %86 : vector<2x96xf32>
    %88 = vector.extract_strided_slice %87 {offsets = [0, 0], sizes = [2, 32], strides = [1, 1]} : vector<2x96xf32> to vector<2x32xf32>
    %89 = vector.extract_strided_slice %87 {offsets = [0, 32], sizes = [2, 32], strides = [1, 1]} : vector<2x96xf32> to vector<2x32xf32>
    %90 = vector.extract_strided_slice %87 {offsets = [0, 64], sizes = [2, 32], strides = [1, 1]} : vector<2x96xf32> to vector<2x32xf32>
    %91 = vector.extract_strided_slice %76 {offsets = [0, 96], sizes = [2, 32], strides = [1, 1]} : vector<2x128xf32> to vector<2x32xf32>
    %92 = math.tanh %91 : vector<2x32xf32>
    %cst_35 = arith.constant 1.000000e+00 : f32
    %93 = vector.broadcast %cst_35 : f32 to vector<2x1xf32>
    %94 = arith.mulf %93, %81 : vector<2x1xf32>
    %cst_36 = arith.constant 1.000000e+00 : f32
    %95 = vector.broadcast %cst_36 : f32 to vector<2x1xf32>
    %96 = arith.addf %94, %95 : vector<2x1xf32>
    %cst_37 = arith.constant 5.000000e-01 : f32
    %97 = vector.broadcast %cst_37 : f32 to vector<2x1xf32>
    %98 = arith.mulf %96, %97 : vector<2x1xf32>
    %cst_38 = arith.constant 0.000000e+00 : f32
    %cst_39 = arith.constant 1.000000e+00 : f32
    %99 = vector.broadcast %cst_38 : f32 to vector<2x1xf32>
    %100 = arith.maximumf %99, %98 : vector<2x1xf32>
    %101 = vector.broadcast %cst_39 : f32 to vector<2x1xf32>
    %102 = arith.minimumf %101, %100 : vector<2x1xf32>
    %103 = arith.mulf %89, %92 : vector<2x32xf32>
    %cst_40 = arith.constant 1.000000e+00 : f32
    %104 = vector.broadcast %cst_40 : f32 to vector<2x1xf32>
    %105 = arith.subf %104, %15 : vector<2x1xf32>
    %106 = arith.mulf %105, %58 : vector<2x1xf32>
    %cst_41 = arith.constant 1.000000e+00 : f32
    %107 = vector.broadcast %cst_41 : f32 to vector<2x1xf32>
    %108 = arith.subf %107, %15 : vector<2x1xf32>
    %109 = arith.subf %108, %106 : vector<2x1xf32>
    %110 = vector.broadcast %15 : vector<2x1xf32> to vector<2x32xf32>
    %111 = arith.mulf %110, %103 : vector<2x32xf32>
    %112 = vector.broadcast %109 : vector<2x1xf32> to vector<2x32xf32>
    %113 = arith.mulf %112, %14 : vector<2x32xf32>
    %114 = arith.addf %111, %113 : vector<2x32xf32>
    %115 = arith.mulf %88, %14 : vector<2x32xf32>
    %116 = arith.addf %115, %103 : vector<2x32xf32>
    %117 = vector.broadcast %106 : vector<2x1xf32> to vector<2x32xf32>
    %118 = arith.mulf %117, %116 : vector<2x32xf32>
    %119 = arith.addf %114, %118 : vector<2x32xf32>
    %cst_42 = arith.constant 1.000000e+00 : f32
    %120 = vector.broadcast %cst_42 : f32 to vector<2x1xf32>
    %121 = arith.subf %120, %109 : vector<2x1xf32>
    %122 = vector.broadcast %121 : vector<2x1xf32> to vector<2x32xf32>
    %123 = arith.mulf %122, %90 : vector<2x32xf32>
    %124 = math.tanh %119 : vector<2x32xf32>
    %125 = arith.mulf %123, %124 : vector<2x32xf32>
    %126 = vector.broadcast %109 : vector<2x1xf32> to vector<2x32xf32>
    %127 = arith.mulf %126, %13 : vector<2x32xf32>
    %128 = arith.addf %125, %127 : vector<2x32xf32>
    %129 = vector.broadcast %102 : vector<2x1xf32> to vector<2x32xf32>
    %130 = arith.mulf %128, %129 : vector<2x32xf32>
    %c4_i32_43 = arith.constant 4 : i32
    %131 = arith.muli %c0_i32, %c4_i32_43 : i32
    %c1_i32 = arith.constant 1 : i32
    %132 = arith.addi %131, %c1_i32 : i32
    %cst_44 = arith.constant 1.000000e+00 : f32
    %133 = vector.broadcast %cst_44 : f32 to vector<2x1xf32>
    %134 = arith.subf %133, %58 : vector<2x1xf32>
    %135 = vector.broadcast %134 : vector<2x1xf32> to vector<2x32xf32>
    %136 = arith.mulf %135, %67 : vector<2x32xf32>
    %137 = vector.broadcast %58 : vector<2x1xf32> to vector<2x32xf32>
    %138 = arith.mulf %137, %128 : vector<2x32xf32>
    %139 = tpu.concatenate %136, %138 in 1 : vector<2x32xf32>, vector<2x32xf32> -> vector<2x64xf32>
    %cst_45 = arith.constant dense<0.000000e+00> : vector<2x128xf32>
    %140 = tpu.matmul %139, %0, %cst_45 {dimension_numbers = #tpu.dot_dimension_numbers<[1], [0], [0], [1], [0, 0, 1, 1], [], []>} : vector<2x64xf32>, vector<64x128xf32>, vector<2x128xf32> -> vector<2x128xf32>
    %141 = arith.index_cast %132 : i32 to index
    %c0_46 = arith.constant 0 : index
    %c0_47 = arith.constant 0 : index
    %142 = vector.load %arg0[%141, %c0_46, %c0_47] : memref<8x2x128xf32, #tpu.memory_space<vmem>>, vector<1x2x128xf32>
    %143 = vector.shape_cast %142 : vector<1x2x128xf32> to vector<2x128xf32>
    %144 = arith.addf %140, %143 : vector<2x128xf32>
    %145 = vector.broadcast %1 : vector<1x64xf32> to vector<2x64xf32>
    %146 = arith.mulf %139, %145 : vector<2x64xf32>
    %cst_48 = arith.constant dense<0.000000e+00> : vector<2xf32>
    %147 = vector.multi_reduction <add>, %146, %cst_48 [1] : vector<2x64xf32> to vector<2xf32>
    %148 = vector.shape_cast %147 : vector<2xf32> to vector<2x1xf32>
    %149 = arith.index_cast %132 : i32 to index
    %c0_49 = arith.constant 0 : index
    %c0_50 = arith.constant 0 : index
    %150 = vector.load %arg1[%149, %c0_49, %c0_50] : memref<8x2x1xf32, #tpu.memory_space<vmem>>, vector<1x2x1xf32>
    %151 = vector.shape_cast %150 : vector<1x2x1xf32> to vector<2x1xf32>
    %152 = arith.addf %148, %151 : vector<2x1xf32>
    %153 = vector.extract_strided_slice %144 {offsets = [0, 0], sizes = [2, 96], strides = [1, 1]} : vector<2x128xf32> to vector<2x96xf32>
    %154 = arith.negf %153 : vector<2x96xf32>
    %155 = math.exp %154 : vector<2x96xf32>
    %cst_51 = arith.constant 1.000000e+00 : f32
    %156 = vector.broadcast %cst_51 : f32 to vector<2x96xf32>
    %157 = arith.addf %156, %155 : vector<2x96xf32>
    %158 = arith.divf %156, %157 : vector<2x96xf32>
    %159 = vector.extract_strided_slice %158 {offsets = [0, 0], sizes = [2, 32], strides = [1, 1]} : vector<2x96xf32> to vector<2x32xf32>
    %160 = vector.extract_strided_slice %158 {offsets = [0, 32], sizes = [2, 32], strides = [1, 1]} : vector<2x96xf32> to vector<2x32xf32>
    %161 = vector.extract_strided_slice %158 {offsets = [0, 64], sizes = [2, 32], strides = [1, 1]} : vector<2x96xf32> to vector<2x32xf32>
    %162 = vector.extract_strided_slice %144 {offsets = [0, 96], sizes = [2, 32], strides = [1, 1]} : vector<2x128xf32> to vector<2x32xf32>
    %163 = math.tanh %162 : vector<2x32xf32>
    %cst_52 = arith.constant 1.000000e+00 : f32
    %164 = vector.broadcast %cst_52 : f32 to vector<2x1xf32>
    %165 = arith.mulf %164, %152 : vector<2x1xf32>
    %cst_53 = arith.constant 1.000000e+00 : f32
    %166 = vector.broadcast %cst_53 : f32 to vector<2x1xf32>
    %167 = arith.addf %165, %166 : vector<2x1xf32>
    %cst_54 = arith.constant 5.000000e-01 : f32
    %168 = vector.broadcast %cst_54 : f32 to vector<2x1xf32>
    %169 = arith.mulf %167, %168 : vector<2x1xf32>
    %cst_55 = arith.constant 0.000000e+00 : f32
    %cst_56 = arith.constant 1.000000e+00 : f32
    %170 = vector.broadcast %cst_55 : f32 to vector<2x1xf32>
    %171 = arith.maximumf %170, %169 : vector<2x1xf32>
    %172 = vector.broadcast %cst_56 : f32 to vector<2x1xf32>
    %173 = arith.minimumf %172, %171 : vector<2x1xf32>
    %174 = arith.mulf %160, %163 : vector<2x32xf32>
    %cst_57 = arith.constant 1.000000e+00 : f32
    %175 = vector.broadcast %cst_57 : f32 to vector<2x1xf32>
    %176 = arith.subf %175, %58 : vector<2x1xf32>
    %177 = arith.mulf %159, %65 : vector<2x32xf32>
    %178 = vector.broadcast %176 : vector<2x1xf32> to vector<2x32xf32>
    %179 = arith.mulf %178, %177 : vector<2x32xf32>
    %180 = arith.addf %174, %179 : vector<2x32xf32>
    %181 = math.tanh %180 : vector<2x32xf32>
    %182 = arith.mulf %161, %181 : vector<2x32xf32>
    %cst_58 = arith.constant 1.000000e+00 : f32
    %183 = vector.broadcast %cst_58 : f32 to vector<2x1xf32>
    %184 = arith.subf %183, %102 : vector<2x1xf32>
    %185 = vector.broadcast %184 : vector<2x1xf32> to vector<2x32xf32>
    %186 = arith.mulf %185, %128 : vector<2x32xf32>
    %187 = vector.broadcast %173 : vector<2x1xf32> to vector<2x32xf32>
    %188 = arith.mulf %187, %182 : vector<2x32xf32>
    %189 = tpu.concatenate %186, %188 in 1 : vector<2x32xf32>, vector<2x32xf32> -> vector<2x64xf32>
    %cst_59 = arith.constant dense<0.000000e+00> : vector<2x128xf32>
    %190 = tpu.matmul %189, %2, %cst_59 {dimension_numbers = #tpu.dot_dimension_numbers<[1], [0], [0], [1], [0, 0, 1, 1], [], []>} : vector<2x64xf32>, vector<64x128xf32>, vector<2x128xf32> -> vector<2x128xf32>
    %191 = arith.addf %190, %6 : vector<2x128xf32>
    %192 = vector.broadcast %3 : vector<1x64xf32> to vector<2x64xf32>
    %193 = arith.mulf %189, %192 : vector<2x64xf32>
    %cst_60 = arith.constant dense<0.000000e+00> : vector<2xf32>
    %194 = vector.multi_reduction <add>, %193, %cst_60 [1] : vector<2x64xf32> to vector<2xf32>
    %195 = vector.shape_cast %194 : vector<2xf32> to vector<2x1xf32>
    %196 = arith.addf %195, %9 : vector<2x1xf32>
    %197 = vector.extract_strided_slice %191 {offsets = [0, 0], sizes = [2, 96], strides = [1, 1]} : vector<2x128xf32> to vector<2x96xf32>
    %198 = arith.negf %197 : vector<2x96xf32>
    %199 = math.exp %198 : vector<2x96xf32>
    %cst_61 = arith.constant 1.000000e+00 : f32
    %200 = vector.broadcast %cst_61 : f32 to vector<2x96xf32>
    %201 = arith.addf %200, %199 : vector<2x96xf32>
    %202 = arith.divf %200, %201 : vector<2x96xf32>
    %203 = vector.extract_strided_slice %202 {offsets = [0, 0], sizes = [2, 32], strides = [1, 1]} : vector<2x96xf32> to vector<2x32xf32>
    %204 = vector.extract_strided_slice %202 {offsets = [0, 32], sizes = [2, 32], strides = [1, 1]} : vector<2x96xf32> to vector<2x32xf32>
    %205 = vector.extract_strided_slice %202 {offsets = [0, 64], sizes = [2, 32], strides = [1, 1]} : vector<2x96xf32> to vector<2x32xf32>
    %206 = vector.extract_strided_slice %191 {offsets = [0, 96], sizes = [2, 32], strides = [1, 1]} : vector<2x128xf32> to vector<2x32xf32>
    %207 = math.tanh %206 : vector<2x32xf32>
    %cst_62 = arith.constant 1.000000e+00 : f32
    %208 = vector.broadcast %cst_62 : f32 to vector<2x1xf32>
    %209 = arith.mulf %208, %196 : vector<2x1xf32>
    %cst_63 = arith.constant 1.000000e+00 : f32
    %210 = vector.broadcast %cst_63 : f32 to vector<2x1xf32>
    %211 = arith.addf %209, %210 : vector<2x1xf32>
    %cst_64 = arith.constant 5.000000e-01 : f32
    %212 = vector.broadcast %cst_64 : f32 to vector<2x1xf32>
    %213 = arith.mulf %211, %212 : vector<2x1xf32>
    %cst_65 = arith.constant 0.000000e+00 : f32
    %cst_66 = arith.constant 1.000000e+00 : f32
    %214 = vector.broadcast %cst_65 : f32 to vector<2x1xf32>
    %215 = arith.maximumf %214, %213 : vector<2x1xf32>
    %216 = vector.broadcast %cst_66 : f32 to vector<2x1xf32>
    %217 = arith.minimumf %216, %215 : vector<2x1xf32>
    %218 = arith.mulf %204, %207 : vector<2x32xf32>
    %cst_67 = arith.constant 1.000000e+00 : f32
    %219 = vector.broadcast %cst_67 : f32 to vector<2x1xf32>
    %220 = arith.subf %219, %102 : vector<2x1xf32>
    %221 = arith.mulf %220, %173 : vector<2x1xf32>
    %cst_68 = arith.constant 1.000000e+00 : f32
    %222 = vector.broadcast %cst_68 : f32 to vector<2x1xf32>
    %223 = arith.subf %222, %102 : vector<2x1xf32>
    %224 = arith.subf %223, %221 : vector<2x1xf32>
    %225 = vector.broadcast %102 : vector<2x1xf32> to vector<2x32xf32>
    %226 = arith.mulf %225, %218 : vector<2x32xf32>
    %227 = vector.broadcast %224 : vector<2x1xf32> to vector<2x32xf32>
    %228 = arith.mulf %227, %119 : vector<2x32xf32>
    %229 = arith.addf %226, %228 : vector<2x32xf32>
    %230 = arith.mulf %203, %119 : vector<2x32xf32>
    %231 = arith.addf %230, %218 : vector<2x32xf32>
    %232 = vector.broadcast %221 : vector<2x1xf32> to vector<2x32xf32>
    %233 = arith.mulf %232, %231 : vector<2x32xf32>
    %234 = arith.addf %229, %233 : vector<2x32xf32>
    %cst_69 = arith.constant 1.000000e+00 : f32
    %235 = vector.broadcast %cst_69 : f32 to vector<2x1xf32>
    %236 = arith.subf %235, %224 : vector<2x1xf32>
    %237 = vector.broadcast %236 : vector<2x1xf32> to vector<2x32xf32>
    %238 = arith.mulf %237, %205 : vector<2x32xf32>
    %239 = math.tanh %234 : vector<2x32xf32>
    %240 = arith.mulf %238, %239 : vector<2x32xf32>
    %241 = vector.broadcast %224 : vector<2x1xf32> to vector<2x32xf32>
    %242 = arith.mulf %241, %128 : vector<2x32xf32>
    %243 = arith.addf %240, %242 : vector<2x32xf32>
    %244 = vector.broadcast %217 : vector<2x1xf32> to vector<2x32xf32>
    %245 = arith.mulf %243, %244 : vector<2x32xf32>
    %c4_i32_70 = arith.constant 4 : i32
    %246 = arith.muli %c0_i32, %c4_i32_70 : i32
    %c2_i32 = arith.constant 2 : i32
    %247 = arith.addi %246, %c2_i32 : i32
    %cst_71 = arith.constant 1.000000e+00 : f32
    %248 = vector.broadcast %cst_71 : f32 to vector<2x1xf32>
    %249 = arith.subf %248, %173 : vector<2x1xf32>
    %250 = vector.broadcast %249 : vector<2x1xf32> to vector<2x32xf32>
    %251 = arith.mulf %250, %182 : vector<2x32xf32>
    %252 = vector.broadcast %173 : vector<2x1xf32> to vector<2x32xf32>
    %253 = arith.mulf %252, %243 : vector<2x32xf32>
    %254 = tpu.concatenate %251, %253 in 1 : vector<2x32xf32>, vector<2x32xf32> -> vector<2x64xf32>
    %cst_72 = arith.constant dense<0.000000e+00> : vector<2x128xf32>
    %255 = tpu.matmul %254, %0, %cst_72 {dimension_numbers = #tpu.dot_dimension_numbers<[1], [0], [0], [1], [0, 0, 1, 1], [], []>} : vector<2x64xf32>, vector<64x128xf32>, vector<2x128xf32> -> vector<2x128xf32>
    %256 = arith.index_cast %247 : i32 to index
    %c0_73 = arith.constant 0 : index
    %c0_74 = arith.constant 0 : index
    %257 = vector.load %arg0[%256, %c0_73, %c0_74] : memref<8x2x128xf32, #tpu.memory_space<vmem>>, vector<1x2x128xf32>
    %258 = vector.shape_cast %257 : vector<1x2x128xf32> to vector<2x128xf32>
    %259 = arith.addf %255, %258 : vector<2x128xf32>
    %260 = vector.broadcast %1 : vector<1x64xf32> to vector<2x64xf32>
    %261 = arith.mulf %254, %260 : vector<2x64xf32>
    %cst_75 = arith.constant dense<0.000000e+00> : vector<2xf32>
    %262 = vector.multi_reduction <add>, %261, %cst_75 [1] : vector<2x64xf32> to vector<2xf32>
    %263 = vector.shape_cast %262 : vector<2xf32> to vector<2x1xf32>
    %264 = arith.index_cast %247 : i32 to index
    %c0_76 = arith.constant 0 : index
    %c0_77 = arith.constant 0 : index
    %265 = vector.load %arg1[%264, %c0_76, %c0_77] : memref<8x2x1xf32, #tpu.memory_space<vmem>>, vector<1x2x1xf32>
    %266 = vector.shape_cast %265 : vector<1x2x1xf32> to vector<2x1xf32>
    %267 = arith.addf %263, %266 : vector<2x1xf32>
    %268 = vector.extract_strided_slice %259 {offsets = [0, 0], sizes = [2, 96], strides = [1, 1]} : vector<2x128xf32> to vector<2x96xf32>
    %269 = arith.negf %268 : vector<2x96xf32>
    %270 = math.exp %269 : vector<2x96xf32>
    %cst_78 = arith.constant 1.000000e+00 : f32
    %271 = vector.broadcast %cst_78 : f32 to vector<2x96xf32>
    %272 = arith.addf %271, %270 : vector<2x96xf32>
    %273 = arith.divf %271, %272 : vector<2x96xf32>
    %274 = vector.extract_strided_slice %273 {offsets = [0, 0], sizes = [2, 32], strides = [1, 1]} : vector<2x96xf32> to vector<2x32xf32>
    %275 = vector.extract_strided_slice %273 {offsets = [0, 32], sizes = [2, 32], strides = [1, 1]} : vector<2x96xf32> to vector<2x32xf32>
    %276 = vector.extract_strided_slice %273 {offsets = [0, 64], sizes = [2, 32], strides = [1, 1]} : vector<2x96xf32> to vector<2x32xf32>
    %277 = vector.extract_strided_slice %259 {offsets = [0, 96], sizes = [2, 32], strides = [1, 1]} : vector<2x128xf32> to vector<2x32xf32>
    %278 = math.tanh %277 : vector<2x32xf32>
    %cst_79 = arith.constant 1.000000e+00 : f32
    %279 = vector.broadcast %cst_79 : f32 to vector<2x1xf32>
    %280 = arith.mulf %279, %267 : vector<2x1xf32>
    %cst_80 = arith.constant 1.000000e+00 : f32
    %281 = vector.broadcast %cst_80 : f32 to vector<2x1xf32>
    %282 = arith.addf %280, %281 : vector<2x1xf32>
    %cst_81 = arith.constant 5.000000e-01 : f32
    %283 = vector.broadcast %cst_81 : f32 to vector<2x1xf32>
    %284 = arith.mulf %282, %283 : vector<2x1xf32>
    %cst_82 = arith.constant 0.000000e+00 : f32
    %cst_83 = arith.constant 1.000000e+00 : f32
    %285 = vector.broadcast %cst_82 : f32 to vector<2x1xf32>
    %286 = arith.maximumf %285, %284 : vector<2x1xf32>
    %287 = vector.broadcast %cst_83 : f32 to vector<2x1xf32>
    %288 = arith.minimumf %287, %286 : vector<2x1xf32>
    %289 = arith.mulf %275, %278 : vector<2x32xf32>
    %cst_84 = arith.constant 1.000000e+00 : f32
    %290 = vector.broadcast %cst_84 : f32 to vector<2x1xf32>
    %291 = arith.subf %290, %173 : vector<2x1xf32>
    %292 = arith.mulf %274, %180 : vector<2x32xf32>
    %293 = vector.broadcast %291 : vector<2x1xf32> to vector<2x32xf32>
    %294 = arith.mulf %293, %292 : vector<2x32xf32>
    %295 = arith.addf %289, %294 : vector<2x32xf32>
    %296 = math.tanh %295 : vector<2x32xf32>
    %297 = arith.mulf %276, %296 : vector<2x32xf32>
    %cst_85 = arith.constant 1.000000e+00 : f32
    %298 = vector.broadcast %cst_85 : f32 to vector<2x1xf32>
    %299 = arith.subf %298, %217 : vector<2x1xf32>
    %300 = vector.broadcast %299 : vector<2x1xf32> to vector<2x32xf32>
    %301 = arith.mulf %300, %243 : vector<2x32xf32>
    %302 = vector.broadcast %288 : vector<2x1xf32> to vector<2x32xf32>
    %303 = arith.mulf %302, %297 : vector<2x32xf32>
    %304 = tpu.concatenate %301, %303 in 1 : vector<2x32xf32>, vector<2x32xf32> -> vector<2x64xf32>
    %cst_86 = arith.constant dense<0.000000e+00> : vector<2x128xf32>
    %305 = tpu.matmul %304, %2, %cst_86 {dimension_numbers = #tpu.dot_dimension_numbers<[1], [0], [0], [1], [0, 0, 1, 1], [], []>} : vector<2x64xf32>, vector<64x128xf32>, vector<2x128xf32> -> vector<2x128xf32>
    %306 = arith.addf %305, %6 : vector<2x128xf32>
    %307 = vector.broadcast %3 : vector<1x64xf32> to vector<2x64xf32>
    %308 = arith.mulf %304, %307 : vector<2x64xf32>
    %cst_87 = arith.constant dense<0.000000e+00> : vector<2xf32>
    %309 = vector.multi_reduction <add>, %308, %cst_87 [1] : vector<2x64xf32> to vector<2xf32>
    %310 = vector.shape_cast %309 : vector<2xf32> to vector<2x1xf32>
    %311 = arith.addf %310, %9 : vector<2x1xf32>
    %312 = vector.extract_strided_slice %306 {offsets = [0, 0], sizes = [2, 96], strides = [1, 1]} : vector<2x128xf32> to vector<2x96xf32>
    %313 = arith.negf %312 : vector<2x96xf32>
    %314 = math.exp %313 : vector<2x96xf32>
    %cst_88 = arith.constant 1.000000e+00 : f32
    %315 = vector.broadcast %cst_88 : f32 to vector<2x96xf32>
    %316 = arith.addf %315, %314 : vector<2x96xf32>
    %317 = arith.divf %315, %316 : vector<2x96xf32>
    %318 = vector.extract_strided_slice %317 {offsets = [0, 0], sizes = [2, 32], strides = [1, 1]} : vector<2x96xf32> to vector<2x32xf32>
    %319 = vector.extract_strided_slice %317 {offsets = [0, 32], sizes = [2, 32], strides = [1, 1]} : vector<2x96xf32> to vector<2x32xf32>
    %320 = vector.extract_strided_slice %317 {offsets = [0, 64], sizes = [2, 32], strides = [1, 1]} : vector<2x96xf32> to vector<2x32xf32>
    %321 = vector.extract_strided_slice %306 {offsets = [0, 96], sizes = [2, 32], strides = [1, 1]} : vector<2x128xf32> to vector<2x32xf32>
    %322 = math.tanh %321 : vector<2x32xf32>
    %cst_89 = arith.constant 1.000000e+00 : f32
    %323 = vector.broadcast %cst_89 : f32 to vector<2x1xf32>
    %324 = arith.mulf %323, %311 : vector<2x1xf32>
    %cst_90 = arith.constant 1.000000e+00 : f32
    %325 = vector.broadcast %cst_90 : f32 to vector<2x1xf32>
    %326 = arith.addf %324, %325 : vector<2x1xf32>
    %cst_91 = arith.constant 5.000000e-01 : f32
    %327 = vector.broadcast %cst_91 : f32 to vector<2x1xf32>
    %328 = arith.mulf %326, %327 : vector<2x1xf32>
    %cst_92 = arith.constant 0.000000e+00 : f32
    %cst_93 = arith.constant 1.000000e+00 : f32
    %329 = vector.broadcast %cst_92 : f32 to vector<2x1xf32>
    %330 = arith.maximumf %329, %328 : vector<2x1xf32>
    %331 = vector.broadcast %cst_93 : f32 to vector<2x1xf32>
    %332 = arith.minimumf %331, %330 : vector<2x1xf32>
    %333 = arith.mulf %319, %322 : vector<2x32xf32>
    %cst_94 = arith.constant 1.000000e+00 : f32
    %334 = vector.broadcast %cst_94 : f32 to vector<2x1xf32>
    %335 = arith.subf %334, %217 : vector<2x1xf32>
    %336 = arith.mulf %335, %288 : vector<2x1xf32>
    %cst_95 = arith.constant 1.000000e+00 : f32
    %337 = vector.broadcast %cst_95 : f32 to vector<2x1xf32>
    %338 = arith.subf %337, %217 : vector<2x1xf32>
    %339 = arith.subf %338, %336 : vector<2x1xf32>
    %340 = vector.broadcast %217 : vector<2x1xf32> to vector<2x32xf32>
    %341 = arith.mulf %340, %333 : vector<2x32xf32>
    %342 = vector.broadcast %339 : vector<2x1xf32> to vector<2x32xf32>
    %343 = arith.mulf %342, %234 : vector<2x32xf32>
    %344 = arith.addf %341, %343 : vector<2x32xf32>
    %345 = arith.mulf %318, %234 : vector<2x32xf32>
    %346 = arith.addf %345, %333 : vector<2x32xf32>
    %347 = vector.broadcast %336 : vector<2x1xf32> to vector<2x32xf32>
    %348 = arith.mulf %347, %346 : vector<2x32xf32>
    %349 = arith.addf %344, %348 : vector<2x32xf32>
    %cst_96 = arith.constant 1.000000e+00 : f32
    %350 = vector.broadcast %cst_96 : f32 to vector<2x1xf32>
    %351 = arith.subf %350, %339 : vector<2x1xf32>
    %352 = vector.broadcast %351 : vector<2x1xf32> to vector<2x32xf32>
    %353 = arith.mulf %352, %320 : vector<2x32xf32>
    %354 = math.tanh %349 : vector<2x32xf32>
    %355 = arith.mulf %353, %354 : vector<2x32xf32>
    %356 = vector.broadcast %339 : vector<2x1xf32> to vector<2x32xf32>
    %357 = arith.mulf %356, %243 : vector<2x32xf32>
    %358 = arith.addf %355, %357 : vector<2x32xf32>
    %359 = vector.broadcast %332 : vector<2x1xf32> to vector<2x32xf32>
    %360 = arith.mulf %358, %359 : vector<2x32xf32>
    %c4_i32_97 = arith.constant 4 : i32
    %361 = arith.muli %c0_i32, %c4_i32_97 : i32
    %c3_i32 = arith.constant 3 : i32
    %362 = arith.addi %361, %c3_i32 : i32
    %cst_98 = arith.constant 1.000000e+00 : f32
    %363 = vector.broadcast %cst_98 : f32 to vector<2x1xf32>
    %364 = arith.subf %363, %288 : vector<2x1xf32>
    %365 = vector.broadcast %364 : vector<2x1xf32> to vector<2x32xf32>
    %366 = arith.mulf %365, %297 : vector<2x32xf32>
    %367 = vector.broadcast %288 : vector<2x1xf32> to vector<2x32xf32>
    %368 = arith.mulf %367, %358 : vector<2x32xf32>
    %369 = tpu.concatenate %366, %368 in 1 : vector<2x32xf32>, vector<2x32xf32> -> vector<2x64xf32>
    %cst_99 = arith.constant dense<0.000000e+00> : vector<2x128xf32>
    %370 = tpu.matmul %369, %0, %cst_99 {dimension_numbers = #tpu.dot_dimension_numbers<[1], [0], [0], [1], [0, 0, 1, 1], [], []>} : vector<2x64xf32>, vector<64x128xf32>, vector<2x128xf32> -> vector<2x128xf32>
    %371 = arith.index_cast %362 : i32 to index
    %c0_100 = arith.constant 0 : index
    %c0_101 = arith.constant 0 : index
    %372 = vector.load %arg0[%371, %c0_100, %c0_101] : memref<8x2x128xf32, #tpu.memory_space<vmem>>, vector<1x2x128xf32>
    %373 = vector.shape_cast %372 : vector<1x2x128xf32> to vector<2x128xf32>
    %374 = arith.addf %370, %373 : vector<2x128xf32>
    %375 = vector.broadcast %1 : vector<1x64xf32> to vector<2x64xf32>
    %376 = arith.mulf %369, %375 : vector<2x64xf32>
    %cst_102 = arith.constant dense<0.000000e+00> : vector<2xf32>
    %377 = vector.multi_reduction <add>, %376, %cst_102 [1] : vector<2x64xf32> to vector<2xf32>
    %378 = vector.shape_cast %377 : vector<2xf32> to vector<2x1xf32>
    %379 = arith.index_cast %362 : i32 to index
    %c0_103 = arith.constant 0 : index
    %c0_104 = arith.constant 0 : index
    %380 = vector.load %arg1[%379, %c0_103, %c0_104] : memref<8x2x1xf32, #tpu.memory_space<vmem>>, vector<1x2x1xf32>
    %381 = vector.shape_cast %380 : vector<1x2x1xf32> to vector<2x1xf32>
    %382 = arith.addf %378, %381 : vector<2x1xf32>
    %383 = vector.extract_strided_slice %374 {offsets = [0, 0], sizes = [2, 96], strides = [1, 1]} : vector<2x128xf32> to vector<2x96xf32>
    %384 = arith.negf %383 : vector<2x96xf32>
    %385 = math.exp %384 : vector<2x96xf32>
    %cst_105 = arith.constant 1.000000e+00 : f32
    %386 = vector.broadcast %cst_105 : f32 to vector<2x96xf32>
    %387 = arith.addf %386, %385 : vector<2x96xf32>
    %388 = arith.divf %386, %387 : vector<2x96xf32>
    %389 = vector.extract_strided_slice %388 {offsets = [0, 0], sizes = [2, 32], strides = [1, 1]} : vector<2x96xf32> to vector<2x32xf32>
    %390 = vector.extract_strided_slice %388 {offsets = [0, 32], sizes = [2, 32], strides = [1, 1]} : vector<2x96xf32> to vector<2x32xf32>
    %391 = vector.extract_strided_slice %388 {offsets = [0, 64], sizes = [2, 32], strides = [1, 1]} : vector<2x96xf32> to vector<2x32xf32>
    %392 = vector.extract_strided_slice %374 {offsets = [0, 96], sizes = [2, 32], strides = [1, 1]} : vector<2x128xf32> to vector<2x32xf32>
    %393 = math.tanh %392 : vector<2x32xf32>
    %cst_106 = arith.constant 1.000000e+00 : f32
    %394 = vector.broadcast %cst_106 : f32 to vector<2x1xf32>
    %395 = arith.mulf %394, %382 : vector<2x1xf32>
    %cst_107 = arith.constant 1.000000e+00 : f32
    %396 = vector.broadcast %cst_107 : f32 to vector<2x1xf32>
    %397 = arith.addf %395, %396 : vector<2x1xf32>
    %cst_108 = arith.constant 5.000000e-01 : f32
    %398 = vector.broadcast %cst_108 : f32 to vector<2x1xf32>
    %399 = arith.mulf %397, %398 : vector<2x1xf32>
    %cst_109 = arith.constant 0.000000e+00 : f32
    %cst_110 = arith.constant 1.000000e+00 : f32
    %400 = vector.broadcast %cst_109 : f32 to vector<2x1xf32>
    %401 = arith.maximumf %400, %399 : vector<2x1xf32>
    %402 = vector.broadcast %cst_110 : f32 to vector<2x1xf32>
    %403 = arith.minimumf %402, %401 : vector<2x1xf32>
    %404 = arith.mulf %390, %393 : vector<2x32xf32>
    %cst_111 = arith.constant 1.000000e+00 : f32
    %405 = vector.broadcast %cst_111 : f32 to vector<2x1xf32>
    %406 = arith.subf %405, %288 : vector<2x1xf32>
    %407 = arith.mulf %389, %295 : vector<2x32xf32>
    %408 = vector.broadcast %406 : vector<2x1xf32> to vector<2x32xf32>
    %409 = arith.mulf %408, %407 : vector<2x32xf32>
    %410 = arith.addf %404, %409 : vector<2x32xf32>
    %411 = math.tanh %410 : vector<2x32xf32>
    %412 = arith.mulf %391, %411 : vector<2x32xf32>
    %cst_112 = arith.constant 1.000000e+00 : f32
    %413 = vector.broadcast %cst_112 : f32 to vector<2x1xf32>
    %414 = arith.subf %413, %332 : vector<2x1xf32>
    %415 = vector.broadcast %414 : vector<2x1xf32> to vector<2x32xf32>
    %416 = arith.mulf %415, %358 : vector<2x32xf32>
    %417 = vector.broadcast %403 : vector<2x1xf32> to vector<2x32xf32>
    %418 = arith.mulf %417, %412 : vector<2x32xf32>
    %419 = tpu.concatenate %416, %418 in 1 : vector<2x32xf32>, vector<2x32xf32> -> vector<2x64xf32>
    %cst_113 = arith.constant dense<0.000000e+00> : vector<2x128xf32>
    %420 = tpu.matmul %419, %2, %cst_113 {dimension_numbers = #tpu.dot_dimension_numbers<[1], [0], [0], [1], [0, 0, 1, 1], [], []>} : vector<2x64xf32>, vector<64x128xf32>, vector<2x128xf32> -> vector<2x128xf32>
    %421 = arith.addf %420, %6 : vector<2x128xf32>
    %422 = vector.broadcast %3 : vector<1x64xf32> to vector<2x64xf32>
    %423 = arith.mulf %419, %422 : vector<2x64xf32>
    %cst_114 = arith.constant dense<0.000000e+00> : vector<2xf32>
    %424 = vector.multi_reduction <add>, %423, %cst_114 [1] : vector<2x64xf32> to vector<2xf32>
    %425 = vector.shape_cast %424 : vector<2xf32> to vector<2x1xf32>
    %426 = arith.addf %425, %9 : vector<2x1xf32>
    %427 = vector.extract_strided_slice %421 {offsets = [0, 0], sizes = [2, 96], strides = [1, 1]} : vector<2x128xf32> to vector<2x96xf32>
    %428 = arith.negf %427 : vector<2x96xf32>
    %429 = math.exp %428 : vector<2x96xf32>
    %cst_115 = arith.constant 1.000000e+00 : f32
    %430 = vector.broadcast %cst_115 : f32 to vector<2x96xf32>
    %431 = arith.addf %430, %429 : vector<2x96xf32>
    %432 = arith.divf %430, %431 : vector<2x96xf32>
    %433 = vector.extract_strided_slice %432 {offsets = [0, 0], sizes = [2, 32], strides = [1, 1]} : vector<2x96xf32> to vector<2x32xf32>
    %434 = vector.extract_strided_slice %432 {offsets = [0, 32], sizes = [2, 32], strides = [1, 1]} : vector<2x96xf32> to vector<2x32xf32>
    %435 = vector.extract_strided_slice %432 {offsets = [0, 64], sizes = [2, 32], strides = [1, 1]} : vector<2x96xf32> to vector<2x32xf32>
    %436 = vector.extract_strided_slice %421 {offsets = [0, 96], sizes = [2, 32], strides = [1, 1]} : vector<2x128xf32> to vector<2x32xf32>
    %437 = math.tanh %436 : vector<2x32xf32>
    %cst_116 = arith.constant 1.000000e+00 : f32
    %438 = vector.broadcast %cst_116 : f32 to vector<2x1xf32>
    %439 = arith.mulf %438, %426 : vector<2x1xf32>
    %cst_117 = arith.constant 1.000000e+00 : f32
    %440 = vector.broadcast %cst_117 : f32 to vector<2x1xf32>
    %441 = arith.addf %439, %440 : vector<2x1xf32>
    %cst_118 = arith.constant 5.000000e-01 : f32
    %442 = vector.broadcast %cst_118 : f32 to vector<2x1xf32>
    %443 = arith.mulf %441, %442 : vector<2x1xf32>
    %cst_119 = arith.constant 0.000000e+00 : f32
    %cst_120 = arith.constant 1.000000e+00 : f32
    %444 = vector.broadcast %cst_119 : f32 to vector<2x1xf32>
    %445 = arith.maximumf %444, %443 : vector<2x1xf32>
    %446 = vector.broadcast %cst_120 : f32 to vector<2x1xf32>
    %447 = arith.minimumf %446, %445 : vector<2x1xf32>
    %448 = arith.mulf %434, %437 : vector<2x32xf32>
    %cst_121 = arith.constant 1.000000e+00 : f32
    %449 = vector.broadcast %cst_121 : f32 to vector<2x1xf32>
    %450 = arith.subf %449, %332 : vector<2x1xf32>
    %451 = arith.mulf %450, %403 : vector<2x1xf32>
    %cst_122 = arith.constant 1.000000e+00 : f32
    %452 = vector.broadcast %cst_122 : f32 to vector<2x1xf32>
    %453 = arith.subf %452, %332 : vector<2x1xf32>
    %454 = arith.subf %453, %451 : vector<2x1xf32>
    %455 = vector.broadcast %332 : vector<2x1xf32> to vector<2x32xf32>
    %456 = arith.mulf %455, %448 : vector<2x32xf32>
    %457 = vector.broadcast %454 : vector<2x1xf32> to vector<2x32xf32>
    %458 = arith.mulf %457, %349 : vector<2x32xf32>
    %459 = arith.addf %456, %458 : vector<2x32xf32>
    %460 = arith.mulf %433, %349 : vector<2x32xf32>
    %461 = arith.addf %460, %448 : vector<2x32xf32>
    %462 = vector.broadcast %451 : vector<2x1xf32> to vector<2x32xf32>
    %463 = arith.mulf %462, %461 : vector<2x32xf32>
    %464 = arith.addf %459, %463 : vector<2x32xf32>
    %cst_123 = arith.constant 1.000000e+00 : f32
    %465 = vector.broadcast %cst_123 : f32 to vector<2x1xf32>
    %466 = arith.subf %465, %454 : vector<2x1xf32>
    %467 = vector.broadcast %466 : vector<2x1xf32> to vector<2x32xf32>
    %468 = arith.mulf %467, %435 : vector<2x32xf32>
    %469 = math.tanh %464 : vector<2x32xf32>
    %470 = arith.mulf %468, %469 : vector<2x32xf32>
    %471 = vector.broadcast %454 : vector<2x1xf32> to vector<2x32xf32>
    %472 = arith.mulf %471, %358 : vector<2x32xf32>
    %473 = arith.addf %470, %472 : vector<2x32xf32>
    %474 = vector.broadcast %447 : vector<2x1xf32> to vector<2x32xf32>
    %475 = arith.mulf %473, %474 : vector<2x32xf32>
    %476 = tpu.concatenate %130, %245, %360, %475 in 1 : vector<2x32xf32>, vector<2x32xf32>, vector<2x32xf32>, vector<2x32xf32> -> vector<2x128xf32>
    %477 = arith.index_cast %c0_i32 : i32 to index
    %c0_124 = arith.constant 0 : index
    %c0_125 = arith.constant 0 : index
    %478 = vector.load %arg8[%477, %c0_124, %c0_125] : memref<2x2x128xf32, #tpu.memory_space<vmem>>, vector<1x2x128xf32>
    %479 = vector.shape_cast %478 : vector<1x2x128xf32> to vector<2x128xf32>
    %480 = vector.shape_cast %476 : vector<2x128xf32> to vector<1x2x128xf32>
    tpu.vector_store %arg8[%477, %c0_124, %c0_125], %480 {strides = array<i32>} : memref<2x2x128xf32, #tpu.memory_space<vmem>>, vector<1x2x128xf32>,
    %c1_i32_126 = arith.constant 1 : i32
    %c4_i32_127 = arith.constant 4 : i32
    %481 = arith.muli %c1_i32_126, %c4_i32_127 : i32
    %c0_i32_128 = arith.constant 0 : i32
    %482 = arith.addi %481, %c0_i32_128 : i32
    %cst_129 = arith.constant 1.000000e+00 : f32
    %483 = vector.broadcast %cst_129 : f32 to vector<2x1xf32>
    %484 = arith.subf %483, %403 : vector<2x1xf32>
    %485 = vector.broadcast %484 : vector<2x1xf32> to vector<2x32xf32>
    %486 = arith.mulf %485, %412 : vector<2x32xf32>
    %487 = vector.broadcast %403 : vector<2x1xf32> to vector<2x32xf32>
    %488 = arith.mulf %487, %473 : vector<2x32xf32>
    %489 = tpu.concatenate %486, %488 in 1 : vector<2x32xf32>, vector<2x32xf32> -> vector<2x64xf32>
    %cst_130 = arith.constant dense<0.000000e+00> : vector<2x128xf32>
    %490 = tpu.matmul %489, %0, %cst_130 {dimension_numbers = #tpu.dot_dimension_numbers<[1], [0], [0], [1], [0, 0, 1, 1], [], []>} : vector<2x64xf32>, vector<64x128xf32>, vector<2x128xf32> -> vector<2x128xf32>
    %491 = arith.index_cast %482 : i32 to index
    %c0_131 = arith.constant 0 : index
    %c0_132 = arith.constant 0 : index
    %492 = vector.load %arg0[%491, %c0_131, %c0_132] : memref<8x2x128xf32, #tpu.memory_space<vmem>>, vector<1x2x128xf32>
    %493 = vector.shape_cast %492 : vector<1x2x128xf32> to vector<2x128xf32>
    %494 = arith.addf %490, %493 : vector<2x128xf32>
    %495 = vector.broadcast %1 : vector<1x64xf32> to vector<2x64xf32>
    %496 = arith.mulf %489, %495 : vector<2x64xf32>
    %cst_133 = arith.constant dense<0.000000e+00> : vector<2xf32>
    %497 = vector.multi_reduction <add>, %496, %cst_133 [1] : vector<2x64xf32> to vector<2xf32>
    %498 = vector.shape_cast %497 : vector<2xf32> to vector<2x1xf32>
    %499 = arith.index_cast %482 : i32 to index
    %c0_134 = arith.constant 0 : index
    %c0_135 = arith.constant 0 : index
    %500 = vector.load %arg1[%499, %c0_134, %c0_135] : memref<8x2x1xf32, #tpu.memory_space<vmem>>, vector<1x2x1xf32>
    %501 = vector.shape_cast %500 : vector<1x2x1xf32> to vector<2x1xf32>
    %502 = arith.addf %498, %501 : vector<2x1xf32>
    %503 = vector.extract_strided_slice %494 {offsets = [0, 0], sizes = [2, 96], strides = [1, 1]} : vector<2x128xf32> to vector<2x96xf32>
    %504 = arith.negf %503 : vector<2x96xf32>
    %505 = math.exp %504 : vector<2x96xf32>
    %cst_136 = arith.constant 1.000000e+00 : f32
    %506 = vector.broadcast %cst_136 : f32 to vector<2x96xf32>
    %507 = arith.addf %506, %505 : vector<2x96xf32>
    %508 = arith.divf %506, %507 : vector<2x96xf32>
    %509 = vector.extract_strided_slice %508 {offsets = [0, 0], sizes = [2, 32], strides = [1, 1]} : vector<2x96xf32> to vector<2x32xf32>
    %510 = vector.extract_strided_slice %508 {offsets = [0, 32], sizes = [2, 32], strides = [1, 1]} : vector<2x96xf32> to vector<2x32xf32>
    %511 = vector.extract_strided_slice %508 {offsets = [0, 64], sizes = [2, 32], strides = [1, 1]} : vector<2x96xf32> to vector<2x32xf32>
    %512 = vector.extract_strided_slice %494 {offsets = [0, 96], sizes = [2, 32], strides = [1, 1]} : vector<2x128xf32> to vector<2x32xf32>
    %513 = math.tanh %512 : vector<2x32xf32>
    %cst_137 = arith.constant 1.000000e+00 : f32
    %514 = vector.broadcast %cst_137 : f32 to vector<2x1xf32>
    %515 = arith.mulf %514, %502 : vector<2x1xf32>
    %cst_138 = arith.constant 1.000000e+00 : f32
    %516 = vector.broadcast %cst_138 : f32 to vector<2x1xf32>
    %517 = arith.addf %515, %516 : vector<2x1xf32>
    %cst_139 = arith.constant 5.000000e-01 : f32
    %518 = vector.broadcast %cst_139 : f32 to vector<2x1xf32>
    %519 = arith.mulf %517, %518 : vector<2x1xf32>
    %cst_140 = arith.constant 0.000000e+00 : f32
    %cst_141 = arith.constant 1.000000e+00 : f32
    %520 = vector.broadcast %cst_140 : f32 to vector<2x1xf32>
    %521 = arith.maximumf %520, %519 : vector<2x1xf32>
    %522 = vector.broadcast %cst_141 : f32 to vector<2x1xf32>
    %523 = arith.minimumf %522, %521 : vector<2x1xf32>
    %524 = arith.mulf %510, %513 : vector<2x32xf32>
    %cst_142 = arith.constant 1.000000e+00 : f32
    %525 = vector.broadcast %cst_142 : f32 to vector<2x1xf32>
    %526 = arith.subf %525, %403 : vector<2x1xf32>
    %527 = arith.mulf %509, %410 : vector<2x32xf32>
    %528 = vector.broadcast %526 : vector<2x1xf32> to vector<2x32xf32>
    %529 = arith.mulf %528, %527 : vector<2x32xf32>
    %530 = arith.addf %524, %529 : vector<2x32xf32>
    %531 = math.tanh %530 : vector<2x32xf32>
    %532 = arith.mulf %511, %531 : vector<2x32xf32>
    %cst_143 = arith.constant 1.000000e+00 : f32
    %533 = vector.broadcast %cst_143 : f32 to vector<2x1xf32>
    %534 = arith.subf %533, %447 : vector<2x1xf32>
    %535 = vector.broadcast %534 : vector<2x1xf32> to vector<2x32xf32>
    %536 = arith.mulf %535, %473 : vector<2x32xf32>
    %537 = vector.broadcast %523 : vector<2x1xf32> to vector<2x32xf32>
    %538 = arith.mulf %537, %532 : vector<2x32xf32>
    %539 = tpu.concatenate %536, %538 in 1 : vector<2x32xf32>, vector<2x32xf32> -> vector<2x64xf32>
    %cst_144 = arith.constant dense<0.000000e+00> : vector<2x128xf32>
    %540 = tpu.matmul %539, %2, %cst_144 {dimension_numbers = #tpu.dot_dimension_numbers<[1], [0], [0], [1], [0, 0, 1, 1], [], []>} : vector<2x64xf32>, vector<64x128xf32>, vector<2x128xf32> -> vector<2x128xf32>
    %541 = arith.addf %540, %6 : vector<2x128xf32>
    %542 = vector.broadcast %3 : vector<1x64xf32> to vector<2x64xf32>
    %543 = arith.mulf %539, %542 : vector<2x64xf32>
    %cst_145 = arith.constant dense<0.000000e+00> : vector<2xf32>
    %544 = vector.multi_reduction <add>, %543, %cst_145 [1] : vector<2x64xf32> to vector<2xf32>
    %545 = vector.shape_cast %544 : vector<2xf32> to vector<2x1xf32>
    %546 = arith.addf %545, %9 : vector<2x1xf32>
    %547 = vector.extract_strided_slice %541 {offsets = [0, 0], sizes = [2, 96], strides = [1, 1]} : vector<2x128xf32> to vector<2x96xf32>
    %548 = arith.negf %547 : vector<2x96xf32>
    %549 = math.exp %548 : vector<2x96xf32>
    %cst_146 = arith.constant 1.000000e+00 : f32
    %550 = vector.broadcast %cst_146 : f32 to vector<2x96xf32>
    %551 = arith.addf %550, %549 : vector<2x96xf32>
    %552 = arith.divf %550, %551 : vector<2x96xf32>
    %553 = vector.extract_strided_slice %552 {offsets = [0, 0], sizes = [2, 32], strides = [1, 1]} : vector<2x96xf32> to vector<2x32xf32>
    %554 = vector.extract_strided_slice %552 {offsets = [0, 32], sizes = [2, 32], strides = [1, 1]} : vector<2x96xf32> to vector<2x32xf32>
    %555 = vector.extract_strided_slice %552 {offsets = [0, 64], sizes = [2, 32], strides = [1, 1]} : vector<2x96xf32> to vector<2x32xf32>
    %556 = vector.extract_strided_slice %541 {offsets = [0, 96], sizes = [2, 32], strides = [1, 1]} : vector<2x128xf32> to vector<2x32xf32>
    %557 = math.tanh %556 : vector<2x32xf32>
    %cst_147 = arith.constant 1.000000e+00 : f32
    %558 = vector.broadcast %cst_147 : f32 to vector<2x1xf32>
    %559 = arith.mulf %558, %546 : vector<2x1xf32>
    %cst_148 = arith.constant 1.000000e+00 : f32
    %560 = vector.broadcast %cst_148 : f32 to vector<2x1xf32>
    %561 = arith.addf %559, %560 : vector<2x1xf32>
    %cst_149 = arith.constant 5.000000e-01 : f32
    %562 = vector.broadcast %cst_149 : f32 to vector<2x1xf32>
    %563 = arith.mulf %561, %562 : vector<2x1xf32>
    %cst_150 = arith.constant 0.000000e+00 : f32
    %cst_151 = arith.constant 1.000000e+00 : f32
    %564 = vector.broadcast %cst_150 : f32 to vector<2x1xf32>
    %565 = arith.maximumf %564, %563 : vector<2x1xf32>
    %566 = vector.broadcast %cst_151 : f32 to vector<2x1xf32>
    %567 = arith.minimumf %566, %565 : vector<2x1xf32>
    %568 = arith.mulf %554, %557 : vector<2x32xf32>
    %cst_152 = arith.constant 1.000000e+00 : f32
    %569 = vector.broadcast %cst_152 : f32 to vector<2x1xf32>
    %570 = arith.subf %569, %447 : vector<2x1xf32>
    %571 = arith.mulf %570, %523 : vector<2x1xf32>
    %cst_153 = arith.constant 1.000000e+00 : f32
    %572 = vector.broadcast %cst_153 : f32 to vector<2x1xf32>
    %573 = arith.subf %572, %447 : vector<2x1xf32>
    %574 = arith.subf %573, %571 : vector<2x1xf32>
    %575 = vector.broadcast %447 : vector<2x1xf32> to vector<2x32xf32>
    %576 = arith.mulf %575, %568 : vector<2x32xf32>
    %577 = vector.broadcast %574 : vector<2x1xf32> to vector<2x32xf32>
    %578 = arith.mulf %577, %464 : vector<2x32xf32>
    %579 = arith.addf %576, %578 : vector<2x32xf32>
    %580 = arith.mulf %553, %464 : vector<2x32xf32>
    %581 = arith.addf %580, %568 : vector<2x32xf32>
    %582 = vector.broadcast %571 : vector<2x1xf32> to vector<2x32xf32>
    %583 = arith.mulf %582, %581 : vector<2x32xf32>
    %584 = arith.addf %579, %583 : vector<2x32xf32>
    %cst_154 = arith.constant 1.000000e+00 : f32
    %585 = vector.broadcast %cst_154 : f32 to vector<2x1xf32>
    %586 = arith.subf %585, %574 : vector<2x1xf32>
    %587 = vector.broadcast %586 : vector<2x1xf32> to vector<2x32xf32>
    %588 = arith.mulf %587, %555 : vector<2x32xf32>
    %589 = math.tanh %584 : vector<2x32xf32>
    %590 = arith.mulf %588, %589 : vector<2x32xf32>
    %591 = vector.broadcast %574 : vector<2x1xf32> to vector<2x32xf32>
    %592 = arith.mulf %591, %473 : vector<2x32xf32>
    %593 = arith.addf %590, %592 : vector<2x32xf32>
    %594 = vector.broadcast %567 : vector<2x1xf32> to vector<2x32xf32>
    %595 = arith.mulf %593, %594 : vector<2x32xf32>
    %c4_i32_155 = arith.constant 4 : i32
    %596 = arith.muli %c1_i32_126, %c4_i32_155 : i32
    %c1_i32_156 = arith.constant 1 : i32
    %597 = arith.addi %596, %c1_i32_156 : i32
    %cst_157 = arith.constant 1.000000e+00 : f32
    %598 = vector.broadcast %cst_157 : f32 to vector<2x1xf32>
    %599 = arith.subf %598, %523 : vector<2x1xf32>
    %600 = vector.broadcast %599 : vector<2x1xf32> to vector<2x32xf32>
    %601 = arith.mulf %600, %532 : vector<2x32xf32>
    %602 = vector.broadcast %523 : vector<2x1xf32> to vector<2x32xf32>
    %603 = arith.mulf %602, %593 : vector<2x32xf32>
    %604 = tpu.concatenate %601, %603 in 1 : vector<2x32xf32>, vector<2x32xf32> -> vector<2x64xf32>
    %cst_158 = arith.constant dense<0.000000e+00> : vector<2x128xf32>
    %605 = tpu.matmul %604, %0, %cst_158 {dimension_numbers = #tpu.dot_dimension_numbers<[1], [0], [0], [1], [0, 0, 1, 1], [], []>} : vector<2x64xf32>, vector<64x128xf32>, vector<2x128xf32> -> vector<2x128xf32>
    %606 = arith.index_cast %597 : i32 to index
    %c0_159 = arith.constant 0 : index
    %c0_160 = arith.constant 0 : index
    %607 = vector.load %arg0[%606, %c0_159, %c0_160] : memref<8x2x128xf32, #tpu.memory_space<vmem>>, vector<1x2x128xf32>
    %608 = vector.shape_cast %607 : vector<1x2x128xf32> to vector<2x128xf32>
    %609 = arith.addf %605, %608 : vector<2x128xf32>
    %610 = vector.broadcast %1 : vector<1x64xf32> to vector<2x64xf32>
    %611 = arith.mulf %604, %610 : vector<2x64xf32>
    %cst_161 = arith.constant dense<0.000000e+00> : vector<2xf32>
    %612 = vector.multi_reduction <add>, %611, %cst_161 [1] : vector<2x64xf32> to vector<2xf32>
    %613 = vector.shape_cast %612 : vector<2xf32> to vector<2x1xf32>
    %614 = arith.index_cast %597 : i32 to index
    %c0_162 = arith.constant 0 : index
    %c0_163 = arith.constant 0 : index
    %615 = vector.load %arg1[%614, %c0_162, %c0_163] : memref<8x2x1xf32, #tpu.memory_space<vmem>>, vector<1x2x1xf32>
    %616 = vector.shape_cast %615 : vector<1x2x1xf32> to vector<2x1xf32>
    %617 = arith.addf %613, %616 : vector<2x1xf32>
    %618 = vector.extract_strided_slice %609 {offsets = [0, 0], sizes = [2, 96], strides = [1, 1]} : vector<2x128xf32> to vector<2x96xf32>
    %619 = arith.negf %618 : vector<2x96xf32>
    %620 = math.exp %619 : vector<2x96xf32>
    %cst_164 = arith.constant 1.000000e+00 : f32
    %621 = vector.broadcast %cst_164 : f32 to vector<2x96xf32>
    %622 = arith.addf %621, %620 : vector<2x96xf32>
    %623 = arith.divf %621, %622 : vector<2x96xf32>
    %624 = vector.extract_strided_slice %623 {offsets = [0, 0], sizes = [2, 32], strides = [1, 1]} : vector<2x96xf32> to vector<2x32xf32>
    %625 = vector.extract_strided_slice %623 {offsets = [0, 32], sizes = [2, 32], strides = [1, 1]} : vector<2x96xf32> to vector<2x32xf32>
    %626 = vector.extract_strided_slice %623 {offsets = [0, 64], sizes = [2, 32], strides = [1, 1]} : vector<2x96xf32> to vector<2x32xf32>
    %627 = vector.extract_strided_slice %609 {offsets = [0, 96], sizes = [2, 32], strides = [1, 1]} : vector<2x128xf32> to vector<2x32xf32>
    %628 = math.tanh %627 : vector<2x32xf32>
    %cst_165 = arith.constant 1.000000e+00 : f32
    %629 = vector.broadcast %cst_165 : f32 to vector<2x1xf32>
    %630 = arith.mulf %629, %617 : vector<2x1xf32>
    %cst_166 = arith.constant 1.000000e+00 : f32
    %631 = vector.broadcast %cst_166 : f32 to vector<2x1xf32>
    %632 = arith.addf %630, %631 : vector<2x1xf32>
    %cst_167 = arith.constant 5.000000e-01 : f32
    %633 = vector.broadcast %cst_167 : f32 to vector<2x1xf32>
    %634 = arith.mulf %632, %633 : vector<2x1xf32>
    %cst_168 = arith.constant 0.000000e+00 : f32
    %cst_169 = arith.constant 1.000000e+00 : f32
    %635 = vector.broadcast %cst_168 : f32 to vector<2x1xf32>
    %636 = arith.maximumf %635, %634 : vector<2x1xf32>
    %637 = vector.broadcast %cst_169 : f32 to vector<2x1xf32>
    %638 = arith.minimumf %637, %636 : vector<2x1xf32>
    %639 = arith.mulf %625, %628 : vector<2x32xf32>
    %cst_170 = arith.constant 1.000000e+00 : f32
    %640 = vector.broadcast %cst_170 : f32 to vector<2x1xf32>
    %641 = arith.subf %640, %523 : vector<2x1xf32>
    %642 = arith.mulf %624, %530 : vector<2x32xf32>
    %643 = vector.broadcast %641 : vector<2x1xf32> to vector<2x32xf32>
    %644 = arith.mulf %643, %642 : vector<2x32xf32>
    %645 = arith.addf %639, %644 : vector<2x32xf32>
    %646 = math.tanh %645 : vector<2x32xf32>
    %647 = arith.mulf %626, %646 : vector<2x32xf32>
    %cst_171 = arith.constant 1.000000e+00 : f32
    %648 = vector.broadcast %cst_171 : f32 to vector<2x1xf32>
    %649 = arith.subf %648, %567 : vector<2x1xf32>
    %650 = vector.broadcast %649 : vector<2x1xf32> to vector<2x32xf32>
    %651 = arith.mulf %650, %593 : vector<2x32xf32>
    %652 = vector.broadcast %638 : vector<2x1xf32> to vector<2x32xf32>
    %653 = arith.mulf %652, %647 : vector<2x32xf32>
    %654 = tpu.concatenate %651, %653 in 1 : vector<2x32xf32>, vector<2x32xf32> -> vector<2x64xf32>
    %cst_172 = arith.constant dense<0.000000e+00> : vector<2x128xf32>
    %655 = tpu.matmul %654, %2, %cst_172 {dimension_numbers = #tpu.dot_dimension_numbers<[1], [0], [0], [1], [0, 0, 1, 1], [], []>} : vector<2x64xf32>, vector<64x128xf32>, vector<2x128xf32> -> vector<2x128xf32>
    %656 = arith.addf %655, %6 : vector<2x128xf32>
    %657 = vector.broadcast %3 : vector<1x64xf32> to vector<2x64xf32>
    %658 = arith.mulf %654, %657 : vector<2x64xf32>
    %cst_173 = arith.constant dense<0.000000e+00> : vector<2xf32>
    %659 = vector.multi_reduction <add>, %658, %cst_173 [1] : vector<2x64xf32> to vector<2xf32>
    %660 = vector.shape_cast %659 : vector<2xf32> to vector<2x1xf32>
    %661 = arith.addf %660, %9 : vector<2x1xf32>
    %662 = vector.extract_strided_slice %656 {offsets = [0, 0], sizes = [2, 96], strides = [1, 1]} : vector<2x128xf32> to vector<2x96xf32>
    %663 = arith.negf %662 : vector<2x96xf32>
    %664 = math.exp %663 : vector<2x96xf32>
    %cst_174 = arith.constant 1.000000e+00 : f32
    %665 = vector.broadcast %cst_174 : f32 to vector<2x96xf32>
    %666 = arith.addf %665, %664 : vector<2x96xf32>
    %667 = arith.divf %665, %666 : vector<2x96xf32>
    %668 = vector.extract_strided_slice %667 {offsets = [0, 0], sizes = [2, 32], strides = [1, 1]} : vector<2x96xf32> to vector<2x32xf32>
    %669 = vector.extract_strided_slice %667 {offsets = [0, 32], sizes = [2, 32], strides = [1, 1]} : vector<2x96xf32> to vector<2x32xf32>
    %670 = vector.extract_strided_slice %667 {offsets = [0, 64], sizes = [2, 32], strides = [1, 1]} : vector<2x96xf32> to vector<2x32xf32>
    %671 = vector.extract_strided_slice %656 {offsets = [0, 96], sizes = [2, 32], strides = [1, 1]} : vector<2x128xf32> to vector<2x32xf32>
    %672 = math.tanh %671 : vector<2x32xf32>
    %cst_175 = arith.constant 1.000000e+00 : f32
    %673 = vector.broadcast %cst_175 : f32 to vector<2x1xf32>
    %674 = arith.mulf %673, %661 : vector<2x1xf32>
    %cst_176 = arith.constant 1.000000e+00 : f32
    %675 = vector.broadcast %cst_176 : f32 to vector<2x1xf32>
    %676 = arith.addf %674, %675 : vector<2x1xf32>
    %cst_177 = arith.constant 5.000000e-01 : f32
    %677 = vector.broadcast %cst_177 : f32 to vector<2x1xf32>
    %678 = arith.mulf %676, %677 : vector<2x1xf32>
    %cst_178 = arith.constant 0.000000e+00 : f32
    %cst_179 = arith.constant 1.000000e+00 : f32
    %679 = vector.broadcast %cst_178 : f32 to vector<2x1xf32>
    %680 = arith.maximumf %679, %678 : vector<2x1xf32>
    %681 = vector.broadcast %cst_179 : f32 to vector<2x1xf32>
    %682 = arith.minimumf %681, %680 : vector<2x1xf32>
    %683 = arith.mulf %669, %672 : vector<2x32xf32>
    %cst_180 = arith.constant 1.000000e+00 : f32
    %684 = vector.broadcast %cst_180 : f32 to vector<2x1xf32>
    %685 = arith.subf %684, %567 : vector<2x1xf32>
    %686 = arith.mulf %685, %638 : vector<2x1xf32>
    %cst_181 = arith.constant 1.000000e+00 : f32
    %687 = vector.broadcast %cst_181 : f32 to vector<2x1xf32>
    %688 = arith.subf %687, %567 : vector<2x1xf32>
    %689 = arith.subf %688, %686 : vector<2x1xf32>
    %690 = vector.broadcast %567 : vector<2x1xf32> to vector<2x32xf32>
    %691 = arith.mulf %690, %683 : vector<2x32xf32>
    %692 = vector.broadcast %689 : vector<2x1xf32> to vector<2x32xf32>
    %693 = arith.mulf %692, %584 : vector<2x32xf32>
    %694 = arith.addf %691, %693 : vector<2x32xf32>
    %695 = arith.mulf %668, %584 : vector<2x32xf32>
    %696 = arith.addf %695, %683 : vector<2x32xf32>
    %697 = vector.broadcast %686 : vector<2x1xf32> to vector<2x32xf32>
    %698 = arith.mulf %697, %696 : vector<2x32xf32>
    %699 = arith.addf %694, %698 : vector<2x32xf32>
    %cst_182 = arith.constant 1.000000e+00 : f32
    %700 = vector.broadcast %cst_182 : f32 to vector<2x1xf32>
    %701 = arith.subf %700, %689 : vector<2x1xf32>
    %702 = vector.broadcast %701 : vector<2x1xf32> to vector<2x32xf32>
    %703 = arith.mulf %702, %670 : vector<2x32xf32>
    %704 = math.tanh %699 : vector<2x32xf32>
    %705 = arith.mulf %703, %704 : vector<2x32xf32>
    %706 = vector.broadcast %689 : vector<2x1xf32> to vector<2x32xf32>
    %707 = arith.mulf %706, %593 : vector<2x32xf32>
    %708 = arith.addf %705, %707 : vector<2x32xf32>
    %709 = vector.broadcast %682 : vector<2x1xf32> to vector<2x32xf32>
    %710 = arith.mulf %708, %709 : vector<2x32xf32>
    %c4_i32_183 = arith.constant 4 : i32
    %711 = arith.muli %c1_i32_126, %c4_i32_183 : i32
    %c2_i32_184 = arith.constant 2 : i32
    %712 = arith.addi %711, %c2_i32_184 : i32
    %cst_185 = arith.constant 1.000000e+00 : f32
    %713 = vector.broadcast %cst_185 : f32 to vector<2x1xf32>
    %714 = arith.subf %713, %638 : vector<2x1xf32>
    %715 = vector.broadcast %714 : vector<2x1xf32> to vector<2x32xf32>
    %716 = arith.mulf %715, %647 : vector<2x32xf32>
    %717 = vector.broadcast %638 : vector<2x1xf32> to vector<2x32xf32>
    %718 = arith.mulf %717, %708 : vector<2x32xf32>
    %719 = tpu.concatenate %716, %718 in 1 : vector<2x32xf32>, vector<2x32xf32> -> vector<2x64xf32>
    %cst_186 = arith.constant dense<0.000000e+00> : vector<2x128xf32>
    %720 = tpu.matmul %719, %0, %cst_186 {dimension_numbers = #tpu.dot_dimension_numbers<[1], [0], [0], [1], [0, 0, 1, 1], [], []>} : vector<2x64xf32>, vector<64x128xf32>, vector<2x128xf32> -> vector<2x128xf32>
    %721 = arith.index_cast %712 : i32 to index
    %c0_187 = arith.constant 0 : index
    %c0_188 = arith.constant 0 : index
    %722 = vector.load %arg0[%721, %c0_187, %c0_188] : memref<8x2x128xf32, #tpu.memory_space<vmem>>, vector<1x2x128xf32>
    %723 = vector.shape_cast %722 : vector<1x2x128xf32> to vector<2x128xf32>
    %724 = arith.addf %720, %723 : vector<2x128xf32>
    %725 = vector.broadcast %1 : vector<1x64xf32> to vector<2x64xf32>
    %726 = arith.mulf %719, %725 : vector<2x64xf32>
    %cst_189 = arith.constant dense<0.000000e+00> : vector<2xf32>
    %727 = vector.multi_reduction <add>, %726, %cst_189 [1] : vector<2x64xf32> to vector<2xf32>
    %728 = vector.shape_cast %727 : vector<2xf32> to vector<2x1xf32>
    %729 = arith.index_cast %712 : i32 to index
    %c0_190 = arith.constant 0 : index
    %c0_191 = arith.constant 0 : index
    %730 = vector.load %arg1[%729, %c0_190, %c0_191] : memref<8x2x1xf32, #tpu.memory_space<vmem>>, vector<1x2x1xf32>
    %731 = vector.shape_cast %730 : vector<1x2x1xf32> to vector<2x1xf32>
    %732 = arith.addf %728, %731 : vector<2x1xf32>
    %733 = vector.extract_strided_slice %724 {offsets = [0, 0], sizes = [2, 96], strides = [1, 1]} : vector<2x128xf32> to vector<2x96xf32>
    %734 = arith.negf %733 : vector<2x96xf32>
    %735 = math.exp %734 : vector<2x96xf32>
    %cst_192 = arith.constant 1.000000e+00 : f32
    %736 = vector.broadcast %cst_192 : f32 to vector<2x96xf32>
    %737 = arith.addf %736, %735 : vector<2x96xf32>
    %738 = arith.divf %736, %737 : vector<2x96xf32>
    %739 = vector.extract_strided_slice %738 {offsets = [0, 0], sizes = [2, 32], strides = [1, 1]} : vector<2x96xf32> to vector<2x32xf32>
    %740 = vector.extract_strided_slice %738 {offsets = [0, 32], sizes = [2, 32], strides = [1, 1]} : vector<2x96xf32> to vector<2x32xf32>
    %741 = vector.extract_strided_slice %738 {offsets = [0, 64], sizes = [2, 32], strides = [1, 1]} : vector<2x96xf32> to vector<2x32xf32>
    %742 = vector.extract_strided_slice %724 {offsets = [0, 96], sizes = [2, 32], strides = [1, 1]} : vector<2x128xf32> to vector<2x32xf32>
    %743 = math.tanh %742 : vector<2x32xf32>
    %cst_193 = arith.constant 1.000000e+00 : f32
    %744 = vector.broadcast %cst_193 : f32 to vector<2x1xf32>
    %745 = arith.mulf %744, %732 : vector<2x1xf32>
    %cst_194 = arith.constant 1.000000e+00 : f32
    %746 = vector.broadcast %cst_194 : f32 to vector<2x1xf32>
    %747 = arith.addf %745, %746 : vector<2x1xf32>
    %cst_195 = arith.constant 5.000000e-01 : f32
    %748 = vector.broadcast %cst_195 : f32 to vector<2x1xf32>
    %749 = arith.mulf %747, %748 : vector<2x1xf32>
    %cst_196 = arith.constant 0.000000e+00 : f32
    %cst_197 = arith.constant 1.000000e+00 : f32
    %750 = vector.broadcast %cst_196 : f32 to vector<2x1xf32>
    %751 = arith.maximumf %750, %749 : vector<2x1xf32>
    %752 = vector.broadcast %cst_197 : f32 to vector<2x1xf32>
    %753 = arith.minimumf %752, %751 : vector<2x1xf32>
    %754 = arith.mulf %740, %743 : vector<2x32xf32>
    %cst_198 = arith.constant 1.000000e+00 : f32
    %755 = vector.broadcast %cst_198 : f32 to vector<2x1xf32>
    %756 = arith.subf %755, %638 : vector<2x1xf32>
    %757 = arith.mulf %739, %645 : vector<2x32xf32>
    %758 = vector.broadcast %756 : vector<2x1xf32> to vector<2x32xf32>
    %759 = arith.mulf %758, %757 : vector<2x32xf32>
    %760 = arith.addf %754, %759 : vector<2x32xf32>
    %761 = math.tanh %760 : vector<2x32xf32>
    %762 = arith.mulf %741, %761 : vector<2x32xf32>
    %cst_199 = arith.constant 1.000000e+00 : f32
    %763 = vector.broadcast %cst_199 : f32 to vector<2x1xf32>
    %764 = arith.subf %763, %682 : vector<2x1xf32>
    %765 = vector.broadcast %764 : vector<2x1xf32> to vector<2x32xf32>
    %766 = arith.mulf %765, %708 : vector<2x32xf32>
    %767 = vector.broadcast %753 : vector<2x1xf32> to vector<2x32xf32>
    %768 = arith.mulf %767, %762 : vector<2x32xf32>
    %769 = tpu.concatenate %766, %768 in 1 : vector<2x32xf32>, vector<2x32xf32> -> vector<2x64xf32>
    %cst_200 = arith.constant dense<0.000000e+00> : vector<2x128xf32>
    %770 = tpu.matmul %769, %2, %cst_200 {dimension_numbers = #tpu.dot_dimension_numbers<[1], [0], [0], [1], [0, 0, 1, 1], [], []>} : vector<2x64xf32>, vector<64x128xf32>, vector<2x128xf32> -> vector<2x128xf32>
    %771 = arith.addf %770, %6 : vector<2x128xf32>
    %772 = vector.broadcast %3 : vector<1x64xf32> to vector<2x64xf32>
    %773 = arith.mulf %769, %772 : vector<2x64xf32>
    %cst_201 = arith.constant dense<0.000000e+00> : vector<2xf32>
    %774 = vector.multi_reduction <add>, %773, %cst_201 [1] : vector<2x64xf32> to vector<2xf32>
    %775 = vector.shape_cast %774 : vector<2xf32> to vector<2x1xf32>
    %776 = arith.addf %775, %9 : vector<2x1xf32>
    %777 = vector.extract_strided_slice %771 {offsets = [0, 0], sizes = [2, 96], strides = [1, 1]} : vector<2x128xf32> to vector<2x96xf32>
    %778 = arith.negf %777 : vector<2x96xf32>
    %779 = math.exp %778 : vector<2x96xf32>
    %cst_202 = arith.constant 1.000000e+00 : f32
    %780 = vector.broadcast %cst_202 : f32 to vector<2x96xf32>
    %781 = arith.addf %780, %779 : vector<2x96xf32>
    %782 = arith.divf %780, %781 : vector<2x96xf32>
    %783 = vector.extract_strided_slice %782 {offsets = [0, 0], sizes = [2, 32], strides = [1, 1]} : vector<2x96xf32> to vector<2x32xf32>
    %784 = vector.extract_strided_slice %782 {offsets = [0, 32], sizes = [2, 32], strides = [1, 1]} : vector<2x96xf32> to vector<2x32xf32>
    %785 = vector.extract_strided_slice %782 {offsets = [0, 64], sizes = [2, 32], strides = [1, 1]} : vector<2x96xf32> to vector<2x32xf32>
    %786 = vector.extract_strided_slice %771 {offsets = [0, 96], sizes = [2, 32], strides = [1, 1]} : vector<2x128xf32> to vector<2x32xf32>
    %787 = math.tanh %786 : vector<2x32xf32>
    %cst_203 = arith.constant 1.000000e+00 : f32
    %788 = vector.broadcast %cst_203 : f32 to vector<2x1xf32>
    %789 = arith.mulf %788, %776 : vector<2x1xf32>
    %cst_204 = arith.constant 1.000000e+00 : f32
    %790 = vector.broadcast %cst_204 : f32 to vector<2x1xf32>
    %791 = arith.addf %789, %790 : vector<2x1xf32>
    %cst_205 = arith.constant 5.000000e-01 : f32
    %792 = vector.broadcast %cst_205 : f32 to vector<2x1xf32>
    %793 = arith.mulf %791, %792 : vector<2x1xf32>
    %cst_206 = arith.constant 0.000000e+00 : f32
    %cst_207 = arith.constant 1.000000e+00 : f32
    %794 = vector.broadcast %cst_206 : f32 to vector<2x1xf32>
    %795 = arith.maximumf %794, %793 : vector<2x1xf32>
    %796 = vector.broadcast %cst_207 : f32 to vector<2x1xf32>
    %797 = arith.minimumf %796, %795 : vector<2x1xf32>
    %798 = arith.mulf %784, %787 : vector<2x32xf32>
    %cst_208 = arith.constant 1.000000e+00 : f32
    %799 = vector.broadcast %cst_208 : f32 to vector<2x1xf32>
    %800 = arith.subf %799, %682 : vector<2x1xf32>
    %801 = arith.mulf %800, %753 : vector<2x1xf32>
    %cst_209 = arith.constant 1.000000e+00 : f32
    %802 = vector.broadcast %cst_209 : f32 to vector<2x1xf32>
    %803 = arith.subf %802, %682 : vector<2x1xf32>
    %804 = arith.subf %803, %801 : vector<2x1xf32>
    %805 = vector.broadcast %682 : vector<2x1xf32> to vector<2x32xf32>
    %806 = arith.mulf %805, %798 : vector<2x32xf32>
    %807 = vector.broadcast %804 : vector<2x1xf32> to vector<2x32xf32>
    %808 = arith.mulf %807, %699 : vector<2x32xf32>
    %809 = arith.addf %806, %808 : vector<2x32xf32>
    %810 = arith.mulf %783, %699 : vector<2x32xf32>
    %811 = arith.addf %810, %798 : vector<2x32xf32>
    %812 = vector.broadcast %801 : vector<2x1xf32> to vector<2x32xf32>
    %813 = arith.mulf %812, %811 : vector<2x32xf32>
    %814 = arith.addf %809, %813 : vector<2x32xf32>
    %cst_210 = arith.constant 1.000000e+00 : f32
    %815 = vector.broadcast %cst_210 : f32 to vector<2x1xf32>
    %816 = arith.subf %815, %804 : vector<2x1xf32>
    %817 = vector.broadcast %816 : vector<2x1xf32> to vector<2x32xf32>
    %818 = arith.mulf %817, %785 : vector<2x32xf32>
    %819 = math.tanh %814 : vector<2x32xf32>
    %820 = arith.mulf %818, %819 : vector<2x32xf32>
    %821 = vector.broadcast %804 : vector<2x1xf32> to vector<2x32xf32>
    %822 = arith.mulf %821, %708 : vector<2x32xf32>
    %823 = arith.addf %820, %822 : vector<2x32xf32>
    %824 = vector.broadcast %797 : vector<2x1xf32> to vector<2x32xf32>
    %825 = arith.mulf %823, %824 : vector<2x32xf32>
    %c4_i32_211 = arith.constant 4 : i32
    %826 = arith.muli %c1_i32_126, %c4_i32_211 : i32
    %c3_i32_212 = arith.constant 3 : i32
    %827 = arith.addi %826, %c3_i32_212 : i32
    %cst_213 = arith.constant 1.000000e+00 : f32
    %828 = vector.broadcast %cst_213 : f32 to vector<2x1xf32>
    %829 = arith.subf %828, %753 : vector<2x1xf32>
    %830 = vector.broadcast %829 : vector<2x1xf32> to vector<2x32xf32>
    %831 = arith.mulf %830, %762 : vector<2x32xf32>
    %832 = vector.broadcast %753 : vector<2x1xf32> to vector<2x32xf32>
    %833 = arith.mulf %832, %823 : vector<2x32xf32>
    %834 = tpu.concatenate %831, %833 in 1 : vector<2x32xf32>, vector<2x32xf32> -> vector<2x64xf32>
    %cst_214 = arith.constant dense<0.000000e+00> : vector<2x128xf32>
    %835 = tpu.matmul %834, %0, %cst_214 {dimension_numbers = #tpu.dot_dimension_numbers<[1], [0], [0], [1], [0, 0, 1, 1], [], []>} : vector<2x64xf32>, vector<64x128xf32>, vector<2x128xf32> -> vector<2x128xf32>
    %836 = arith.index_cast %827 : i32 to index
    %c0_215 = arith.constant 0 : index
    %c0_216 = arith.constant 0 : index
    %837 = vector.load %arg0[%836, %c0_215, %c0_216] : memref<8x2x128xf32, #tpu.memory_space<vmem>>, vector<1x2x128xf32>
    %838 = vector.shape_cast %837 : vector<1x2x128xf32> to vector<2x128xf32>
    %839 = arith.addf %835, %838 : vector<2x128xf32>
    %840 = vector.broadcast %1 : vector<1x64xf32> to vector<2x64xf32>
    %841 = arith.mulf %834, %840 : vector<2x64xf32>
    %cst_217 = arith.constant dense<0.000000e+00> : vector<2xf32>
    %842 = vector.multi_reduction <add>, %841, %cst_217 [1] : vector<2x64xf32> to vector<2xf32>
    %843 = vector.shape_cast %842 : vector<2xf32> to vector<2x1xf32>
    %844 = arith.index_cast %827 : i32 to index
    %c0_218 = arith.constant 0 : index
    %c0_219 = arith.constant 0 : index
    %845 = vector.load %arg1[%844, %c0_218, %c0_219] : memref<8x2x1xf32, #tpu.memory_space<vmem>>, vector<1x2x1xf32>
    %846 = vector.shape_cast %845 : vector<1x2x1xf32> to vector<2x1xf32>
    %847 = arith.addf %843, %846 : vector<2x1xf32>
    %848 = vector.extract_strided_slice %839 {offsets = [0, 0], sizes = [2, 96], strides = [1, 1]} : vector<2x128xf32> to vector<2x96xf32>
    %849 = arith.negf %848 : vector<2x96xf32>
    %850 = math.exp %849 : vector<2x96xf32>
    %cst_220 = arith.constant 1.000000e+00 : f32
    %851 = vector.broadcast %cst_220 : f32 to vector<2x96xf32>
    %852 = arith.addf %851, %850 : vector<2x96xf32>
    %853 = arith.divf %851, %852 : vector<2x96xf32>
    %854 = vector.extract_strided_slice %853 {offsets = [0, 0], sizes = [2, 32], strides = [1, 1]} : vector<2x96xf32> to vector<2x32xf32>
    %855 = vector.extract_strided_slice %853 {offsets = [0, 32], sizes = [2, 32], strides = [1, 1]} : vector<2x96xf32> to vector<2x32xf32>
    %856 = vector.extract_strided_slice %853 {offsets = [0, 64], sizes = [2, 32], strides = [1, 1]} : vector<2x96xf32> to vector<2x32xf32>
    %857 = vector.extract_strided_slice %839 {offsets = [0, 96], sizes = [2, 32], strides = [1, 1]} : vector<2x128xf32> to vector<2x32xf32>
    %858 = math.tanh %857 : vector<2x32xf32>
    %cst_221 = arith.constant 1.000000e+00 : f32
    %859 = vector.broadcast %cst_221 : f32 to vector<2x1xf32>
    %860 = arith.mulf %859, %847 : vector<2x1xf32>
    %cst_222 = arith.constant 1.000000e+00 : f32
    %861 = vector.broadcast %cst_222 : f32 to vector<2x1xf32>
    %862 = arith.addf %860, %861 : vector<2x1xf32>
    %cst_223 = arith.constant 5.000000e-01 : f32
    %863 = vector.broadcast %cst_223 : f32 to vector<2x1xf32>
    %864 = arith.mulf %862, %863 : vector<2x1xf32>
    %cst_224 = arith.constant 0.000000e+00 : f32
    %cst_225 = arith.constant 1.000000e+00 : f32
    %865 = vector.broadcast %cst_224 : f32 to vector<2x1xf32>
    %866 = arith.maximumf %865, %864 : vector<2x1xf32>
    %867 = vector.broadcast %cst_225 : f32 to vector<2x1xf32>
    %868 = arith.minimumf %867, %866 : vector<2x1xf32>
    %869 = arith.mulf %855, %858 : vector<2x32xf32>
    %cst_226 = arith.constant 1.000000e+00 : f32
    %870 = vector.broadcast %cst_226 : f32 to vector<2x1xf32>
    %871 = arith.subf %870, %753 : vector<2x1xf32>
    %872 = arith.mulf %854, %760 : vector<2x32xf32>
    %873 = vector.broadcast %871 : vector<2x1xf32> to vector<2x32xf32>
    %874 = arith.mulf %873, %872 : vector<2x32xf32>
    %875 = arith.addf %869, %874 : vector<2x32xf32>
    %876 = math.tanh %875 : vector<2x32xf32>
    %877 = arith.mulf %856, %876 : vector<2x32xf32>
    %cst_227 = arith.constant 1.000000e+00 : f32
    %878 = vector.broadcast %cst_227 : f32 to vector<2x1xf32>
    %879 = arith.subf %878, %797 : vector<2x1xf32>
    %880 = vector.broadcast %879 : vector<2x1xf32> to vector<2x32xf32>
    %881 = arith.mulf %880, %823 : vector<2x32xf32>
    %882 = vector.broadcast %868 : vector<2x1xf32> to vector<2x32xf32>
    %883 = arith.mulf %882, %877 : vector<2x32xf32>
    %884 = tpu.concatenate %881, %883 in 1 : vector<2x32xf32>, vector<2x32xf32> -> vector<2x64xf32>
    %cst_228 = arith.constant dense<0.000000e+00> : vector<2x128xf32>
    %885 = tpu.matmul %884, %2, %cst_228 {dimension_numbers = #tpu.dot_dimension_numbers<[1], [0], [0], [1], [0, 0, 1, 1], [], []>} : vector<2x64xf32>, vector<64x128xf32>, vector<2x128xf32> -> vector<2x128xf32>
    %886 = arith.addf %885, %6 : vector<2x128xf32>
    %887 = vector.broadcast %3 : vector<1x64xf32> to vector<2x64xf32>
    %888 = arith.mulf %884, %887 : vector<2x64xf32>
    %cst_229 = arith.constant dense<0.000000e+00> : vector<2xf32>
    %889 = vector.multi_reduction <add>, %888, %cst_229 [1] : vector<2x64xf32> to vector<2xf32>
    %890 = vector.shape_cast %889 : vector<2xf32> to vector<2x1xf32>
    %891 = arith.addf %890, %9 : vector<2x1xf32>
    %892 = vector.extract_strided_slice %886 {offsets = [0, 0], sizes = [2, 96], strides = [1, 1]} : vector<2x128xf32> to vector<2x96xf32>
    %893 = arith.negf %892 : vector<2x96xf32>
    %894 = math.exp %893 : vector<2x96xf32>
    %cst_230 = arith.constant 1.000000e+00 : f32
    %895 = vector.broadcast %cst_230 : f32 to vector<2x96xf32>
    %896 = arith.addf %895, %894 : vector<2x96xf32>
    %897 = arith.divf %895, %896 : vector<2x96xf32>
    %898 = vector.extract_strided_slice %897 {offsets = [0, 0], sizes = [2, 32], strides = [1, 1]} : vector<2x96xf32> to vector<2x32xf32>
    %899 = vector.extract_strided_slice %897 {offsets = [0, 32], sizes = [2, 32], strides = [1, 1]} : vector<2x96xf32> to vector<2x32xf32>
    %900 = vector.extract_strided_slice %897 {offsets = [0, 64], sizes = [2, 32], strides = [1, 1]} : vector<2x96xf32> to vector<2x32xf32>
    %901 = vector.extract_strided_slice %886 {offsets = [0, 96], sizes = [2, 32], strides = [1, 1]} : vector<2x128xf32> to vector<2x32xf32>
    %902 = math.tanh %901 : vector<2x32xf32>
    %cst_231 = arith.constant 1.000000e+00 : f32
    %903 = vector.broadcast %cst_231 : f32 to vector<2x1xf32>
    %904 = arith.mulf %903, %891 : vector<2x1xf32>
    %cst_232 = arith.constant 1.000000e+00 : f32
    %905 = vector.broadcast %cst_232 : f32 to vector<2x1xf32>
    %906 = arith.addf %904, %905 : vector<2x1xf32>
    %cst_233 = arith.constant 5.000000e-01 : f32
    %907 = vector.broadcast %cst_233 : f32 to vector<2x1xf32>
    %908 = arith.mulf %906, %907 : vector<2x1xf32>
    %cst_234 = arith.constant 0.000000e+00 : f32
    %cst_235 = arith.constant 1.000000e+00 : f32
    %909 = vector.broadcast %cst_234 : f32 to vector<2x1xf32>
    %910 = arith.maximumf %909, %908 : vector<2x1xf32>
    %911 = vector.broadcast %cst_235 : f32 to vector<2x1xf32>
    %912 = arith.minimumf %911, %910 : vector<2x1xf32>
    %913 = arith.mulf %899, %902 : vector<2x32xf32>
    %cst_236 = arith.constant 1.000000e+00 : f32
    %914 = vector.broadcast %cst_236 : f32 to vector<2x1xf32>
    %915 = arith.subf %914, %797 : vector<2x1xf32>
    %916 = arith.mulf %915, %868 : vector<2x1xf32>
    %cst_237 = arith.constant 1.000000e+00 : f32
    %917 = vector.broadcast %cst_237 : f32 to vector<2x1xf32>
    %918 = arith.subf %917, %797 : vector<2x1xf32>
    %919 = arith.subf %918, %916 : vector<2x1xf32>
    %920 = vector.broadcast %797 : vector<2x1xf32> to vector<2x32xf32>
    %921 = arith.mulf %920, %913 : vector<2x32xf32>
    %922 = vector.broadcast %919 : vector<2x1xf32> to vector<2x32xf32>
    %923 = arith.mulf %922, %814 : vector<2x32xf32>
    %924 = arith.addf %921, %923 : vector<2x32xf32>
    %925 = arith.mulf %898, %814 : vector<2x32xf32>
    %926 = arith.addf %925, %913 : vector<2x32xf32>
    %927 = vector.broadcast %916 : vector<2x1xf32> to vector<2x32xf32>
    %928 = arith.mulf %927, %926 : vector<2x32xf32>
    %929 = arith.addf %924, %928 : vector<2x32xf32>
    %cst_238 = arith.constant 1.000000e+00 : f32
    %930 = vector.broadcast %cst_238 : f32 to vector<2x1xf32>
    %931 = arith.subf %930, %919 : vector<2x1xf32>
    %932 = vector.broadcast %931 : vector<2x1xf32> to vector<2x32xf32>
    %933 = arith.mulf %932, %900 : vector<2x32xf32>
    %934 = math.tanh %929 : vector<2x32xf32>
    %935 = arith.mulf %933, %934 : vector<2x32xf32>
    %936 = vector.broadcast %919 : vector<2x1xf32> to vector<2x32xf32>
    %937 = arith.mulf %936, %823 : vector<2x32xf32>
    %938 = arith.addf %935, %937 : vector<2x32xf32>
    %939 = vector.broadcast %912 : vector<2x1xf32> to vector<2x32xf32>
    %940 = arith.mulf %938, %939 : vector<2x32xf32>
    %941 = tpu.concatenate %595, %710, %825, %940 in 1 : vector<2x32xf32>, vector<2x32xf32>, vector<2x32xf32>, vector<2x32xf32> -> vector<2x128xf32>
    %942 = arith.index_cast %c1_i32_126 : i32 to index
    %c0_239 = arith.constant 0 : index
    %c0_240 = arith.constant 0 : index
    %943 = vector.load %arg8[%942, %c0_239, %c0_240] : memref<2x2x128xf32, #tpu.memory_space<vmem>>, vector<1x2x128xf32>
    %944 = vector.shape_cast %943 : vector<1x2x128xf32> to vector<2x128xf32>
    %945 = vector.shape_cast %941 : vector<2x128xf32> to vector<1x2x128xf32>
    tpu.vector_store %arg8[%942, %c0_239, %c0_240], %945 {strides = array<i32>} : memref<2x2x128xf32, #tpu.memory_space<vmem>>, vector<1x2x128xf32>,
    %c2_i32_241 = arith.constant 2 : i32
    return
  }
}

</mosaic_0001>

<llo_original>
// kernel: tpu_custom_call.1
$region0: #{tpu_custom_call.1}
  #allocation0 [shape = 'u32[]', space=smem, size = 0x4, offset = 0x4, fixed_abs, tag = 'smem constant byte address 0x4 - core index']
  #allocation1 [shape = 'u32[144,128]{1,0:T(1,128)}', space=vmem, size = 0x12000, scoped, tag = 'internal scratch']
  #allocation2 [shape = 'f32[1,1]{1,0:T(1,128)S(1)}', space=vmem, size = 0x200, scoped, tag = 'scoped memory for tpu_custom_call.1']
  %s0 = inlined_call_operand.vmem [shape: f32[8,2,128], index: 0, kind: input, shape index: {}]
  %s1 = inlined_call_operand.vmem [shape: f32[8,2,1], index: 1, kind: input, shape index: {}]
  %s2 = inlined_call_operand.hbm [shape: f32[64,128], index: 2, kind: input, shape index: {}]
  %s3 = inlined_call_operand.vmem [shape: f32[1,64], index: 3, kind: input, shape index: {}]
  %s4 = inlined_call_operand.hbm [shape: f32[64,128], index: 4, kind: input, shape index: {}]
  %s5 = inlined_call_operand.vmem [shape: f32[1,64], index: 5, kind: input, shape index: {}]
  %s6 = inlined_call_operand.vmem [shape: f32[1,128], index: 6, kind: input, shape index: {}]
  %s7 = inlined_call_operand.<no memory space> [shape: f32[1,1], index: 7, kind: input, shape index: {}]
  %s8 = inlined_call_operand.hbm [shape: f32[2,2,128], index: 8, kind: output, shape index: {}]
  %s9 = sld [smem:[#allocation0]]
  $region50: #{tpu_custom_call.1} parent=0
    _
  %s11 = ssub.s32 1, %s9
  %s12 = scalar_select 0, %s11, %s9
  %v13 = vstv %s7
  %14 = vst [vmem:[#allocation2] sm:$0x1] %v13
  $region1: #{tpu_custom_call.1} parent=0
    #allocation3 [shape = 'u8[32768]{0}', space=vmem, size = 0x8000, scoped, tag = 'input window, operand 2, single buffered']
    #allocation4 [shape = 's32[1]{0}', space=sflag, size = 0x4, scoped, tag = 'scoped memory for tpu_custom_call.1']
    #allocation5 [shape = 's32[1]{0}', space=sflag, size = 0x4, scoped, tag = 'scoped memory for tpu_custom_call.1']
    #allocation6 [shape = 'u8[32768]{0}', space=vmem, size = 0x8000, scoped, tag = 'input window, operand 4, single buffered']
    #allocation7 [shape = 's32[1]{0}', space=sflag, size = 0x4, scoped, tag = 'scoped memory for tpu_custom_call.1']
    #allocation8 [shape = 'u8[2048]{0}', space=vmem, size = 0x800, scoped, tag = 'output window, operand 0, single buffered']
    %15 = vsyncpa [#allocation4], 0
    %16 = vsyncpa [#allocation7], 0
    %17 = vsyncpa [#allocation5], 0
    // Predicated region
    $region2: #{tpu_custom_call.1} parent=1 // pred_check
      _
    $region3: #{tpu_custom_call.1} parent=1 // pred_check_branch
      %19 = sbr.rel (0) target = $region5
    $region4: #{tpu_custom_call.1} parent=1 // pred_region
      _
    $region5: #{tpu_custom_call.1} parent=1 // pred_fallthru
      _
    // Predicated region
    $region6: #{tpu_custom_call.1} parent=1 // pred_check
      _
    $region7: #{tpu_custom_call.1} parent=1 // pred_check_branch
      %21 = sbr.rel (0) target = $region9
    $region8: #{tpu_custom_call.1} parent=1 // pred_region
      _
    $region9: #{tpu_custom_call.1} parent=1 // pred_fallthru
      _
    // Predicated region
    $region10: #{tpu_custom_call.1} parent=1 // pred_check
      _
    $region11: #{tpu_custom_call.1} parent=1 // pred_check_branch
      %23 = sbr.rel (0) target = $region13
    $region12: #{tpu_custom_call.1} parent=1 // pred_region
      %s25 = ssub.s32 1024, 1024
      %26 = vsyncadd [#allocation4], %s25
      %s27 = sshll.u32 [#allocation3], 4
      %s28 = int_to_ptr.vmem [resolvable:$true] %s27
      %33 = dma.hbm_to_vmem [thread:$0]  %s2, 1024, %s28, [#allocation4], 128, 128, 8
    $region13: #{tpu_custom_call.1} parent=1 // pred_fallthru
      _
    // Predicated region
    $region14: #{tpu_custom_call.1} parent=1 // pred_check
      _
    $region15: #{tpu_custom_call.1} parent=1 // pred_check_branch
      %35 = sbr.rel (0) target = $region17
    $region16: #{tpu_custom_call.1} parent=1 // pred_region
      _
    $region17: #{tpu_custom_call.1} parent=1 // pred_fallthru
      _
    // Predicated region
    $region18: #{tpu_custom_call.1} parent=1 // pred_check
      _
    $region19: #{tpu_custom_call.1} parent=1 // pred_check_branch
      %37 = sbr.rel (0) target = $region21
    $region20: #{tpu_custom_call.1} parent=1 // pred_region
      %s39 = ssub.s32 1024, 1024
      %40 = vsyncadd [#allocation7], %s39
      %s41 = sshll.u32 [#allocation6], 4
      %s42 = int_to_ptr.vmem [resolvable:$true] %s41
      %47 = dma.hbm_to_vmem [thread:$0]  %s4, 1024, %s42, [#allocation7], 128, 128, 8
    $region21: #{tpu_custom_call.1} parent=1 // pred_fallthru
      _
    // Predicated region
    $region22: #{tpu_custom_call.1} parent=1 // pred_check
      _
    $region23: #{tpu_custom_call.1} parent=1 // pred_check_branch
      %49 = sbr.rel (0) target = $region25
    $region24: #{tpu_custom_call.1} parent=1 // pred_region
      _
    $region25: #{tpu_custom_call.1} parent=1 // pred_fallthru
      _
    // Predicated region
    $region26: #{tpu_custom_call.1} parent=1 // pred_check
      _
    $region27: #{tpu_custom_call.1} parent=1 // pred_check_branch
      %51 = sbr.rel (0) target = $region29
    $region28: #{tpu_custom_call.1} parent=1 // pred_region
      _
    $region29: #{tpu_custom_call.1} parent=1 // pred_fallthru
      _
    // Predicated region
    $region30: #{tpu_custom_call.1} parent=1 // pred_check
      _
    $region31: #{tpu_custom_call.1} parent=1 // pred_check_branch
      %53 = sbr.rel (0) target = $region33
    $region32: #{tpu_custom_call.1} parent=1 // pred_region
      _
    $region33: #{tpu_custom_call.1} parent=1 // pred_fallthru
      _
    // Predicated region
    $region34: #{tpu_custom_call.1} parent=1 // pred_check
      _
    $region35: #{tpu_custom_call.1} parent=1 // pred_check_branch
      %55 = sbr.rel (0) target = $region37
    $region36: #{tpu_custom_call.1} parent=1 // pred_region
      %56 = dma.done [#allocation4], 1024
    $region37: #{tpu_custom_call.1} parent=1 // pred_fallthru
      _
    // Predicated region
    $region38: #{tpu_custom_call.1} parent=1 // pred_check
      _
    $region39: #{tpu_custom_call.1} parent=1 // pred_check_branch
      %58 = sbr.rel (0) target = $region41
    $region40: #{tpu_custom_call.1} parent=1 // pred_region
      %59 = dma.done [#allocation7], 1024
    $region41: #{tpu_custom_call.1} parent=1 // pred_fallthru
      _
    %v60 = vld [vmem:[#allocation3] sm:$0xff]
    %v61 = vld [vmem:[#allocation3 + $0x8] sm:$0xff]
    %v62 = vld [vmem:[#allocation3 + $0x10] sm:$0xff]
    %v63 = vld [vmem:[#allocation3 + $0x18] sm:$0xff]
    %v64 = vld [vmem:[#allocation3 + $0x20] sm:$0xff]
    %v65 = vld [vmem:[#allocation3 + $0x28] sm:$0xff]
    %v66 = vld [vmem:[#allocation3 + $0x30] sm:$0xff]
    %v67 = vld [vmem:[#allocation3 + $0x38] sm:$0xff]
    %v68 = vld [vmem:[%s3] sm:$0x1]
    %v69 = vld [vmem:[#allocation6] sm:$0xff]
    %v70 = vld [vmem:[#allocation6 + $0x8] sm:$0xff]
    %v71 = vld [vmem:[#allocation6 + $0x10] sm:$0xff]
    %v72 = vld [vmem:[#allocation6 + $0x18] sm:$0xff]
    %v73 = vld [vmem:[#allocation6 + $0x20] sm:$0xff]
    %v74 = vld [vmem:[#allocation6 + $0x28] sm:$0xff]
    %v75 = vld [vmem:[#allocation6 + $0x30] sm:$0xff]
    %v76 = vld [vmem:[#allocation6 + $0x38] sm:$0xff]
    %v77 = vld [vmem:[%s5] sm:$0x1]
    %v78 = vld [vmem:[%s6] sm:$0x1]
    %v80 = vlaneseq
    %v81 = vshrl.u32 %v80, 7
    %v82 = vsub.s32 0, %v81
    %v83 = vrot.slane %v78, %v82
    %v85 = vld [vmem:[#allocation2] sm:$0x1]
    %v87 = vlaneseq
    %v88 = vshrl.u32 %v87, 7
    %v89 = vsub.s32 0, %v88
    %v90 = vrot.slane %v85, %v89
    %v92 = vld [vmem:[%s0] sm:$0x3]
    %vm93 = vcmask 523264
    %v95 = vsel %vm93, 0.0, 0
    %97 = vmatprep.subr.mxu0 0.0
    %98 = vmatpush1.msra.mxu0 0.0
    %99 = vmatprep.subr.mxu0 0.0
    %100 = vmatpush1.msra.mxu0 0.0
    %101 = vmatprep.subr.mxu0 0.0
    %102 = vmatpush1.msra.mxu0 0.0
    %103 = vmatprep.subr.mxu0 0.0
    %104 = vmatpush1.msra.mxu0 0.0
    %105 = vmatprep.subr.mxu0 0.0
    %106 = vmatpush1.msra.mxu0 0.0
    %107 = vmatprep.subr.mxu0 0.0
    %108 = vmatpush1.msra.mxu0 0.0
    %109 = vmatprep.subr.mxu0 0.0
    %110 = vmatpush1.msra.mxu0 0.0
    %111 = vmatprep.subr.mxu0 0.0
    %112 = vmatpush1.msra.mxu0 0.0
    %113 = vmatprep.subr.mxu0 0.0
    %114 = vmatpush1.msra.mxu0 %v67
    %115 = vmatprep.subr.mxu0 0.0
    %116 = vmatpush1.msra.mxu0 %v66
    %117 = vmatprep.subr.mxu0 0.0
    %118 = vmatpush1.msra.mxu0 %v65
    %119 = vmatprep.subr.mxu0 0.0
    %120 = vmatpush1.msra.mxu0 %v64
    %121 = vmatprep.subr.mxu0 0.0
    %122 = vmatpush1.msra.mxu0 %v63
    %123 = vmatprep.subr.mxu0 0.0
    %124 = vmatpush1.msra.mxu0 %v62
    %125 = vmatprep.subr.mxu0 0.0
    %126 = vmatpush1.msra.mxu0 %v61
    %127 = vmatprep.subr.mxu0 0.0
    %128 = vmatpush1.msra.mxu0 %v60
    %129 = vmatprep.subr.mxu0 0.0
    %130 = vmatpush2.msra.mxu0 0.0
    %131 = vmatprep.subr.mxu0 0.0
    %132 = vmatpush2.msra.mxu0 0.0
    %133 = vmatprep.subr.mxu0 0.0
    %134 = vmatpush2.msra.mxu0 0.0
    %135 = vmatprep.subr.mxu0 0.0
    %136 = vmatpush2.msra.mxu0 0.0
    %137 = vmatprep.subr.mxu0 0.0
    %138 = vmatpush2.msra.mxu0 0.0
    %139 = vmatprep.subr.mxu0 0.0
    %140 = vmatpush2.msra.mxu0 0.0
    %141 = vmatprep.subr.mxu0 0.0
    %142 = vmatpush2.msra.mxu0 0.0
    %143 = vmatprep.subr.mxu0 0.0
    %144 = vmatpush2.msra.mxu0 0.0
    %145 = vmatprep.subr.mxu0 0.0
    %146 = vmatpush2.msra.mxu0 0.0
    %147 = vmatprep.subr.mxu0 0.0
    %148 = vmatpush2.msra.mxu0 0.0
    %149 = vmatprep.subr.mxu0 0.0
    %150 = vmatpush2.msra.mxu0 0.0
    %151 = vmatprep.subr.mxu0 0.0
    %152 = vmatpush2.msra.mxu0 0.0
    %153 = vmatprep.subr.mxu0 0.0
    %154 = vmatpush2.msra.mxu0 0.0
    %155 = vmatprep.subr.mxu0 0.0
    %156 = vmatpush2.msra.mxu0 0.0
    %157 = vmatprep.subr.mxu0 0.0
    %158 = vmatpush2.msra.mxu0 0.0
    %159 = vmatprep.subr.mxu0 0.0
    %160 = vmatpush2.msra.mxu0 0.0
    %161 = vmatprep.mubr.f32.mxu0 0.0
    %162 = vmatmul.mubr.f32.gmra.mxu0 %v95
    %v163 = vpop.f32.mrf.mxu0
    %v164 = vadd.f32 %v92, %v163
    %v165 = vpop.f32.mrf.mxu0
    %166 = vdwg.mxu0
    %v168 = vlaneseq
    %v169 = vshrl.u32 %v168, 7
    %v170 = vsub.s32 0, %v169
    %v171 = vrot.slane %v68, %v170
    %v173 = vmul.f32 %v171, 0.0
    %vm174 = vcmask 517120
    %v175 = vsel %vm174, %v173, 0.0
    %176 = vadd.xlane.f32.xlu0 %v175
    %v177 = vpop.xlane.xlu0 %176
    %v178 = vld [vmem:[%s1] sm:$0x3]
    %v179 = vadd.f32 %v177, %v178
    %v180 = vxor.u32 %v164, 2147483648
    %v181 = vmul.f32 %v180, 1.442695
    %v182 = vpow.pop %v181
    %v183 = vadd.f32 %v182, 1.0
    %v184 = vrcp.pop %v183
    %v185 = vmul.f32 1.0, %v184
    %v186 = vtanh.pop %v164
    %v187 = vadd.f32 %v179, 1.0
    %v188 = vmul.f32 %v187, 0.5
    %v189 = vmax.f32 %v188, 0.0
    %v190 = vmin.f32 %v189, 1.0
    %192 = vrot.lane.b32.xlu0 %v186, 64
    %v193 = vpop.permute.xlu0 %192
    %v195 = vmul.f32 %v185, %v193
    %v196 = vmul.f32 %v185, 0.0
    %198 = vrot.lane.b32.xlu0 %v196, 32
    %v199 = vpop.permute.xlu0 %198
    %v201 = vadd.f32 %v195, %v199
    %v202 = vtanh.pop %v201
    %204 = vrot.lane.b32.xlu0 %v202, 32
    %v205 = vpop.permute.xlu0 %204
    %v207 = vmul.f32 %v185, %v205
    %209 = vset.pattern.permute.xlu0 0
    %210 = vperm.xlu0 %209, %v190
    %v211 = vpop.permute.xlu0 %210
    %v213 = vmul.f32 %v211, %v207
    %215 = vrot.lane.b32.xlu0 %v213, 96
    %v216 = vpop.permute.xlu0 %215
    %vm218 = vcmask 261120
    %v219 = vsel %vm218, 0.0, %v216
    %v221 = vsel %vm93, %v219, 0
    %223 = vmatprep.subr.mxu0 0.0
    %224 = vmatpush1.msra.mxu0 0.0
    %225 = vmatprep.subr.mxu0 0.0
    %226 = vmatpush1.msra.mxu0 0.0
    %227 = vmatprep.subr.mxu0 0.0
    %228 = vmatpush1.msra.mxu0 0.0
    %229 = vmatprep.subr.mxu0 0.0
    %230 = vmatpush1.msra.mxu0 0.0
    %231 = vmatprep.subr.mxu0 0.0
    %232 = vmatpush1.msra.mxu0 0.0
    %233 = vmatprep.subr.mxu0 0.0
    %234 = vmatpush1.msra.mxu0 0.0
    %235 = vmatprep.subr.mxu0 0.0
    %236 = vmatpush1.msra.mxu0 0.0
    %237 = vmatprep.subr.mxu0 0.0
    %238 = vmatpush1.msra.mxu0 0.0
    %239 = vmatprep.subr.mxu0 0.0
    %240 = vmatpush1.msra.mxu0 %v76
    %241 = vmatprep.subr.mxu0 0.0
    %242 = vmatpush1.msra.mxu0 %v75
    %243 = vmatprep.subr.mxu0 0.0
    %244 = vmatpush1.msra.mxu0 %v74
    %245 = vmatprep.subr.mxu0 0.0
    %246 = vmatpush1.msra.mxu0 %v73
    %247 = vmatprep.subr.mxu0 0.0
    %248 = vmatpush1.msra.mxu0 %v72
    %249 = vmatprep.subr.mxu0 0.0
    %250 = vmatpush1.msra.mxu0 %v71
    %251 = vmatprep.subr.mxu0 0.0
    %252 = vmatpush1.msra.mxu0 %v70
    %253 = vmatprep.subr.mxu0 0.0
    %254 = vmatpush1.msra.mxu0 %v69
    %255 = vmatprep.subr.mxu0 0.0
    %256 = vmatpush2.msra.mxu0 0.0
    %257 = vmatprep.subr.mxu0 0.0
    %258 = vmatpush2.msra.mxu0 0.0
    %259 = vmatprep.subr.mxu0 0.0
    %260 = vmatpush2.msra.mxu0 0.0
    %261 = vmatprep.subr.mxu0 0.0
    %262 = vmatpush2.msra.mxu0 0.0
    %263 = vmatprep.subr.mxu0 0.0
    %264 = vmatpush2.msra.mxu0 0.0
    %265 = vmatprep.subr.mxu0 0.0
    %266 = vmatpush2.msra.mxu0 0.0
    %267 = vmatprep.subr.mxu0 0.0
    %268 = vmatpush2.msra.mxu0 0.0
    %269 = vmatprep.subr.mxu0 0.0
    %270 = vmatpush2.msra.mxu0 0.0
    %271 = vmatprep.subr.mxu0 0.0
    %272 = vmatpush2.msra.mxu0 0.0
    %273 = vmatprep.subr.mxu0 0.0
    %274 = vmatpush2.msra.mxu0 0.0
    %275 = vmatprep.subr.mxu0 0.0
    %276 = vmatpush2.msra.mxu0 0.0
    %277 = vmatprep.subr.mxu0 0.0
    %278 = vmatpush2.msra.mxu0 0.0
    %279 = vmatprep.subr.mxu0 0.0
    %280 = vmatpush2.msra.mxu0 0.0
    %281 = vmatprep.subr.mxu0 0.0
    %282 = vmatpush2.msra.mxu0 0.0
    %283 = vmatprep.subr.mxu0 0.0
    %284 = vmatpush2.msra.mxu0 0.0
    %285 = vmatprep.subr.mxu0 0.0
    %286 = vmatpush2.msra.mxu0 0.0
    %287 = vmatprep.mubr.f32.mxu0 0.0
    %288 = vmatmul.mubr.f32.gmra.mxu0 %v221
    %v289 = vpop.f32.mrf.mxu0
    %v290 = vadd.f32 %v83, %v289
    %v291 = vpop.f32.mrf.mxu0
    %292 = vdwg.mxu0
    %v294 = vlaneseq
    %v295 = vshrl.u32 %v294, 7
    %v296 = vsub.s32 0, %v295
    %v297 = vrot.slane %v77, %v296
    %v299 = vmul.f32 %v219, %v297
    %v300 = vsel %vm174, %v299, 0.0
    %301 = vadd.xlane.f32.xlu0 %v300
    %v302 = vpop.xlane.xlu0 %301
    %v303 = vadd.f32 %v302, %v90
    %v304 = vxor.u32 %v290, 2147483648
    %v305 = vmul.f32 %v304, 1.442695
    %v306 = vpow.pop %v305
    %v307 = vadd.f32 %v306, 1.0
    %v308 = vrcp.pop %v307
    %v309 = vmul.f32 1.0, %v308
    %v310 = vtanh.pop %v290
    %v311 = vadd.f32 %v303, 1.0
    %v312 = vmul.f32 %v311, 0.5
    %v313 = vmax.f32 %v312, 0.0
    %v314 = vmin.f32 %v313, 1.0
    %316 = vrot.lane.b32.xlu0 %v310, 64
    %v317 = vpop.permute.xlu0 %316
    %v319 = vmul.f32 %v309, %v317
    %v320 = vsub.f32 1.0, %v190
    %v321 = vmul.f32 %v319, 0.0
    %323 = vset.pattern.permute.xlu0 0
    %324 = vperm.xlu0 %323, %v320
    %v325 = vpop.permute.xlu0 %324
    %v327 = vmul.f32 %v325, 0.0
    %v328 = vadd.f32 %v321, %v327
    %v329 = vmul.f32 %v309, 0.0
    %331 = vrot.lane.b32.xlu0 %v319, 96
    %v332 = vpop.permute.xlu0 %331
    %v334 = vadd.f32 %v329, %v332
    %v335 = vmul.f32 %v211, %v334
    %337 = vrot.lane.b32.xlu0 %v335, 32
    %v338 = vpop.permute.xlu0 %337
    %v340 = vadd.f32 %v328, %v338
    %v341 = vsub.f32 1.0, %v320
    %343 = vset.pattern.permute.xlu0 0
    %344 = vperm.xlu0 %343, %v341
    %v345 = vpop.permute.xlu0 %344
    %v347 = vmul.f32 %v345, %v309
    %v348 = vtanh.pop %v340
    %350 = vrot.lane.b32.xlu0 %v348, 32
    %v351 = vpop.permute.xlu0 %350
    %v353 = vmul.f32 %v347, %v351
    %v354 = vadd.f32 %v353, %v327
    %356 = vset.pattern.permute.xlu0 0
    %357 = vperm.xlu0 %356, %v314
    %v358 = vpop.permute.xlu0 %357
    %v360 = vmul.f32 %v354, %v358
    %v361 = vmul.f32 %v325, %v207
    %v362 = vmul.f32 %v211, %v354
    %364 = vrot.lane.b32.xlu0 %v361, 64
    %v365 = vpop.permute.xlu0 %364
    %368 = vrot.lane.b32.xlu0 %v362, 96
    %v369 = vpop.permute.xlu0 %368
    %v371 = vsel %vm218, %v365, %v369
    %s372 = scalar_lea.vmem %s0, 2
    %v373 = vld [vmem:[%s372] sm:$0x3]
    %v375 = vsel %vm93, %v371, 0
    %377 = vmatprep.subr.mxu0 0.0
    %378 = vmatpush1.msra.mxu0 0.0
    %379 = vmatprep.subr.mxu0 0.0
    %380 = vmatpush1.msra.mxu0 0.0
    %381 = vmatprep.subr.mxu0 0.0
    %382 = vmatpush1.msra.mxu0 0.0
    %383 = vmatprep.subr.mxu0 0.0
    %384 = vmatpush1.msra.mxu0 0.0
    %385 = vmatprep.subr.mxu0 0.0
    %386 = vmatpush1.msra.mxu0 0.0
    %387 = vmatprep.subr.mxu0 0.0
    %388 = vmatpush1.msra.mxu0 0.0
    %389 = vmatprep.subr.mxu0 0.0
    %390 = vmatpush1.msra.mxu0 0.0
    %391 = vmatprep.subr.mxu0 0.0
    %392 = vmatpush1.msra.mxu0 0.0
    %393 = vmatprep.subr.mxu0 0.0
    %394 = vmatpush1.msra.mxu0 %v67
    %395 = vmatprep.subr.mxu0 0.0
    %396 = vmatpush1.msra.mxu0 %v66
    %397 = vmatprep.subr.mxu0 0.0
    %398 = vmatpush1.msra.mxu0 %v65
    %399 = vmatprep.subr.mxu0 0.0
    %400 = vmatpush1.msra.mxu0 %v64
    %401 = vmatprep.subr.mxu0 0.0
    %402 = vmatpush1.msra.mxu0 %v63
    %403 = vmatprep.subr.mxu0 0.0
    %404 = vmatpush1.msra.mxu0 %v62
    %405 = vmatprep.subr.mxu0 0.0
    %406 = vmatpush1.msra.mxu0 %v61
    %407 = vmatprep.subr.mxu0 0.0
    %408 = vmatpush1.msra.mxu0 %v60
    %409 = vmatprep.subr.mxu0 0.0
    %410 = vmatpush2.msra.mxu0 0.0
    %411 = vmatprep.subr.mxu0 0.0
    %412 = vmatpush2.msra.mxu0 0.0
    %413 = vmatprep.subr.mxu0 0.0
    %414 = vmatpush2.msra.mxu0 0.0
    %415 = vmatprep.subr.mxu0 0.0
    %416 = vmatpush2.msra.mxu0 0.0
    %417 = vmatprep.subr.mxu0 0.0
    %418 = vmatpush2.msra.mxu0 0.0
    %419 = vmatprep.subr.mxu0 0.0
    %420 = vmatpush2.msra.mxu0 0.0
    %421 = vmatprep.subr.mxu0 0.0
    %422 = vmatpush2.msra.mxu0 0.0
    %423 = vmatprep.subr.mxu0 0.0
    %424 = vmatpush2.msra.mxu0 0.0
    %425 = vmatprep.subr.mxu0 0.0
    %426 = vmatpush2.msra.mxu0 0.0
    %427 = vmatprep.subr.mxu0 0.0
    %428 = vmatpush2.msra.mxu0 0.0
    %429 = vmatprep.subr.mxu0 0.0
    %430 = vmatpush2.msra.mxu0 0.0
    %431 = vmatprep.subr.mxu0 0.0
    %432 = vmatpush2.msra.mxu0 0.0
    %433 = vmatprep.subr.mxu0 0.0
    %434 = vmatpush2.msra.mxu0 0.0
    %435 = vmatprep.subr.mxu0 0.0
    %436 = vmatpush2.msra.mxu0 0.0
    %437 = vmatprep.subr.mxu0 0.0
    %438 = vmatpush2.msra.mxu0 0.0
    %439 = vmatprep.subr.mxu0 0.0
    %440 = vmatpush2.msra.mxu0 0.0
    %441 = vmatprep.mubr.f32.mxu0 0.0
    %442 = vmatmul.mubr.f32.gmra.mxu0 %v375
    %v443 = vpop.f32.mrf.mxu0
    %v444 = vadd.f32 %v373, %v443
    %v445 = vpop.f32.mrf.mxu0
    %446 = vdwg.mxu0
    %v447 = vmul.f32 %v371, %v171
    %v448 = vsel %vm174, %v447, 0.0
    %449 = vadd.xlane.f32.xlu0 %v448
    %v450 = vpop.xlane.xlu0 %449
    %s451 = scalar_lea.vmem %s1, 2
    %v452 = vld [vmem:[%s451] sm:$0x3]
    %v453 = vadd.f32 %v450, %v452
    %v454 = vxor.u32 %v444, 2147483648
    %v455 = vmul.f32 %v454, 1.442695
    %v456 = vpow.pop %v455
    %v457 = vadd.f32 %v456, 1.0
    %v458 = vrcp.pop %v457
    %v459 = vmul.f32 1.0, %v458
    %v460 = vtanh.pop %v444
    %v461 = vadd.f32 %v453, 1.0
    %v462 = vmul.f32 %v461, 0.5
    %v463 = vmax.f32 %v462, 0.0
    %v464 = vmin.f32 %v463, 1.0
    %466 = vrot.lane.b32.xlu0 %v460, 64
    %v467 = vpop.permute.xlu0 %466
    %v469 = vmul.f32 %v459, %v467
    %471 = vrot.lane.b32.xlu0 %v201, 96
    %v472 = vpop.permute.xlu0 %471
    %v474 = vmul.f32 %v459, %v472
    %v475 = vmul.f32 %v325, %v474
    %477 = vrot.lane.b32.xlu0 %v475, 32
    %v478 = vpop.permute.xlu0 %477
    %v480 = vadd.f32 %v469, %v478
    %v481 = vtanh.pop %v480
    %483 = vrot.lane.b32.xlu0 %v481, 32
    %v484 = vpop.permute.xlu0 %483
    %v486 = vmul.f32 %v459, %v484
    %v487 = vsub.f32 1.0, %v314
    %489 = vset.pattern.permute.xlu0 0
    %490 = vperm.xlu0 %489, %v487
    %v491 = vpop.permute.xlu0 %490
    %v493 = vmul.f32 %v491, %v354
    %495 = vset.pattern.permute.xlu0 0
    %496 = vperm.xlu0 %495, %v464
    %v497 = vpop.permute.xlu0 %496
    %v499 = vmul.f32 %v497, %v486
    %501 = vrot.lane.b32.xlu0 %v493, 64
    %v502 = vpop.permute.xlu0 %501
    %505 = vrot.lane.b32.xlu0 %v499, 96
    %v506 = vpop.permute.xlu0 %505
    %v508 = vsel %vm218, %v502, %v506
    %v510 = vsel %vm93, %v508, 0
    %512 = vmatprep.subr.mxu0 0.0
    %513 = vmatpush1.msra.mxu0 0.0
    %514 = vmatprep.subr.mxu0 0.0
    %515 = vmatpush1.msra.mxu0 0.0
    %516 = vmatprep.subr.mxu0 0.0
    %517 = vmatpush1.msra.mxu0 0.0
    %518 = vmatprep.subr.mxu0 0.0
    %519 = vmatpush1.msra.mxu0 0.0
    %520 = vmatprep.subr.mxu0 0.0
    %521 = vmatpush1.msra.mxu0 0.0
    %522 = vmatprep.subr.mxu0 0.0
    %523 = vmatpush1.msra.mxu0 0.0
    %524 = vmatprep.subr.mxu0 0.0
    %525 = vmatpush1.msra.mxu0 0.0
    %526 = vmatprep.subr.mxu0 0.0
    %527 = vmatpush1.msra.mxu0 0.0
    %528 = vmatprep.subr.mxu0 0.0
    %529 = vmatpush1.msra.mxu0 %v76
    %530 = vmatprep.subr.mxu0 0.0
    %531 = vmatpush1.msra.mxu0 %v75
    %532 = vmatprep.subr.mxu0 0.0
    %533 = vmatpush1.msra.mxu0 %v74
    %534 = vmatprep.subr.mxu0 0.0
    %535 = vmatpush1.msra.mxu0 %v73
    %536 = vmatprep.subr.mxu0 0.0
    %537 = vmatpush1.msra.mxu0 %v72
    %538 = vmatprep.subr.mxu0 0.0
    %539 = vmatpush1.msra.mxu0 %v71
    %540 = vmatprep.subr.mxu0 0.0
    %541 = vmatpush1.msra.mxu0 %v70
    %542 = vmatprep.subr.mxu0 0.0
    %543 = vmatpush1.msra.mxu0 %v69
    %544 = vmatprep.subr.mxu0 0.0
    %545 = vmatpush2.msra.mxu0 0.0
    %546 = vmatprep.subr.mxu0 0.0
    %547 = vmatpush2.msra.mxu0 0.0
    %548 = vmatprep.subr.mxu0 0.0
    %549 = vmatpush2.msra.mxu0 0.0
    %550 = vmatprep.subr.mxu0 0.0
    %551 = vmatpush2.msra.mxu0 0.0
    %552 = vmatprep.subr.mxu0 0.0
    %553 = vmatpush2.msra.mxu0 0.0
    %554 = vmatprep.subr.mxu0 0.0
    %555 = vmatpush2.msra.mxu0 0.0
    %556 = vmatprep.subr.mxu0 0.0
    %557 = vmatpush2.msra.mxu0 0.0
    %558 = vmatprep.subr.mxu0 0.0
    %559 = vmatpush2.msra.mxu0 0.0
    %560 = vmatprep.subr.mxu0 0.0
    %561 = vmatpush2.msra.mxu0 0.0
    %562 = vmatprep.subr.mxu0 0.0
    %563 = vmatpush2.msra.mxu0 0.0
    %564 = vmatprep.subr.mxu0 0.0
    %565 = vmatpush2.msra.mxu0 0.0
    %566 = vmatprep.subr.mxu0 0.0
    %567 = vmatpush2.msra.mxu0 0.0
    %568 = vmatprep.subr.mxu0 0.0
    %569 = vmatpush2.msra.mxu0 0.0
    %570 = vmatprep.subr.mxu0 0.0
    %571 = vmatpush2.msra.mxu0 0.0
    %572 = vmatprep.subr.mxu0 0.0
    %573 = vmatpush2.msra.mxu0 0.0
    %574 = vmatprep.subr.mxu0 0.0
    %575 = vmatpush2.msra.mxu0 0.0
    %576 = vmatprep.mubr.f32.mxu0 0.0
    %577 = vmatmul.mubr.f32.gmra.mxu0 %v510
    %v578 = vpop.f32.mrf.mxu0
    %v579 = vadd.f32 %v83, %v578
    %v580 = vpop.f32.mrf.mxu0
    %581 = vdwg.mxu0
    %v582 = vmul.f32 %v508, %v297
    %v583 = vsel %vm174, %v582, 0.0
    %584 = vadd.xlane.f32.xlu0 %v583
    %v585 = vpop.xlane.xlu0 %584
    %v586 = vadd.f32 %v585, %v90
    %v587 = vxor.u32 %v579, 2147483648
    %v588 = vmul.f32 %v587, 1.442695
    %v589 = vpow.pop %v588
    %v590 = vadd.f32 %v589, 1.0
    %v591 = vrcp.pop %v590
    %v592 = vmul.f32 1.0, %v591
    %v593 = vtanh.pop %v579
    %v594 = vadd.f32 %v586, 1.0
    %v595 = vmul.f32 %v594, 0.5
    %v596 = vmax.f32 %v595, 0.0
    %v597 = vmin.f32 %v596, 1.0
    %599 = vrot.lane.b32.xlu0 %v593, 64
    %v600 = vpop.permute.xlu0 %599
    %v602 = vmul.f32 %v592, %v600
    %v603 = vmul.f32 %v487, %v464
    %v604 = vsub.f32 %v487, %v603
    %v605 = vmul.f32 %v358, %v602
    %607 = vset.pattern.permute.xlu0 0
    %608 = vperm.xlu0 %607, %v604
    %v609 = vpop.permute.xlu0 %608
    %v611 = vmul.f32 %v609, %v340
    %v612 = vadd.f32 %v605, %v611
    %614 = vrot.lane.b32.xlu0 %v340, 96
    %v615 = vpop.permute.xlu0 %614
    %v617 = vmul.f32 %v592, %v615
    %619 = vrot.lane.b32.xlu0 %v602, 96
    %v620 = vpop.permute.xlu0 %619
    %v622 = vadd.f32 %v617, %v620
    %624 = vset.pattern.permute.xlu0 0
    %625 = vperm.xlu0 %624, %v603
    %v626 = vpop.permute.xlu0 %625
    %v628 = vmul.f32 %v626, %v622
    %630 = vrot.lane.b32.xlu0 %v628, 32
    %v631 = vpop.permute.xlu0 %630
    %v633 = vadd.f32 %v612, %v631
    %v634 = vsub.f32 1.0, %v604
    %636 = vset.pattern.permute.xlu0 0
    %637 = vperm.xlu0 %636, %v634
    %v638 = vpop.permute.xlu0 %637
    %v640 = vmul.f32 %v638, %v592
    %v641 = vtanh.pop %v633
    %643 = vrot.lane.b32.xlu0 %v641, 32
    %v644 = vpop.permute.xlu0 %643
    %v646 = vmul.f32 %v640, %v644
    %v647 = vmul.f32 %v609, %v354
    %v648 = vadd.f32 %v646, %v647
    %650 = vset.pattern.permute.xlu0 0
    %651 = vperm.xlu0 %650, %v597
    %v652 = vpop.permute.xlu0 %651
    %v654 = vmul.f32 %v648, %v652
    %v655 = vsub.f32 1.0, %v464
    %657 = vset.pattern.permute.xlu0 0
    %658 = vperm.xlu0 %657, %v655
    %v659 = vpop.permute.xlu0 %658
    %v661 = vmul.f32 %v659, %v486
    %v662 = vmul.f32 %v497, %v648
    %664 = vrot.lane.b32.xlu0 %v661, 64
    %v665 = vpop.permute.xlu0 %664
    %668 = vrot.lane.b32.xlu0 %v662, 96
    %v669 = vpop.permute.xlu0 %668
    %v671 = vsel %vm218, %v665, %v669
    %s672 = scalar_lea.vmem %s0, 4
    %v673 = vld [vmem:[%s672] sm:$0x3]
    %v675 = vsel %vm93, %v671, 0
    %677 = vmatprep.subr.mxu0 0.0
    %678 = vmatpush1.msra.mxu0 0.0
    %679 = vmatprep.subr.mxu0 0.0
    %680 = vmatpush1.msra.mxu0 0.0
    %681 = vmatprep.subr.mxu0 0.0
    %682 = vmatpush1.msra.mxu0 0.0
    %683 = vmatprep.subr.mxu0 0.0
    %684 = vmatpush1.msra.mxu0 0.0
    %685 = vmatprep.subr.mxu0 0.0
    %686 = vmatpush1.msra.mxu0 0.0
    %687 = vmatprep.subr.mxu0 0.0
    %688 = vmatpush1.msra.mxu0 0.0
    %689 = vmatprep.subr.mxu0 0.0
    %690 = vmatpush1.msra.mxu0 0.0
    %691 = vmatprep.subr.mxu0 0.0
    %692 = vmatpush1.msra.mxu0 0.0
    %693 = vmatprep.subr.mxu0 0.0
    %694 = vmatpush1.msra.mxu0 %v67
    %695 = vmatprep.subr.mxu0 0.0
    %696 = vmatpush1.msra.mxu0 %v66
    %697 = vmatprep.subr.mxu0 0.0
    %698 = vmatpush1.msra.mxu0 %v65
    %699 = vmatprep.subr.mxu0 0.0
    %700 = vmatpush1.msra.mxu0 %v64
    %701 = vmatprep.subr.mxu0 0.0
    %702 = vmatpush1.msra.mxu0 %v63
    %703 = vmatprep.subr.mxu0 0.0
    %704 = vmatpush1.msra.mxu0 %v62
    %705 = vmatprep.subr.mxu0 0.0
    %706 = vmatpush1.msra.mxu0 %v61
    %707 = vmatprep.subr.mxu0 0.0
    %708 = vmatpush1.msra.mxu0 %v60
    %709 = vmatprep.subr.mxu0 0.0
    %710 = vmatpush2.msra.mxu0 0.0
    %711 = vmatprep.subr.mxu0 0.0
    %712 = vmatpush2.msra.mxu0 0.0
    %713 = vmatprep.subr.mxu0 0.0
    %714 = vmatpush2.msra.mxu0 0.0
    %715 = vmatprep.subr.mxu0 0.0
    %716 = vmatpush2.msra.mxu0 0.0
    %717 = vmatprep.subr.mxu0 0.0
    %718 = vmatpush2.msra.mxu0 0.0
    %719 = vmatprep.subr.mxu0 0.0
    %720 = vmatpush2.msra.mxu0 0.0
    %721 = vmatprep.subr.mxu0 0.0
    %722 = vmatpush2.msra.mxu0 0.0
    %723 = vmatprep.subr.mxu0 0.0
    %724 = vmatpush2.msra.mxu0 0.0
    %725 = vmatprep.subr.mxu0 0.0
    %726 = vmatpush2.msra.mxu0 0.0
    %727 = vmatprep.subr.mxu0 0.0
    %728 = vmatpush2.msra.mxu0 0.0
    %729 = vmatprep.subr.mxu0 0.0
    %730 = vmatpush2.msra.mxu0 0.0
    %731 = vmatprep.subr.mxu0 0.0
    %732 = vmatpush2.msra.mxu0 0.0
    %733 = vmatprep.subr.mxu0 0.0
    %734 = vmatpush2.msra.mxu0 0.0
    %735 = vmatprep.subr.mxu0 0.0
    %736 = vmatpush2.msra.mxu0 0.0
    %737 = vmatprep.subr.mxu0 0.0
    %738 = vmatpush2.msra.mxu0 0.0
    %739 = vmatprep.subr.mxu0 0.0
    %740 = vmatpush2.msra.mxu0 0.0
    %741 = vmatprep.mubr.f32.mxu0 0.0
    %742 = vmatmul.mubr.f32.gmra.mxu0 %v675
    %v743 = vpop.f32.mrf.mxu0
    %v744 = vadd.f32 %v673, %v743
    %v745 = vpop.f32.mrf.mxu0
    %746 = vdwg.mxu0
    %v747 = vmul.f32 %v671, %v171
    %v748 = vsel %vm174, %v747, 0.0
    %749 = vadd.xlane.f32.xlu0 %v748
    %v750 = vpop.xlane.xlu0 %749
    %s751 = scalar_lea.vmem %s1, 4
    %v752 = vld [vmem:[%s751] sm:$0x3]
    %v753 = vadd.f32 %v750, %v752
    %v754 = vxor.u32 %v744, 2147483648
    %v755 = vmul.f32 %v754, 1.442695
    %v756 = vpow.pop %v755
    %v757 = vadd.f32 %v756, 1.0
    %v758 = vrcp.pop %v757
    %v759 = vmul.f32 1.0, %v758
    %v760 = vtanh.pop %v744
    %v761 = vadd.f32 %v753, 1.0
    %v762 = vmul.f32 %v761, 0.5
    %v763 = vmax.f32 %v762, 0.0
    %v764 = vmin.f32 %v763, 1.0
    %766 = vrot.lane.b32.xlu0 %v760, 64
    %v767 = vpop.permute.xlu0 %766
    %v769 = vmul.f32 %v759, %v767
    %771 = vrot.lane.b32.xlu0 %v480, 96
    %v772 = vpop.permute.xlu0 %771
    %v774 = vmul.f32 %v759, %v772
    %v775 = vmul.f32 %v659, %v774
    %777 = vrot.lane.b32.xlu0 %v775, 32
    %v778 = vpop.permute.xlu0 %777
    %v780 = vadd.f32 %v769, %v778
    %v781 = vtanh.pop %v780
    %783 = vrot.lane.b32.xlu0 %v781, 32
    %v784 = vpop.permute.xlu0 %783
    %v786 = vmul.f32 %v759, %v784
    %v787 = vsub.f32 1.0, %v597
    %789 = vset.pattern.permute.xlu0 0
    %790 = vperm.xlu0 %789, %v787
    %v791 = vpop.permute.xlu0 %790
    %v793 = vmul.f32 %v791, %v648
    %795 = vset.pattern.permute.xlu0 0
    %796 = vperm.xlu0 %795, %v764
    %v797 = vpop.permute.xlu0 %796
    %v799 = vmul.f32 %v797, %v786
    %801 = vrot.lane.b32.xlu0 %v793, 64
    %v802 = vpop.permute.xlu0 %801
    %805 = vrot.lane.b32.xlu0 %v799, 96
    %v806 = vpop.permute.xlu0 %805
    %v808 = vsel %vm218, %v802, %v806
    %v810 = vsel %vm93, %v808, 0
    %812 = vmatprep.subr.mxu0 0.0
    %813 = vmatpush1.msra.mxu0 0.0
    %814 = vmatprep.subr.mxu0 0.0
    %815 = vmatpush1.msra.mxu0 0.0
    %816 = vmatprep.subr.mxu0 0.0
    %817 = vmatpush1.msra.mxu0 0.0
    %818 = vmatprep.subr.mxu0 0.0
    %819 = vmatpush1.msra.mxu0 0.0
    %820 = vmatprep.subr.mxu0 0.0
    %821 = vmatpush1.msra.mxu0 0.0
    %822 = vmatprep.subr.mxu0 0.0
    %823 = vmatpush1.msra.mxu0 0.0
    %824 = vmatprep.subr.mxu0 0.0
    %825 = vmatpush1.msra.mxu0 0.0
    %826 = vmatprep.subr.mxu0 0.0
    %827 = vmatpush1.msra.mxu0 0.0
    %828 = vmatprep.subr.mxu0 0.0
    %829 = vmatpush1.msra.mxu0 %v76
    %830 = vmatprep.subr.mxu0 0.0
    %831 = vmatpush1.msra.mxu0 %v75
    %832 = vmatprep.subr.mxu0 0.0
    %833 = vmatpush1.msra.mxu0 %v74
    %834 = vmatprep.subr.mxu0 0.0
    %835 = vmatpush1.msra.mxu0 %v73
    %836 = vmatprep.subr.mxu0 0.0
    %837 = vmatpush1.msra.mxu0 %v72
    %838 = vmatprep.subr.mxu0 0.0
    %839 = vmatpush1.msra.mxu0 %v71
    %840 = vmatprep.subr.mxu0 0.0
    %841 = vmatpush1.msra.mxu0 %v70
    %842 = vmatprep.subr.mxu0 0.0
    %843 = vmatpush1.msra.mxu0 %v69
    %844 = vmatprep.subr.mxu0 0.0
    %845 = vmatpush2.msra.mxu0 0.0
    %846 = vmatprep.subr.mxu0 0.0
    %847 = vmatpush2.msra.mxu0 0.0
    %848 = vmatprep.subr.mxu0 0.0
    %849 = vmatpush2.msra.mxu0 0.0
    %850 = vmatprep.subr.mxu0 0.0
    %851 = vmatpush2.msra.mxu0 0.0
    %852 = vmatprep.subr.mxu0 0.0
    %853 = vmatpush2.msra.mxu0 0.0
    %854 = vmatprep.subr.mxu0 0.0
    %855 = vmatpush2.msra.mxu0 0.0
    %856 = vmatprep.subr.mxu0 0.0
    %857 = vmatpush2.msra.mxu0 0.0
    %858 = vmatprep.subr.mxu0 0.0
    %859 = vmatpush2.msra.mxu0 0.0
    %860 = vmatprep.subr.mxu0 0.0
    %861 = vmatpush2.msra.mxu0 0.0
    %862 = vmatprep.subr.mxu0 0.0
    %863 = vmatpush2.msra.mxu0 0.0
    %864 = vmatprep.subr.mxu0 0.0
    %865 = vmatpush2.msra.mxu0 0.0
    %866 = vmatprep.subr.mxu0 0.0
    %867 = vmatpush2.msra.mxu0 0.0
    %868 = vmatprep.subr.mxu0 0.0
    %869 = vmatpush2.msra.mxu0 0.0
    %870 = vmatprep.subr.mxu0 0.0
    %871 = vmatpush2.msra.mxu0 0.0
    %872 = vmatprep.subr.mxu0 0.0
    %873 = vmatpush2.msra.mxu0 0.0
    %874 = vmatprep.subr.mxu0 0.0
    %875 = vmatpush2.msra.mxu0 0.0
    %876 = vmatprep.mubr.f32.mxu0 0.0
    %877 = vmatmul.mubr.f32.gmra.mxu0 %v810
    %v878 = vpop.f32.mrf.mxu0
    %v879 = vadd.f32 %v83, %v878
    %v880 = vpop.f32.mrf.mxu0
    %881 = vdwg.mxu0
    %v882 = vmul.f32 %v808, %v297
    %v883 = vsel %vm174, %v882, 0.0
    %884 = vadd.xlane.f32.xlu0 %v883
    %v885 = vpop.xlane.xlu0 %884
    %v886 = vadd.f32 %v885, %v90
    %v887 = vxor.u32 %v879, 2147483648
    %v888 = vmul.f32 %v887, 1.442695
    %v889 = vpow.pop %v888
    %v890 = vadd.f32 %v889, 1.0
    %v891 = vrcp.pop %v890
    %v892 = vmul.f32 1.0, %v891
    %v893 = vtanh.pop %v879
    %v894 = vadd.f32 %v886, 1.0
    %v895 = vmul.f32 %v894, 0.5
    %v896 = vmax.f32 %v895, 0.0
    %v897 = vmin.f32 %v896, 1.0
    %899 = vrot.lane.b32.xlu0 %v893, 64
    %v900 = vpop.permute.xlu0 %899
    %v902 = vmul.f32 %v892, %v900
    %v903 = vmul.f32 %v787, %v764
    %v904 = vsub.f32 %v787, %v903
    %v905 = vmul.f32 %v652, %v902
    %907 = vset.pattern.permute.xlu0 0
    %908 = vperm.xlu0 %907, %v904
    %v909 = vpop.permute.xlu0 %908
    %v911 = vmul.f32 %v909, %v633
    %v912 = vadd.f32 %v905, %v911
    %914 = vrot.lane.b32.xlu0 %v633, 96
    %v915 = vpop.permute.xlu0 %914
    %v917 = vmul.f32 %v892, %v915
    %919 = vrot.lane.b32.xlu0 %v902, 96
    %v920 = vpop.permute.xlu0 %919
    %v922 = vadd.f32 %v917, %v920
    %924 = vset.pattern.permute.xlu0 0
    %925 = vperm.xlu0 %924, %v903
    %v926 = vpop.permute.xlu0 %925
    %v928 = vmul.f32 %v926, %v922
    %930 = vrot.lane.b32.xlu0 %v928, 32
    %v931 = vpop.permute.xlu0 %930
    %v933 = vadd.f32 %v912, %v931
    %v934 = vsub.f32 1.0, %v904
    %936 = vset.pattern.permute.xlu0 0
    %937 = vperm.xlu0 %936, %v934
    %v938 = vpop.permute.xlu0 %937
    %v940 = vmul.f32 %v938, %v892
    %v941 = vtanh.pop %v933
    %943 = vrot.lane.b32.xlu0 %v941, 32
    %v944 = vpop.permute.xlu0 %943
    %v946 = vmul.f32 %v940, %v944
    %v947 = vmul.f32 %v909, %v648
    %v948 = vadd.f32 %v946, %v947
    %950 = vset.pattern.permute.xlu0 0
    %951 = vperm.xlu0 %950, %v897
    %v952 = vpop.permute.xlu0 %951
    %v954 = vmul.f32 %v948, %v952
    %v955 = vsub.f32 1.0, %v764
    %957 = vset.pattern.permute.xlu0 0
    %958 = vperm.xlu0 %957, %v955
    %v959 = vpop.permute.xlu0 %958
    %v961 = vmul.f32 %v959, %v786
    %v962 = vmul.f32 %v797, %v948
    %964 = vrot.lane.b32.xlu0 %v961, 64
    %v965 = vpop.permute.xlu0 %964
    %968 = vrot.lane.b32.xlu0 %v962, 96
    %v969 = vpop.permute.xlu0 %968
    %v971 = vsel %vm218, %v965, %v969
    %s972 = scalar_lea.vmem %s0, 6
    %v973 = vld [vmem:[%s972] sm:$0x3]
    %v975 = vsel %vm93, %v971, 0
    %977 = vmatprep.subr.mxu0 0.0
    %978 = vmatpush1.msra.mxu0 0.0
    %979 = vmatprep.subr.mxu0 0.0
    %980 = vmatpush1.msra.mxu0 0.0
    %981 = vmatprep.subr.mxu0 0.0
    %982 = vmatpush1.msra.mxu0 0.0
    %983 = vmatprep.subr.mxu0 0.0
    %984 = vmatpush1.msra.mxu0 0.0
    %985 = vmatprep.subr.mxu0 0.0
    %986 = vmatpush1.msra.mxu0 0.0
    %987 = vmatprep.subr.mxu0 0.0
    %988 = vmatpush1.msra.mxu0 0.0
    %989 = vmatprep.subr.mxu0 0.0
    %990 = vmatpush1.msra.mxu0 0.0
    %991 = vmatprep.subr.mxu0 0.0
    %992 = vmatpush1.msra.mxu0 0.0
    %993 = vmatprep.subr.mxu0 0.0
    %994 = vmatpush1.msra.mxu0 %v67
    %995 = vmatprep.subr.mxu0 0.0
    %996 = vmatpush1.msra.mxu0 %v66
    %997 = vmatprep.subr.mxu0 0.0
    %998 = vmatpush1.msra.mxu0 %v65
    %999 = vmatprep.subr.mxu0 0.0
    %1000 = vmatpush1.msra.mxu0 %v64
    %1001 = vmatprep.subr.mxu0 0.0
    %1002 = vmatpush1.msra.mxu0 %v63
    %1003 = vmatprep.subr.mxu0 0.0
    %1004 = vmatpush1.msra.mxu0 %v62
    %1005 = vmatprep.subr.mxu0 0.0
    %1006 = vmatpush1.msra.mxu0 %v61
    %1007 = vmatprep.subr.mxu0 0.0
    %1008 = vmatpush1.msra.mxu0 %v60
    %1009 = vmatprep.subr.mxu0 0.0
    %1010 = vmatpush2.msra.mxu0 0.0
    %1011 = vmatprep.subr.mxu0 0.0
    %1012 = vmatpush2.msra.mxu0 0.0
    %1013 = vmatprep.subr.mxu0 0.0
    %1014 = vmatpush2.msra.mxu0 0.0
    %1015 = vmatprep.subr.mxu0 0.0
    %1016 = vmatpush2.msra.mxu0 0.0
    %1017 = vmatprep.subr.mxu0 0.0
    %1018 = vmatpush2.msra.mxu0 0.0
    %1019 = vmatprep.subr.mxu0 0.0
    %1020 = vmatpush2.msra.mxu0 0.0
    %1021 = vmatprep.subr.mxu0 0.0
    %1022 = vmatpush2.msra.mxu0 0.0
    %1023 = vmatprep.subr.mxu0 0.0
    %1024 = vmatpush2.msra.mxu0 0.0
    %1025 = vmatprep.subr.mxu0 0.0
    %1026 = vmatpush2.msra.mxu0 0.0
    %1027 = vmatprep.subr.mxu0 0.0
    %1028 = vmatpush2.msra.mxu0 0.0
    %1029 = vmatprep.subr.mxu0 0.0
    %1030 = vmatpush2.msra.mxu0 0.0
    %1031 = vmatprep.subr.mxu0 0.0
    %1032 = vmatpush2.msra.mxu0 0.0
    %1033 = vmatprep.subr.mxu0 0.0
    %1034 = vmatpush2.msra.mxu0 0.0
    %1035 = vmatprep.subr.mxu0 0.0
    %1036 = vmatpush2.msra.mxu0 0.0
    %1037 = vmatprep.subr.mxu0 0.0
    %1038 = vmatpush2.msra.mxu0 0.0
    %1039 = vmatprep.subr.mxu0 0.0
    %1040 = vmatpush2.msra.mxu0 0.0
    %1041 = vmatprep.mubr.f32.mxu0 0.0
    %1042 = vmatmul.mubr.f32.gmra.mxu0 %v975
    %v1043 = vpop.f32.mrf.mxu0
    %v1044 = vadd.f32 %v973, %v1043
    %v1045 = vpop.f32.mrf.mxu0
    %1046 = vdwg.mxu0
    %v1047 = vmul.f32 %v971, %v171
    %v1048 = vsel %vm174, %v1047, 0.0
    %1049 = vadd.xlane.f32.xlu0 %v1048
    %v1050 = vpop.xlane.xlu0 %1049
    %s1051 = scalar_lea.vmem %s1, 6
    %v1052 = vld [vmem:[%s1051] sm:$0x3]
    %v1053 = vadd.f32 %v1050, %v1052
    %v1054 = vxor.u32 %v1044, 2147483648
    %v1055 = vmul.f32 %v1054, 1.442695
    %v1056 = vpow.pop %v1055
    %v1057 = vadd.f32 %v1056, 1.0
    %v1058 = vrcp.pop %v1057
    %v1059 = vmul.f32 1.0, %v1058
    %v1060 = vtanh.pop %v1044
    %v1061 = vadd.f32 %v1053, 1.0
    %v1062 = vmul.f32 %v1061, 0.5
    %v1063 = vmax.f32 %v1062, 0.0
    %v1064 = vmin.f32 %v1063, 1.0
    %1066 = vrot.lane.b32.xlu0 %v1060, 64
    %v1067 = vpop.permute.xlu0 %1066
    %v1069 = vmul.f32 %v1059, %v1067
    %1071 = vrot.lane.b32.xlu0 %v780, 96
    %v1072 = vpop.permute.xlu0 %1071
    %v1074 = vmul.f32 %v1059, %v1072
    %v1075 = vmul.f32 %v959, %v1074
    %1077 = vrot.lane.b32.xlu0 %v1075, 32
    %v1078 = vpop.permute.xlu0 %1077
    %v1080 = vadd.f32 %v1069, %v1078
    %v1081 = vtanh.pop %v1080
    %1083 = vrot.lane.b32.xlu0 %v1081, 32
    %v1084 = vpop.permute.xlu0 %1083
    %v1086 = vmul.f32 %v1059, %v1084
    %v1087 = vsub.f32 1.0, %v897
    %1089 = vset.pattern.permute.xlu0 0
    %1090 = vperm.xlu0 %1089, %v1087
    %v1091 = vpop.permute.xlu0 %1090
    %v1093 = vmul.f32 %v1091, %v948
    %1095 = vset.pattern.permute.xlu0 0
    %1096 = vperm.xlu0 %1095, %v1064
    %v1097 = vpop.permute.xlu0 %1096
    %v1099 = vmul.f32 %v1097, %v1086
    %1101 = vrot.lane.b32.xlu0 %v1093, 64
    %v1102 = vpop.permute.xlu0 %1101
    %1105 = vrot.lane.b32.xlu0 %v1099, 96
    %v1106 = vpop.permute.xlu0 %1105
    %v1108 = vsel %vm218, %v1102, %v1106
    %v1110 = vsel %vm93, %v1108, 0
    %1112 = vmatprep.subr.mxu0 0.0
    %1113 = vmatpush1.msra.mxu0 0.0
    %1114 = vmatprep.subr.mxu0 0.0
    %1115 = vmatpush1.msra.mxu0 0.0
    %1116 = vmatprep.subr.mxu0 0.0
    %1117 = vmatpush1.msra.mxu0 0.0
    %1118 = vmatprep.subr.mxu0 0.0
    %1119 = vmatpush1.msra.mxu0 0.0
    %1120 = vmatprep.subr.mxu0 0.0
    %1121 = vmatpush1.msra.mxu0 0.0
    %1122 = vmatprep.subr.mxu0 0.0
    %1123 = vmatpush1.msra.mxu0 0.0
    %1124 = vmatprep.subr.mxu0 0.0
    %1125 = vmatpush1.msra.mxu0 0.0
    %1126 = vmatprep.subr.mxu0 0.0
    %1127 = vmatpush1.msra.mxu0 0.0
    %1128 = vmatprep.subr.mxu0 0.0
    %1129 = vmatpush1.msra.mxu0 %v76
    %1130 = vmatprep.subr.mxu0 0.0
    %1131 = vmatpush1.msra.mxu0 %v75
    %1132 = vmatprep.subr.mxu0 0.0
    %1133 = vmatpush1.msra.mxu0 %v74
    %1134 = vmatprep.subr.mxu0 0.0
    %1135 = vmatpush1.msra.mxu0 %v73
    %1136 = vmatprep.subr.mxu0 0.0
    %1137 = vmatpush1.msra.mxu0 %v72
    %1138 = vmatprep.subr.mxu0 0.0
    %1139 = vmatpush1.msra.mxu0 %v71
    %1140 = vmatprep.subr.mxu0 0.0
    %1141 = vmatpush1.msra.mxu0 %v70
    %1142 = vmatprep.subr.mxu0 0.0
    %1143 = vmatpush1.msra.mxu0 %v69
    %1144 = vmatprep.subr.mxu0 0.0
    %1145 = vmatpush2.msra.mxu0 0.0
    %1146 = vmatprep.subr.mxu0 0.0
    %1147 = vmatpush2.msra.mxu0 0.0
    %1148 = vmatprep.subr.mxu0 0.0
    %1149 = vmatpush2.msra.mxu0 0.0
    %1150 = vmatprep.subr.mxu0 0.0
    %1151 = vmatpush2.msra.mxu0 0.0
    %1152 = vmatprep.subr.mxu0 0.0
    %1153 = vmatpush2.msra.mxu0 0.0
    %1154 = vmatprep.subr.mxu0 0.0
    %1155 = vmatpush2.msra.mxu0 0.0
    %1156 = vmatprep.subr.mxu0 0.0
    %1157 = vmatpush2.msra.mxu0 0.0
    %1158 = vmatprep.subr.mxu0 0.0
    %1159 = vmatpush2.msra.mxu0 0.0
    %1160 = vmatprep.subr.mxu0 0.0
    %1161 = vmatpush2.msra.mxu0 0.0
    %1162 = vmatprep.subr.mxu0 0.0
    %1163 = vmatpush2.msra.mxu0 0.0
    %1164 = vmatprep.subr.mxu0 0.0
    %1165 = vmatpush2.msra.mxu0 0.0
    %1166 = vmatprep.subr.mxu0 0.0
    %1167 = vmatpush2.msra.mxu0 0.0
    %1168 = vmatprep.subr.mxu0 0.0
    %1169 = vmatpush2.msra.mxu0 0.0
    %1170 = vmatprep.subr.mxu0 0.0
    %1171 = vmatpush2.msra.mxu0 0.0
    %1172 = vmatprep.subr.mxu0 0.0
    %1173 = vmatpush2.msra.mxu0 0.0
    %1174 = vmatprep.subr.mxu0 0.0
    %1175 = vmatpush2.msra.mxu0 0.0
    %1176 = vmatprep.mubr.f32.mxu0 0.0
    %1177 = vmatmul.mubr.f32.gmra.mxu0 %v1110
    %v1178 = vpop.f32.mrf.mxu0
    %v1179 = vadd.f32 %v83, %v1178
    %v1180 = vpop.f32.mrf.mxu0
    %1181 = vdwg.mxu0
    %v1182 = vmul.f32 %v1108, %v297
    %v1183 = vsel %vm174, %v1182, 0.0
    %1184 = vadd.xlane.f32.xlu0 %v1183
    %v1185 = vpop.xlane.xlu0 %1184
    %v1186 = vadd.f32 %v1185, %v90
    %v1187 = vxor.u32 %v1179, 2147483648
    %v1188 = vmul.f32 %v1187, 1.442695
    %v1189 = vpow.pop %v1188
    %v1190 = vadd.f32 %v1189, 1.0
    %v1191 = vrcp.pop %v1190
    %v1192 = vmul.f32 1.0, %v1191
    %v1193 = vtanh.pop %v1179
    %v1194 = vadd.f32 %v1186, 1.0
    %v1195 = vmul.f32 %v1194, 0.5
    %v1196 = vmax.f32 %v1195, 0.0
    %v1197 = vmin.f32 %v1196, 1.0
    %1199 = vrot.lane.b32.xlu0 %v1193, 64
    %v1200 = vpop.permute.xlu0 %1199
    %v1202 = vmul.f32 %v1192, %v1200
    %v1203 = vmul.f32 %v1087, %v1064
    %v1204 = vsub.f32 %v1087, %v1203
    %v1205 = vmul.f32 %v952, %v1202
    %1207 = vset.pattern.permute.xlu0 0
    %1208 = vperm.xlu0 %1207, %v1204
    %v1209 = vpop.permute.xlu0 %1208
    %v1211 = vmul.f32 %v1209, %v933
    %v1212 = vadd.f32 %v1205, %v1211
    %1214 = vrot.lane.b32.xlu0 %v933, 96
    %v1215 = vpop.permute.xlu0 %1214
    %v1217 = vmul.f32 %v1192, %v1215
    %1219 = vrot.lane.b32.xlu0 %v1202, 96
    %v1220 = vpop.permute.xlu0 %1219
    %v1222 = vadd.f32 %v1217, %v1220
    %1224 = vset.pattern.permute.xlu0 0
    %1225 = vperm.xlu0 %1224, %v1203
    %v1226 = vpop.permute.xlu0 %1225
    %v1228 = vmul.f32 %v1226, %v1222
    %1230 = vrot.lane.b32.xlu0 %v1228, 32
    %v1231 = vpop.permute.xlu0 %1230
    %v1233 = vadd.f32 %v1212, %v1231
    %v1234 = vsub.f32 1.0, %v1204
    %1236 = vset.pattern.permute.xlu0 0
    %1237 = vperm.xlu0 %1236, %v1234
    %v1238 = vpop.permute.xlu0 %1237
    %v1240 = vmul.f32 %v1238, %v1192
    %v1241 = vtanh.pop %v1233
    %1243 = vrot.lane.b32.xlu0 %v1241, 32
    %v1244 = vpop.permute.xlu0 %1243
    %v1246 = vmul.f32 %v1240, %v1244
    %v1247 = vmul.f32 %v1209, %v948
    %v1248 = vadd.f32 %v1246, %v1247
    %1250 = vset.pattern.permute.xlu0 0
    %1251 = vperm.xlu0 %1250, %v1197
    %v1252 = vpop.permute.xlu0 %1251
    %v1254 = vmul.f32 %v1248, %v1252
    %1256 = vrot.lane.b32.xlu0 %v360, 64
    %v1257 = vpop.permute.xlu0 %1256
    %1260 = vrot.lane.b32.xlu0 %v654, 96
    %v1261 = vpop.permute.xlu0 %1260
    %1264 = vrot.lane.b32.xlu0 %v1254, 32
    %v1265 = vpop.permute.xlu0 %1264
    %v1267 = vsel %vm218, %v1257, %v1261
    %v1268 = vsel %vm93, %v1267, %v954
    %vm1269 = vcmask 785408
    %v1270 = vsel %vm1269, %v1268, %v1265
    %1271 = vst [vmem:[#allocation8] sm:$0x3] %v1270
    %v1272 = vsub.f32 1.0, %v1064
    %1274 = vset.pattern.permute.xlu0 0
    %1275 = vperm.xlu0 %1274, %v1272
    %v1276 = vpop.permute.xlu0 %1275
    %v1278 = vmul.f32 %v1276, %v1086
    %v1279 = vmul.f32 %v1097, %v1248
    %1281 = vrot.lane.b32.xlu0 %v1278, 64
    %v1282 = vpop.permute.xlu0 %1281
    %1285 = vrot.lane.b32.xlu0 %v1279, 96
    %v1286 = vpop.permute.xlu0 %1285
    %v1288 = vsel %vm218, %v1282, %v1286
    %s1289 = scalar_lea.vmem %s0, 8
    %v1290 = vld [vmem:[%s1289] sm:$0x3]
    %v1292 = vsel %vm93, %v1288, 0
    %1294 = vmatprep.subr.mxu0 0.0
    %1295 = vmatpush1.msra.mxu0 0.0
    %1296 = vmatprep.subr.mxu0 0.0
    %1297 = vmatpush1.msra.mxu0 0.0
    %1298 = vmatprep.subr.mxu0 0.0
    %1299 = vmatpush1.msra.mxu0 0.0
    %1300 = vmatprep.subr.mxu0 0.0
    %1301 = vmatpush1.msra.mxu0 0.0
    %1302 = vmatprep.subr.mxu0 0.0
    %1303 = vmatpush1.msra.mxu0 0.0
    %1304 = vmatprep.subr.mxu0 0.0
    %1305 = vmatpush1.msra.mxu0 0.0
    %1306 = vmatprep.subr.mxu0 0.0
    %1307 = vmatpush1.msra.mxu0 0.0
    %1308 = vmatprep.subr.mxu0 0.0
    %1309 = vmatpush1.msra.mxu0 0.0
    %1310 = vmatprep.subr.mxu0 0.0
    %1311 = vmatpush1.msra.mxu0 %v67
    %1312 = vmatprep.subr.mxu0 0.0
    %1313 = vmatpush1.msra.mxu0 %v66
    %1314 = vmatprep.subr.mxu0 0.0
    %1315 = vmatpush1.msra.mxu0 %v65
    %1316 = vmatprep.subr.mxu0 0.0
    %1317 = vmatpush1.msra.mxu0 %v64
    %1318 = vmatprep.subr.mxu0 0.0
    %1319 = vmatpush1.msra.mxu0 %v63
    %1320 = vmatprep.subr.mxu0 0.0
    %1321 = vmatpush1.msra.mxu0 %v62
    %1322 = vmatprep.subr.mxu0 0.0
    %1323 = vmatpush1.msra.mxu0 %v61
    %1324 = vmatprep.subr.mxu0 0.0
    %1325 = vmatpush1.msra.mxu0 %v60
    %1326 = vmatprep.subr.mxu0 0.0
    %1327 = vmatpush2.msra.mxu0 0.0
    %1328 = vmatprep.subr.mxu0 0.0
    %1329 = vmatpush2.msra.mxu0 0.0
    %1330 = vmatprep.subr.mxu0 0.0
    %1331 = vmatpush2.msra.mxu0 0.0
    %1332 = vmatprep.subr.mxu0 0.0
    %1333 = vmatpush2.msra.mxu0 0.0
    %1334 = vmatprep.subr.mxu0 0.0
    %1335 = vmatpush2.msra.mxu0 0.0
    %1336 = vmatprep.subr.mxu0 0.0
    %1337 = vmatpush2.msra.mxu0 0.0
    %1338 = vmatprep.subr.mxu0 0.0
    %1339 = vmatpush2.msra.mxu0 0.0
    %1340 = vmatprep.subr.mxu0 0.0
    %1341 = vmatpush2.msra.mxu0 0.0
    %1342 = vmatprep.subr.mxu0 0.0
    %1343 = vmatpush2.msra.mxu0 0.0
    %1344 = vmatprep.subr.mxu0 0.0
    %1345 = vmatpush2.msra.mxu0 0.0
    %1346 = vmatprep.subr.mxu0 0.0
    %1347 = vmatpush2.msra.mxu0 0.0
    %1348 = vmatprep.subr.mxu0 0.0
    %1349 = vmatpush2.msra.mxu0 0.0
    %1350 = vmatprep.subr.mxu0 0.0
    %1351 = vmatpush2.msra.mxu0 0.0
    %1352 = vmatprep.subr.mxu0 0.0
    %1353 = vmatpush2.msra.mxu0 0.0
    %1354 = vmatprep.subr.mxu0 0.0
    %1355 = vmatpush2.msra.mxu0 0.0
    %1356 = vmatprep.subr.mxu0 0.0
    %1357 = vmatpush2.msra.mxu0 0.0
    %1358 = vmatprep.mubr.f32.mxu0 0.0
    %1359 = vmatmul.mubr.f32.gmra.mxu0 %v1292
    %v1360 = vpop.f32.mrf.mxu0
    %v1361 = vadd.f32 %v1290, %v1360
    %v1362 = vpop.f32.mrf.mxu0
    %1363 = vdwg.mxu0
    %v1364 = vmul.f32 %v1288, %v171
    %v1365 = vsel %vm174, %v1364, 0.0
    %1366 = vadd.xlane.f32.xlu0 %v1365
    %v1367 = vpop.xlane.xlu0 %1366
    %s1368 = scalar_lea.vmem %s1, 8
    %v1369 = vld [vmem:[%s1368] sm:$0x3]
    %v1370 = vadd.f32 %v1367, %v1369
    %v1371 = vxor.u32 %v1361, 2147483648
    %v1372 = vmul.f32 %v1371, 1.442695
    %v1373 = vpow.pop %v1372
    %v1374 = vadd.f32 %v1373, 1.0
    %v1375 = vrcp.pop %v1374
    %v1376 = vmul.f32 1.0, %v1375
    %v1377 = vtanh.pop %v1361
    %v1378 = vadd.f32 %v1370, 1.0
    %v1379 = vmul.f32 %v1378, 0.5
    %v1380 = vmax.f32 %v1379, 0.0
    %v1381 = vmin.f32 %v1380, 1.0
    %1383 = vrot.lane.b32.xlu0 %v1377, 64
    %v1384 = vpop.permute.xlu0 %1383
    %v1386 = vmul.f32 %v1376, %v1384
    %1388 = vrot.lane.b32.xlu0 %v1080, 96
    %v1389 = vpop.permute.xlu0 %1388
    %v1391 = vmul.f32 %v1376, %v1389
    %v1392 = vmul.f32 %v1276, %v1391
    %1394 = vrot.lane.b32.xlu0 %v1392, 32
    %v1395 = vpop.permute.xlu0 %1394
    %v1397 = vadd.f32 %v1386, %v1395
    %v1398 = vtanh.pop %v1397
    %1400 = vrot.lane.b32.xlu0 %v1398, 32
    %v1401 = vpop.permute.xlu0 %1400
    %v1403 = vmul.f32 %v1376, %v1401
    %v1404 = vsub.f32 1.0, %v1197
    %1406 = vset.pattern.permute.xlu0 0
    %1407 = vperm.xlu0 %1406, %v1404
    %v1408 = vpop.permute.xlu0 %1407
    %v1410 = vmul.f32 %v1408, %v1248
    %1412 = vset.pattern.permute.xlu0 0
    %1413 = vperm.xlu0 %1412, %v1381
    %v1414 = vpop.permute.xlu0 %1413
    %v1416 = vmul.f32 %v1414, %v1403
    %1418 = vrot.lane.b32.xlu0 %v1410, 64
    %v1419 = vpop.permute.xlu0 %1418
    %1422 = vrot.lane.b32.xlu0 %v1416, 96
    %v1423 = vpop.permute.xlu0 %1422
    %v1425 = vsel %vm218, %v1419, %v1423
    %v1427 = vsel %vm93, %v1425, 0
    %1429 = vmatprep.subr.mxu0 0.0
    %1430 = vmatpush1.msra.mxu0 0.0
    %1431 = vmatprep.subr.mxu0 0.0
    %1432 = vmatpush1.msra.mxu0 0.0
    %1433 = vmatprep.subr.mxu0 0.0
    %1434 = vmatpush1.msra.mxu0 0.0
    %1435 = vmatprep.subr.mxu0 0.0
    %1436 = vmatpush1.msra.mxu0 0.0
    %1437 = vmatprep.subr.mxu0 0.0
    %1438 = vmatpush1.msra.mxu0 0.0
    %1439 = vmatprep.subr.mxu0 0.0
    %1440 = vmatpush1.msra.mxu0 0.0
    %1441 = vmatprep.subr.mxu0 0.0
    %1442 = vmatpush1.msra.mxu0 0.0
    %1443 = vmatprep.subr.mxu0 0.0
    %1444 = vmatpush1.msra.mxu0 0.0
    %1445 = vmatprep.subr.mxu0 0.0
    %1446 = vmatpush1.msra.mxu0 %v76
    %1447 = vmatprep.subr.mxu0 0.0
    %1448 = vmatpush1.msra.mxu0 %v75
    %1449 = vmatprep.subr.mxu0 0.0
    %1450 = vmatpush1.msra.mxu0 %v74
    %1451 = vmatprep.subr.mxu0 0.0
    %1452 = vmatpush1.msra.mxu0 %v73
    %1453 = vmatprep.subr.mxu0 0.0
    %1454 = vmatpush1.msra.mxu0 %v72
    %1455 = vmatprep.subr.mxu0 0.0
    %1456 = vmatpush1.msra.mxu0 %v71
    %1457 = vmatprep.subr.mxu0 0.0
    %1458 = vmatpush1.msra.mxu0 %v70
    %1459 = vmatprep.subr.mxu0 0.0
    %1460 = vmatpush1.msra.mxu0 %v69
    %1461 = vmatprep.subr.mxu0 0.0
    %1462 = vmatpush2.msra.mxu0 0.0
    %1463 = vmatprep.subr.mxu0 0.0
    %1464 = vmatpush2.msra.mxu0 0.0
    %1465 = vmatprep.subr.mxu0 0.0
    %1466 = vmatpush2.msra.mxu0 0.0
    %1467 = vmatprep.subr.mxu0 0.0
    %1468 = vmatpush2.msra.mxu0 0.0
    %1469 = vmatprep.subr.mxu0 0.0
    %1470 = vmatpush2.msra.mxu0 0.0
    %1471 = vmatprep.subr.mxu0 0.0
    %1472 = vmatpush2.msra.mxu0 0.0
    %1473 = vmatprep.subr.mxu0 0.0
    %1474 = vmatpush2.msra.mxu0 0.0
    %1475 = vmatprep.subr.mxu0 0.0
    %1476 = vmatpush2.msra.mxu0 0.0
    %1477 = vmatprep.subr.mxu0 0.0
    %1478 = vmatpush2.msra.mxu0 0.0
    %1479 = vmatprep.subr.mxu0 0.0
    %1480 = vmatpush2.msra.mxu0 0.0
    %1481 = vmatprep.subr.mxu0 0.0
    %1482 = vmatpush2.msra.mxu0 0.0
    %1483 = vmatprep.subr.mxu0 0.0
    %1484 = vmatpush2.msra.mxu0 0.0
    %1485 = vmatprep.subr.mxu0 0.0
    %1486 = vmatpush2.msra.mxu0 0.0
    %1487 = vmatprep.subr.mxu0 0.0
    %1488 = vmatpush2.msra.mxu0 0.0
    %1489 = vmatprep.subr.mxu0 0.0
    %1490 = vmatpush2.msra.mxu0 0.0
    %1491 = vmatprep.subr.mxu0 0.0
    %1492 = vmatpush2.msra.mxu0 0.0
    %1493 = vmatprep.mubr.f32.mxu0 0.0
    %1494 = vmatmul.mubr.f32.gmra.mxu0 %v1427
    %v1495 = vpop.f32.mrf.mxu0
    %v1496 = vadd.f32 %v83, %v1495
    %v1497 = vpop.f32.mrf.mxu0
    %1498 = vdwg.mxu0
    %v1499 = vmul.f32 %v1425, %v297
    %v1500 = vsel %vm174, %v1499, 0.0
    %1501 = vadd.xlane.f32.xlu0 %v1500
    %v1502 = vpop.xlane.xlu0 %1501
    %v1503 = vadd.f32 %v1502, %v90
    %v1504 = vxor.u32 %v1496, 2147483648
    %v1505 = vmul.f32 %v1504, 1.442695
    %v1506 = vpow.pop %v1505
    %v1507 = vadd.f32 %v1506, 1.0
    %v1508 = vrcp.pop %v1507
    %v1509 = vmul.f32 1.0, %v1508
    %v1510 = vtanh.pop %v1496
    %v1511 = vadd.f32 %v1503, 1.0
    %v1512 = vmul.f32 %v1511, 0.5
    %v1513 = vmax.f32 %v1512, 0.0
    %v1514 = vmin.f32 %v1513, 1.0
    %1516 = vrot.lane.b32.xlu0 %v1510, 64
    %v1517 = vpop.permute.xlu0 %1516
    %v1519 = vmul.f32 %v1509, %v1517
    %v1520 = vmul.f32 %v1404, %v1381
    %v1521 = vsub.f32 %v1404, %v1520
    %v1522 = vmul.f32 %v1252, %v1519
    %1524 = vset.pattern.permute.xlu0 0
    %1525 = vperm.xlu0 %1524, %v1521
    %v1526 = vpop.permute.xlu0 %1525
    %v1528 = vmul.f32 %v1526, %v1233
    %v1529 = vadd.f32 %v1522, %v1528
    %1531 = vrot.lane.b32.xlu0 %v1233, 96
    %v1532 = vpop.permute.xlu0 %1531
    %v1534 = vmul.f32 %v1509, %v1532
    %1536 = vrot.lane.b32.xlu0 %v1519, 96
    %v1537 = vpop.permute.xlu0 %1536
    %v1539 = vadd.f32 %v1534, %v1537
    %1541 = vset.pattern.permute.xlu0 0
    %1542 = vperm.xlu0 %1541, %v1520
    %v1543 = vpop.permute.xlu0 %1542
    %v1545 = vmul.f32 %v1543, %v1539
    %1547 = vrot.lane.b32.xlu0 %v1545, 32
    %v1548 = vpop.permute.xlu0 %1547
    %v1550 = vadd.f32 %v1529, %v1548
    %v1551 = vsub.f32 1.0, %v1521
    %1553 = vset.pattern.permute.xlu0 0
    %1554 = vperm.xlu0 %1553, %v1551
    %v1555 = vpop.permute.xlu0 %1554
    %v1557 = vmul.f32 %v1555, %v1509
    %v1558 = vtanh.pop %v1550
    %1560 = vrot.lane.b32.xlu0 %v1558, 32
    %v1561 = vpop.permute.xlu0 %1560
    %v1563 = vmul.f32 %v1557, %v1561
    %v1564 = vmul.f32 %v1526, %v1248
    %v1565 = vadd.f32 %v1563, %v1564
    %1567 = vset.pattern.permute.xlu0 0
    %1568 = vperm.xlu0 %1567, %v1514
    %v1569 = vpop.permute.xlu0 %1568
    %v1571 = vmul.f32 %v1565, %v1569
    %v1572 = vsub.f32 1.0, %v1381
    %1574 = vset.pattern.permute.xlu0 0
    %1575 = vperm.xlu0 %1574, %v1572
    %v1576 = vpop.permute.xlu0 %1575
    %v1578 = vmul.f32 %v1576, %v1403
    %v1579 = vmul.f32 %v1414, %v1565
    %1581 = vrot.lane.b32.xlu0 %v1578, 64
    %v1582 = vpop.permute.xlu0 %1581
    %1585 = vrot.lane.b32.xlu0 %v1579, 96
    %v1586 = vpop.permute.xlu0 %1585
    %v1588 = vsel %vm218, %v1582, %v1586
    %s1589 = scalar_lea.vmem %s0, 10
    %v1590 = vld [vmem:[%s1589] sm:$0x3]
    %v1592 = vsel %vm93, %v1588, 0
    %1594 = vmatprep.subr.mxu0 0.0
    %1595 = vmatpush1.msra.mxu0 0.0
    %1596 = vmatprep.subr.mxu0 0.0
    %1597 = vmatpush1.msra.mxu0 0.0
    %1598 = vmatprep.subr.mxu0 0.0
    %1599 = vmatpush1.msra.mxu0 0.0
    %1600 = vmatprep.subr.mxu0 0.0
    %1601 = vmatpush1.msra.mxu0 0.0
    %1602 = vmatprep.subr.mxu0 0.0
    %1603 = vmatpush1.msra.mxu0 0.0
    %1604 = vmatprep.subr.mxu0 0.0
    %1605 = vmatpush1.msra.mxu0 0.0
    %1606 = vmatprep.subr.mxu0 0.0
    %1607 = vmatpush1.msra.mxu0 0.0
    %1608 = vmatprep.subr.mxu0 0.0
    %1609 = vmatpush1.msra.mxu0 0.0
    %1610 = vmatprep.subr.mxu0 0.0
    %1611 = vmatpush1.msra.mxu0 %v67
    %1612 = vmatprep.subr.mxu0 0.0
    %1613 = vmatpush1.msra.mxu0 %v66
    %1614 = vmatprep.subr.mxu0 0.0
    %1615 = vmatpush1.msra.mxu0 %v65
    %1616 = vmatprep.subr.mxu0 0.0
    %1617 = vmatpush1.msra.mxu0 %v64
    %1618 = vmatprep.subr.mxu0 0.0
    %1619 = vmatpush1.msra.mxu0 %v63
    %1620 = vmatprep.subr.mxu0 0.0
    %1621 = vmatpush1.msra.mxu0 %v62
    %1622 = vmatprep.subr.mxu0 0.0
    %1623 = vmatpush1.msra.mxu0 %v61
    %1624 = vmatprep.subr.mxu0 0.0
    %1625 = vmatpush1.msra.mxu0 %v60
    %1626 = vmatprep.subr.mxu0 0.0
    %1627 = vmatpush2.msra.mxu0 0.0
    %1628 = vmatprep.subr.mxu0 0.0
    %1629 = vmatpush2.msra.mxu0 0.0
    %1630 = vmatprep.subr.mxu0 0.0
    %1631 = vmatpush2.msra.mxu0 0.0
    %1632 = vmatprep.subr.mxu0 0.0
    %1633 = vmatpush2.msra.mxu0 0.0
    %1634 = vmatprep.subr.mxu0 0.0
    %1635 = vmatpush2.msra.mxu0 0.0
    %1636 = vmatprep.subr.mxu0 0.0
    %1637 = vmatpush2.msra.mxu0 0.0
    %1638 = vmatprep.subr.mxu0 0.0
    %1639 = vmatpush2.msra.mxu0 0.0
    %1640 = vmatprep.subr.mxu0 0.0
    %1641 = vmatpush2.msra.mxu0 0.0
    %1642 = vmatprep.subr.mxu0 0.0
    %1643 = vmatpush2.msra.mxu0 0.0
    %1644 = vmatprep.subr.mxu0 0.0
    %1645 = vmatpush2.msra.mxu0 0.0
    %1646 = vmatprep.subr.mxu0 0.0
    %1647 = vmatpush2.msra.mxu0 0.0
    %1648 = vmatprep.subr.mxu0 0.0
    %1649 = vmatpush2.msra.mxu0 0.0
    %1650 = vmatprep.subr.mxu0 0.0
    %1651 = vmatpush2.msra.mxu0 0.0
    %1652 = vmatprep.subr.mxu0 0.0
    %1653 = vmatpush2.msra.mxu0 0.0
    %1654 = vmatprep.subr.mxu0 0.0
    %1655 = vmatpush2.msra.mxu0 0.0
    %1656 = vmatprep.subr.mxu0 0.0
    %1657 = vmatpush2.msra.mxu0 0.0
    %1658 = vmatprep.mubr.f32.mxu0 0.0
    %1659 = vmatmul.mubr.f32.gmra.mxu0 %v1592
    %v1660 = vpop.f32.mrf.mxu0
    %v1661 = vadd.f32 %v1590, %v1660
    %v1662 = vpop.f32.mrf.mxu0
    %1663 = vdwg.mxu0
    %v1664 = vmul.f32 %v1588, %v171
    %v1665 = vsel %vm174, %v1664, 0.0
    %1666 = vadd.xlane.f32.xlu0 %v1665
    %v1667 = vpop.xlane.xlu0 %1666
    %s1668 = scalar_lea.vmem %s1, 10
    %v1669 = vld [vmem:[%s1668] sm:$0x3]
    %v1670 = vadd.f32 %v1667, %v1669
    %v1671 = vxor.u32 %v1661, 2147483648
    %v1672 = vmul.f32 %v1671, 1.442695
    %v1673 = vpow.pop %v1672
    %v1674 = vadd.f32 %v1673, 1.0
    %v1675 = vrcp.pop %v1674
    %v1676 = vmul.f32 1.0, %v1675
    %v1677 = vtanh.pop %v1661
    %v1678 = vadd.f32 %v1670, 1.0
    %v1679 = vmul.f32 %v1678, 0.5
    %v1680 = vmax.f32 %v1679, 0.0
    %v1681 = vmin.f32 %v1680, 1.0
    %1683 = vrot.lane.b32.xlu0 %v1677, 64
    %v1684 = vpop.permute.xlu0 %1683
    %v1686 = vmul.f32 %v1676, %v1684
    %1688 = vrot.lane.b32.xlu0 %v1397, 96
    %v1689 = vpop.permute.xlu0 %1688
    %v1691 = vmul.f32 %v1676, %v1689
    %v1692 = vmul.f32 %v1576, %v1691
    %1694 = vrot.lane.b32.xlu0 %v1692, 32
    %v1695 = vpop.permute.xlu0 %1694
    %v1697 = vadd.f32 %v1686, %v1695
    %v1698 = vtanh.pop %v1697
    %1700 = vrot.lane.b32.xlu0 %v1698, 32
    %v1701 = vpop.permute.xlu0 %1700
    %v1703 = vmul.f32 %v1676, %v1701
    %v1704 = vsub.f32 1.0, %v1514
    %1706 = vset.pattern.permute.xlu0 0
    %1707 = vperm.xlu0 %1706, %v1704
    %v1708 = vpop.permute.xlu0 %1707
    %v1710 = vmul.f32 %v1708, %v1565
    %1712 = vset.pattern.permute.xlu0 0
    %1713 = vperm.xlu0 %1712, %v1681
    %v1714 = vpop.permute.xlu0 %1713
    %v1716 = vmul.f32 %v1714, %v1703
    %1718 = vrot.lane.b32.xlu0 %v1710, 64
    %v1719 = vpop.permute.xlu0 %1718
    %1722 = vrot.lane.b32.xlu0 %v1716, 96
    %v1723 = vpop.permute.xlu0 %1722
    %v1725 = vsel %vm218, %v1719, %v1723
    %v1727 = vsel %vm93, %v1725, 0
    %1729 = vmatprep.subr.mxu0 0.0
    %1730 = vmatpush1.msra.mxu0 0.0
    %1731 = vmatprep.subr.mxu0 0.0
    %1732 = vmatpush1.msra.mxu0 0.0
    %1733 = vmatprep.subr.mxu0 0.0
    %1734 = vmatpush1.msra.mxu0 0.0
    %1735 = vmatprep.subr.mxu0 0.0
    %1736 = vmatpush1.msra.mxu0 0.0
    %1737 = vmatprep.subr.mxu0 0.0
    %1738 = vmatpush1.msra.mxu0 0.0
    %1739 = vmatprep.subr.mxu0 0.0
    %1740 = vmatpush1.msra.mxu0 0.0
    %1741 = vmatprep.subr.mxu0 0.0
    %1742 = vmatpush1.msra.mxu0 0.0
    %1743 = vmatprep.subr.mxu0 0.0
    %1744 = vmatpush1.msra.mxu0 0.0
    %1745 = vmatprep.subr.mxu0 0.0
    %1746 = vmatpush1.msra.mxu0 %v76
    %1747 = vmatprep.subr.mxu0 0.0
    %1748 = vmatpush1.msra.mxu0 %v75
    %1749 = vmatprep.subr.mxu0 0.0
    %1750 = vmatpush1.msra.mxu0 %v74
    %1751 = vmatprep.subr.mxu0 0.0
    %1752 = vmatpush1.msra.mxu0 %v73
    %1753 = vmatprep.subr.mxu0 0.0
    %1754 = vmatpush1.msra.mxu0 %v72
    %1755 = vmatprep.subr.mxu0 0.0
    %1756 = vmatpush1.msra.mxu0 %v71
    %1757 = vmatprep.subr.mxu0 0.0
    %1758 = vmatpush1.msra.mxu0 %v70
    %1759 = vmatprep.subr.mxu0 0.0
    %1760 = vmatpush1.msra.mxu0 %v69
    %1761 = vmatprep.subr.mxu0 0.0
    %1762 = vmatpush2.msra.mxu0 0.0
    %1763 = vmatprep.subr.mxu0 0.0
    %1764 = vmatpush2.msra.mxu0 0.0
    %1765 = vmatprep.subr.mxu0 0.0
    %1766 = vmatpush2.msra.mxu0 0.0
    %1767 = vmatprep.subr.mxu0 0.0
    %1768 = vmatpush2.msra.mxu0 0.0
    %1769 = vmatprep.subr.mxu0 0.0
    %1770 = vmatpush2.msra.mxu0 0.0
    %1771 = vmatprep.subr.mxu0 0.0
    %1772 = vmatpush2.msra.mxu0 0.0
    %1773 = vmatprep.subr.mxu0 0.0
    %1774 = vmatpush2.msra.mxu0 0.0
    %1775 = vmatprep.subr.mxu0 0.0
    %1776 = vmatpush2.msra.mxu0 0.0
    %1777 = vmatprep.subr.mxu0 0.0
    %1778 = vmatpush2.msra.mxu0 0.0
    %1779 = vmatprep.subr.mxu0 0.0
    %1780 = vmatpush2.msra.mxu0 0.0
    %1781 = vmatprep.subr.mxu0 0.0
    %1782 = vmatpush2.msra.mxu0 0.0
    %1783 = vmatprep.subr.mxu0 0.0
    %1784 = vmatpush2.msra.mxu0 0.0
    %1785 = vmatprep.subr.mxu0 0.0
    %1786 = vmatpush2.msra.mxu0 0.0
    %1787 = vmatprep.subr.mxu0 0.0
    %1788 = vmatpush2.msra.mxu0 0.0
    %1789 = vmatprep.subr.mxu0 0.0
    %1790 = vmatpush2.msra.mxu0 0.0
    %1791 = vmatprep.subr.mxu0 0.0
    %1792 = vmatpush2.msra.mxu0 0.0
    %1793 = vmatprep.mubr.f32.mxu0 0.0
    %1794 = vmatmul.mubr.f32.gmra.mxu0 %v1727
    %v1795 = vpop.f32.mrf.mxu0
    %v1796 = vadd.f32 %v83, %v1795
    %v1797 = vpop.f32.mrf.mxu0
    %1798 = vdwg.mxu0
    %v1799 = vmul.f32 %v1725, %v297
    %v1800 = vsel %vm174, %v1799, 0.0
    %1801 = vadd.xlane.f32.xlu0 %v1800
    %v1802 = vpop.xlane.xlu0 %1801
    %v1803 = vadd.f32 %v1802, %v90
    %v1804 = vxor.u32 %v1796, 2147483648
    %v1805 = vmul.f32 %v1804, 1.442695
    %v1806 = vpow.pop %v1805
    %v1807 = vadd.f32 %v1806, 1.0
    %v1808 = vrcp.pop %v1807
    %v1809 = vmul.f32 1.0, %v1808
    %v1810 = vtanh.pop %v1796
    %v1811 = vadd.f32 %v1803, 1.0
    %v1812 = vmul.f32 %v1811, 0.5
    %v1813 = vmax.f32 %v1812, 0.0
    %v1814 = vmin.f32 %v1813, 1.0
    %1816 = vrot.lane.b32.xlu0 %v1810, 64
    %v1817 = vpop.permute.xlu0 %1816
    %v1819 = vmul.f32 %v1809, %v1817
    %v1820 = vmul.f32 %v1704, %v1681
    %v1821 = vsub.f32 %v1704, %v1820
    %v1822 = vmul.f32 %v1569, %v1819
    %1824 = vset.pattern.permute.xlu0 0
    %1825 = vperm.xlu0 %1824, %v1821
    %v1826 = vpop.permute.xlu0 %1825
    %v1828 = vmul.f32 %v1826, %v1550
    %v1829 = vadd.f32 %v1822, %v1828
    %1831 = vrot.lane.b32.xlu0 %v1550, 96
    %v1832 = vpop.permute.xlu0 %1831
    %v1834 = vmul.f32 %v1809, %v1832
    %1836 = vrot.lane.b32.xlu0 %v1819, 96
    %v1837 = vpop.permute.xlu0 %1836
    %v1839 = vadd.f32 %v1834, %v1837
    %1841 = vset.pattern.permute.xlu0 0
    %1842 = vperm.xlu0 %1841, %v1820
    %v1843 = vpop.permute.xlu0 %1842
    %v1845 = vmul.f32 %v1843, %v1839
    %1847 = vrot.lane.b32.xlu0 %v1845, 32
    %v1848 = vpop.permute.xlu0 %1847
    %v1850 = vadd.f32 %v1829, %v1848
    %v1851 = vsub.f32 1.0, %v1821
    %1853 = vset.pattern.permute.xlu0 0
    %1854 = vperm.xlu0 %1853, %v1851
    %v1855 = vpop.permute.xlu0 %1854
    %v1857 = vmul.f32 %v1855, %v1809
    %v1858 = vtanh.pop %v1850
    %1860 = vrot.lane.b32.xlu0 %v1858, 32
    %v1861 = vpop.permute.xlu0 %1860
    %v1863 = vmul.f32 %v1857, %v1861
    %v1864 = vmul.f32 %v1826, %v1565
    %v1865 = vadd.f32 %v1863, %v1864
    %1867 = vset.pattern.permute.xlu0 0
    %1868 = vperm.xlu0 %1867, %v1814
    %v1869 = vpop.permute.xlu0 %1868
    %v1871 = vmul.f32 %v1865, %v1869
    %v1872 = vsub.f32 1.0, %v1681
    %1874 = vset.pattern.permute.xlu0 0
    %1875 = vperm.xlu0 %1874, %v1872
    %v1876 = vpop.permute.xlu0 %1875
    %v1878 = vmul.f32 %v1876, %v1703
    %v1879 = vmul.f32 %v1714, %v1865
    %1881 = vrot.lane.b32.xlu0 %v1878, 64
    %v1882 = vpop.permute.xlu0 %1881
    %1885 = vrot.lane.b32.xlu0 %v1879, 96
    %v1886 = vpop.permute.xlu0 %1885
    %v1888 = vsel %vm218, %v1882, %v1886
    %s1889 = scalar_lea.vmem %s0, 12
    %v1890 = vld [vmem:[%s1889] sm:$0x3]
    %v1892 = vsel %vm93, %v1888, 0
    %1894 = vmatprep.subr.mxu0 0.0
    %1895 = vmatpush1.msra.mxu0 0.0
    %1896 = vmatprep.subr.mxu0 0.0
    %1897 = vmatpush1.msra.mxu0 0.0
    %1898 = vmatprep.subr.mxu0 0.0
    %1899 = vmatpush1.msra.mxu0 0.0
    %1900 = vmatprep.subr.mxu0 0.0
    %1901 = vmatpush1.msra.mxu0 0.0
    %1902 = vmatprep.subr.mxu0 0.0
    %1903 = vmatpush1.msra.mxu0 0.0
    %1904 = vmatprep.subr.mxu0 0.0
    %1905 = vmatpush1.msra.mxu0 0.0
    %1906 = vmatprep.subr.mxu0 0.0
    %1907 = vmatpush1.msra.mxu0 0.0
    %1908 = vmatprep.subr.mxu0 0.0
    %1909 = vmatpush1.msra.mxu0 0.0
    %1910 = vmatprep.subr.mxu0 0.0
    %1911 = vmatpush1.msra.mxu0 %v67
    %1912 = vmatprep.subr.mxu0 0.0
    %1913 = vmatpush1.msra.mxu0 %v66
    %1914 = vmatprep.subr.mxu0 0.0
    %1915 = vmatpush1.msra.mxu0 %v65
    %1916 = vmatprep.subr.mxu0 0.0
    %1917 = vmatpush1.msra.mxu0 %v64
    %1918 = vmatprep.subr.mxu0 0.0
    %1919 = vmatpush1.msra.mxu0 %v63
    %1920 = vmatprep.subr.mxu0 0.0
    %1921 = vmatpush1.msra.mxu0 %v62
    %1922 = vmatprep.subr.mxu0 0.0
    %1923 = vmatpush1.msra.mxu0 %v61
    %1924 = vmatprep.subr.mxu0 0.0
    %1925 = vmatpush1.msra.mxu0 %v60
    %1926 = vmatprep.subr.mxu0 0.0
    %1927 = vmatpush2.msra.mxu0 0.0
    %1928 = vmatprep.subr.mxu0 0.0
    %1929 = vmatpush2.msra.mxu0 0.0
    %1930 = vmatprep.subr.mxu0 0.0
    %1931 = vmatpush2.msra.mxu0 0.0
    %1932 = vmatprep.subr.mxu0 0.0
    %1933 = vmatpush2.msra.mxu0 0.0
    %1934 = vmatprep.subr.mxu0 0.0
    %1935 = vmatpush2.msra.mxu0 0.0
    %1936 = vmatprep.subr.mxu0 0.0
    %1937 = vmatpush2.msra.mxu0 0.0
    %1938 = vmatprep.subr.mxu0 0.0
    %1939 = vmatpush2.msra.mxu0 0.0
    %1940 = vmatprep.subr.mxu0 0.0
    %1941 = vmatpush2.msra.mxu0 0.0
    %1942 = vmatprep.subr.mxu0 0.0
    %1943 = vmatpush2.msra.mxu0 0.0
    %1944 = vmatprep.subr.mxu0 0.0
    %1945 = vmatpush2.msra.mxu0 0.0
    %1946 = vmatprep.subr.mxu0 0.0
    %1947 = vmatpush2.msra.mxu0 0.0
    %1948 = vmatprep.subr.mxu0 0.0
    %1949 = vmatpush2.msra.mxu0 0.0
    %1950 = vmatprep.subr.mxu0 0.0
    %1951 = vmatpush2.msra.mxu0 0.0
    %1952 = vmatprep.subr.mxu0 0.0
    %1953 = vmatpush2.msra.mxu0 0.0
    %1954 = vmatprep.subr.mxu0 0.0
    %1955 = vmatpush2.msra.mxu0 0.0
    %1956 = vmatprep.subr.mxu0 0.0
    %1957 = vmatpush2.msra.mxu0 0.0
    %1958 = vmatprep.mubr.f32.mxu0 0.0
    %1959 = vmatmul.mubr.f32.gmra.mxu0 %v1892
    %v1960 = vpop.f32.mrf.mxu0
    %v1961 = vadd.f32 %v1890, %v1960
    %v1962 = vpop.f32.mrf.mxu0
    %1963 = vdwg.mxu0
    %v1964 = vmul.f32 %v1888, %v171
    %v1965 = vsel %vm174, %v1964, 0.0
    %1966 = vadd.xlane.f32.xlu0 %v1965
    %v1967 = vpop.xlane.xlu0 %1966
    %s1968 = scalar_lea.vmem %s1, 12
    %v1969 = vld [vmem:[%s1968] sm:$0x3]
    %v1970 = vadd.f32 %v1967, %v1969
    %v1971 = vxor.u32 %v1961, 2147483648
    %v1972 = vmul.f32 %v1971, 1.442695
    %v1973 = vpow.pop %v1972
    %v1974 = vadd.f32 %v1973, 1.0
    %v1975 = vrcp.pop %v1974
    %v1976 = vmul.f32 1.0, %v1975
    %v1977 = vtanh.pop %v1961
    %v1978 = vadd.f32 %v1970, 1.0
    %v1979 = vmul.f32 %v1978, 0.5
    %v1980 = vmax.f32 %v1979, 0.0
    %v1981 = vmin.f32 %v1980, 1.0
    %1983 = vrot.lane.b32.xlu0 %v1977, 64
    %v1984 = vpop.permute.xlu0 %1983
    %v1986 = vmul.f32 %v1976, %v1984
    %1988 = vrot.lane.b32.xlu0 %v1697, 96
    %v1989 = vpop.permute.xlu0 %1988
    %v1991 = vmul.f32 %v1976, %v1989
    %v1992 = vmul.f32 %v1876, %v1991
    %1994 = vrot.lane.b32.xlu0 %v1992, 32
    %v1995 = vpop.permute.xlu0 %1994
    %v1997 = vadd.f32 %v1986, %v1995
    %v1998 = vtanh.pop %v1997
    %2000 = vrot.lane.b32.xlu0 %v1998, 32
    %v2001 = vpop.permute.xlu0 %2000
    %v2003 = vmul.f32 %v1976, %v2001
    %v2004 = vsub.f32 1.0, %v1814
    %2006 = vset.pattern.permute.xlu0 0
    %2007 = vperm.xlu0 %2006, %v2004
    %v2008 = vpop.permute.xlu0 %2007
    %v2010 = vmul.f32 %v2008, %v1865
    %2012 = vset.pattern.permute.xlu0 0
    %2013 = vperm.xlu0 %2012, %v1981
    %v2014 = vpop.permute.xlu0 %2013
    %v2016 = vmul.f32 %v2014, %v2003
    %2018 = vrot.lane.b32.xlu0 %v2010, 64
    %v2019 = vpop.permute.xlu0 %2018
    %2022 = vrot.lane.b32.xlu0 %v2016, 96
    %v2023 = vpop.permute.xlu0 %2022
    %v2025 = vsel %vm218, %v2019, %v2023
    %v2027 = vsel %vm93, %v2025, 0
    %2029 = vmatprep.subr.mxu0 0.0
    %2030 = vmatpush1.msra.mxu0 0.0
    %2031 = vmatprep.subr.mxu0 0.0
    %2032 = vmatpush1.msra.mxu0 0.0
    %2033 = vmatprep.subr.mxu0 0.0
    %2034 = vmatpush1.msra.mxu0 0.0
    %2035 = vmatprep.subr.mxu0 0.0
    %2036 = vmatpush1.msra.mxu0 0.0
    %2037 = vmatprep.subr.mxu0 0.0
    %2038 = vmatpush1.msra.mxu0 0.0
    %2039 = vmatprep.subr.mxu0 0.0
    %2040 = vmatpush1.msra.mxu0 0.0
    %2041 = vmatprep.subr.mxu0 0.0
    %2042 = vmatpush1.msra.mxu0 0.0
    %2043 = vmatprep.subr.mxu0 0.0
    %2044 = vmatpush1.msra.mxu0 0.0
    %2045 = vmatprep.subr.mxu0 0.0
    %2046 = vmatpush1.msra.mxu0 %v76
    %2047 = vmatprep.subr.mxu0 0.0
    %2048 = vmatpush1.msra.mxu0 %v75
    %2049 = vmatprep.subr.mxu0 0.0
    %2050 = vmatpush1.msra.mxu0 %v74
    %2051 = vmatprep.subr.mxu0 0.0
    %2052 = vmatpush1.msra.mxu0 %v73
    %2053 = vmatprep.subr.mxu0 0.0
    %2054 = vmatpush1.msra.mxu0 %v72
    %2055 = vmatprep.subr.mxu0 0.0
    %2056 = vmatpush1.msra.mxu0 %v71
    %2057 = vmatprep.subr.mxu0 0.0
    %2058 = vmatpush1.msra.mxu0 %v70
    %2059 = vmatprep.subr.mxu0 0.0
    %2060 = vmatpush1.msra.mxu0 %v69
    %2061 = vmatprep.subr.mxu0 0.0
    %2062 = vmatpush2.msra.mxu0 0.0
    %2063 = vmatprep.subr.mxu0 0.0
    %2064 = vmatpush2.msra.mxu0 0.0
    %2065 = vmatprep.subr.mxu0 0.0
    %2066 = vmatpush2.msra.mxu0 0.0
    %2067 = vmatprep.subr.mxu0 0.0
    %2068 = vmatpush2.msra.mxu0 0.0
    %2069 = vmatprep.subr.mxu0 0.0
    %2070 = vmatpush2.msra.mxu0 0.0
    %2071 = vmatprep.subr.mxu0 0.0
    %2072 = vmatpush2.msra.mxu0 0.0
    %2073 = vmatprep.subr.mxu0 0.0
    %2074 = vmatpush2.msra.mxu0 0.0
    %2075 = vmatprep.subr.mxu0 0.0
    %2076 = vmatpush2.msra.mxu0 0.0
    %2077 = vmatprep.subr.mxu0 0.0
    %2078 = vmatpush2.msra.mxu0 0.0
    %2079 = vmatprep.subr.mxu0 0.0
    %2080 = vmatpush2.msra.mxu0 0.0
    %2081 = vmatprep.subr.mxu0 0.0
    %2082 = vmatpush2.msra.mxu0 0.0
    %2083 = vmatprep.subr.mxu0 0.0
    %2084 = vmatpush2.msra.mxu0 0.0
    %2085 = vmatprep.subr.mxu0 0.0
    %2086 = vmatpush2.msra.mxu0 0.0
    %2087 = vmatprep.subr.mxu0 0.0
    %2088 = vmatpush2.msra.mxu0 0.0
    %2089 = vmatprep.subr.mxu0 0.0
    %2090 = vmatpush2.msra.mxu0 0.0
    %2091 = vmatprep.subr.mxu0 0.0
    %2092 = vmatpush2.msra.mxu0 0.0
    %2093 = vmatprep.mubr.f32.mxu0 0.0
    %2094 = vmatmul.mubr.f32.gmra.mxu0 %v2027
    %v2095 = vpop.f32.mrf.mxu0
    %v2096 = vadd.f32 %v83, %v2095
    %v2097 = vpop.f32.mrf.mxu0
    %2098 = vdwg.mxu0
    %v2099 = vmul.f32 %v2025, %v297
    %v2100 = vsel %vm174, %v2099, 0.0
    %2101 = vadd.xlane.f32.xlu0 %v2100
    %v2102 = vpop.xlane.xlu0 %2101
    %v2103 = vadd.f32 %v2102, %v90
    %v2104 = vxor.u32 %v2096, 2147483648
    %v2105 = vmul.f32 %v2104, 1.442695
    %v2106 = vpow.pop %v2105
    %v2107 = vadd.f32 %v2106, 1.0
    %v2108 = vrcp.pop %v2107
    %v2109 = vmul.f32 1.0, %v2108
    %v2110 = vtanh.pop %v2096
    %v2111 = vadd.f32 %v2103, 1.0
    %v2112 = vmul.f32 %v2111, 0.5
    %v2113 = vmax.f32 %v2112, 0.0
    %v2114 = vmin.f32 %v2113, 1.0
    %2116 = vrot.lane.b32.xlu0 %v2110, 64
    %v2117 = vpop.permute.xlu0 %2116
    %v2119 = vmul.f32 %v2109, %v2117
    %v2120 = vmul.f32 %v2004, %v1981
    %v2121 = vsub.f32 %v2004, %v2120
    %v2122 = vmul.f32 %v1869, %v2119
    %2124 = vset.pattern.permute.xlu0 0
    %2125 = vperm.xlu0 %2124, %v2121
    %v2126 = vpop.permute.xlu0 %2125
    %v2128 = vmul.f32 %v2126, %v1850
    %v2129 = vadd.f32 %v2122, %v2128
    %2131 = vrot.lane.b32.xlu0 %v1850, 96
    %v2132 = vpop.permute.xlu0 %2131
    %v2134 = vmul.f32 %v2109, %v2132
    %2136 = vrot.lane.b32.xlu0 %v2119, 96
    %v2137 = vpop.permute.xlu0 %2136
    %v2139 = vadd.f32 %v2134, %v2137
    %2141 = vset.pattern.permute.xlu0 0
    %2142 = vperm.xlu0 %2141, %v2120
    %v2143 = vpop.permute.xlu0 %2142
    %v2145 = vmul.f32 %v2143, %v2139
    %2147 = vrot.lane.b32.xlu0 %v2145, 32
    %v2148 = vpop.permute.xlu0 %2147
    %v2150 = vadd.f32 %v2129, %v2148
    %v2151 = vsub.f32 1.0, %v2121
    %2153 = vset.pattern.permute.xlu0 0
    %2154 = vperm.xlu0 %2153, %v2151
    %v2155 = vpop.permute.xlu0 %2154
    %v2157 = vmul.f32 %v2155, %v2109
    %v2158 = vtanh.pop %v2150
    %2160 = vrot.lane.b32.xlu0 %v2158, 32
    %v2161 = vpop.permute.xlu0 %2160
    %v2163 = vmul.f32 %v2157, %v2161
    %v2164 = vmul.f32 %v2126, %v1865
    %v2165 = vadd.f32 %v2163, %v2164
    %2167 = vset.pattern.permute.xlu0 0
    %2168 = vperm.xlu0 %2167, %v2114
    %v2169 = vpop.permute.xlu0 %2168
    %v2171 = vmul.f32 %v2165, %v2169
    %v2172 = vsub.f32 1.0, %v1981
    %2174 = vset.pattern.permute.xlu0 0
    %2175 = vperm.xlu0 %2174, %v2172
    %v2176 = vpop.permute.xlu0 %2175
    %v2178 = vmul.f32 %v2176, %v2003
    %v2179 = vmul.f32 %v2014, %v2165
    %2181 = vrot.lane.b32.xlu0 %v2178, 64
    %v2182 = vpop.permute.xlu0 %2181
    %2185 = vrot.lane.b32.xlu0 %v2179, 96
    %v2186 = vpop.permute.xlu0 %2185
    %v2188 = vsel %vm218, %v2182, %v2186
    %s2189 = scalar_lea.vmem %s0, 14
    %v2190 = vld [vmem:[%s2189] sm:$0x3]
    %v2192 = vsel %vm93, %v2188, 0
    %2194 = vmatprep.subr.mxu0 0.0
    %2195 = vmatpush1.msra.mxu0 0.0
    %2196 = vmatprep.subr.mxu0 0.0
    %2197 = vmatpush1.msra.mxu0 0.0
    %2198 = vmatprep.subr.mxu0 0.0
    %2199 = vmatpush1.msra.mxu0 0.0
    %2200 = vmatprep.subr.mxu0 0.0
    %2201 = vmatpush1.msra.mxu0 0.0
    %2202 = vmatprep.subr.mxu0 0.0
    %2203 = vmatpush1.msra.mxu0 0.0
    %2204 = vmatprep.subr.mxu0 0.0
    %2205 = vmatpush1.msra.mxu0 0.0
    %2206 = vmatprep.subr.mxu0 0.0
    %2207 = vmatpush1.msra.mxu0 0.0
    %2208 = vmatprep.subr.mxu0 0.0
    %2209 = vmatpush1.msra.mxu0 0.0
    %2210 = vmatprep.subr.mxu0 0.0
    %2211 = vmatpush1.msra.mxu0 %v67
    %2212 = vmatprep.subr.mxu0 0.0
    %2213 = vmatpush1.msra.mxu0 %v66
    %2214 = vmatprep.subr.mxu0 0.0
    %2215 = vmatpush1.msra.mxu0 %v65
    %2216 = vmatprep.subr.mxu0 0.0
    %2217 = vmatpush1.msra.mxu0 %v64
    %2218 = vmatprep.subr.mxu0 0.0
    %2219 = vmatpush1.msra.mxu0 %v63
    %2220 = vmatprep.subr.mxu0 0.0
    %2221 = vmatpush1.msra.mxu0 %v62
    %2222 = vmatprep.subr.mxu0 0.0
    %2223 = vmatpush1.msra.mxu0 %v61
    %2224 = vmatprep.subr.mxu0 0.0
    %2225 = vmatpush1.msra.mxu0 %v60
    %2226 = vmatprep.subr.mxu0 0.0
    %2227 = vmatpush2.msra.mxu0 0.0
    %2228 = vmatprep.subr.mxu0 0.0
    %2229 = vmatpush2.msra.mxu0 0.0
    %2230 = vmatprep.subr.mxu0 0.0
    %2231 = vmatpush2.msra.mxu0 0.0
    %2232 = vmatprep.subr.mxu0 0.0
    %2233 = vmatpush2.msra.mxu0 0.0
    %2234 = vmatprep.subr.mxu0 0.0
    %2235 = vmatpush2.msra.mxu0 0.0
    %2236 = vmatprep.subr.mxu0 0.0
    %2237 = vmatpush2.msra.mxu0 0.0
    %2238 = vmatprep.subr.mxu0 0.0
    %2239 = vmatpush2.msra.mxu0 0.0
    %2240 = vmatprep.subr.mxu0 0.0
    %2241 = vmatpush2.msra.mxu0 0.0
    %2242 = vmatprep.subr.mxu0 0.0
    %2243 = vmatpush2.msra.mxu0 0.0
    %2244 = vmatprep.subr.mxu0 0.0
    %2245 = vmatpush2.msra.mxu0 0.0
    %2246 = vmatprep.subr.mxu0 0.0
    %2247 = vmatpush2.msra.mxu0 0.0
    %2248 = vmatprep.subr.mxu0 0.0
    %2249 = vmatpush2.msra.mxu0 0.0
    %2250 = vmatprep.subr.mxu0 0.0
    %2251 = vmatpush2.msra.mxu0 0.0
    %2252 = vmatprep.subr.mxu0 0.0
    %2253 = vmatpush2.msra.mxu0 0.0
    %2254 = vmatprep.subr.mxu0 0.0
    %2255 = vmatpush2.msra.mxu0 0.0
    %2256 = vmatprep.subr.mxu0 0.0
    %2257 = vmatpush2.msra.mxu0 0.0
    %2258 = vmatprep.mubr.f32.mxu0 0.0
    %2259 = vmatmul.mubr.f32.gmra.mxu0 %v2192
    %v2260 = vpop.f32.mrf.mxu0
    %v2261 = vadd.f32 %v2190, %v2260
    %v2262 = vpop.f32.mrf.mxu0
    %2263 = vdwg.mxu0
    %v2264 = vmul.f32 %v2188, %v171
    %v2265 = vsel %vm174, %v2264, 0.0
    %2266 = vadd.xlane.f32.xlu0 %v2265
    %v2267 = vpop.xlane.xlu0 %2266
    %s2268 = scalar_lea.vmem %s1, 14
    %v2269 = vld [vmem:[%s2268] sm:$0x3]
    %v2270 = vadd.f32 %v2267, %v2269
    %v2271 = vxor.u32 %v2261, 2147483648
    %v2272 = vmul.f32 %v2271, 1.442695
    %v2273 = vpow.pop %v2272
    %v2274 = vadd.f32 %v2273, 1.0
    %v2275 = vrcp.pop %v2274
    %v2276 = vmul.f32 1.0, %v2275
    %v2277 = vtanh.pop %v2261
    %v2278 = vadd.f32 %v2270, 1.0
    %v2279 = vmul.f32 %v2278, 0.5
    %v2280 = vmax.f32 %v2279, 0.0
    %v2281 = vmin.f32 %v2280, 1.0
    %2283 = vrot.lane.b32.xlu0 %v2277, 64
    %v2284 = vpop.permute.xlu0 %2283
    %v2286 = vmul.f32 %v2276, %v2284
    %2288 = vrot.lane.b32.xlu0 %v1997, 96
    %v2289 = vpop.permute.xlu0 %2288
    %v2291 = vmul.f32 %v2276, %v2289
    %v2292 = vmul.f32 %v2176, %v2291
    %2294 = vrot.lane.b32.xlu0 %v2292, 32
    %v2295 = vpop.permute.xlu0 %2294
    %v2297 = vadd.f32 %v2286, %v2295
    %v2298 = vtanh.pop %v2297
    %2300 = vrot.lane.b32.xlu0 %v2298, 32
    %v2301 = vpop.permute.xlu0 %2300
    %v2303 = vmul.f32 %v2276, %v2301
    %v2304 = vsub.f32 1.0, %v2114
    %2306 = vset.pattern.permute.xlu0 0
    %2307 = vperm.xlu0 %2306, %v2304
    %v2308 = vpop.permute.xlu0 %2307
    %v2310 = vmul.f32 %v2308, %v2165
    %2312 = vset.pattern.permute.xlu0 0
    %2313 = vperm.xlu0 %2312, %v2281
    %v2314 = vpop.permute.xlu0 %2313
    %v2316 = vmul.f32 %v2314, %v2303
    %2318 = vrot.lane.b32.xlu0 %v2310, 64
    %v2319 = vpop.permute.xlu0 %2318
    %2322 = vrot.lane.b32.xlu0 %v2316, 96
    %v2323 = vpop.permute.xlu0 %2322
    %v2325 = vsel %vm218, %v2319, %v2323
    %v2327 = vsel %vm93, %v2325, 0
    %2329 = vmatprep.subr.mxu0 0.0
    %2330 = vmatpush1.msra.mxu0 0.0
    %2331 = vmatprep.subr.mxu0 0.0
    %2332 = vmatpush1.msra.mxu0 0.0
    %2333 = vmatprep.subr.mxu0 0.0
    %2334 = vmatpush1.msra.mxu0 0.0
    %2335 = vmatprep.subr.mxu0 0.0
    %2336 = vmatpush1.msra.mxu0 0.0
    %2337 = vmatprep.subr.mxu0 0.0
    %2338 = vmatpush1.msra.mxu0 0.0
    %2339 = vmatprep.subr.mxu0 0.0
    %2340 = vmatpush1.msra.mxu0 0.0
    %2341 = vmatprep.subr.mxu0 0.0
    %2342 = vmatpush1.msra.mxu0 0.0
    %2343 = vmatprep.subr.mxu0 0.0
    %2344 = vmatpush1.msra.mxu0 0.0
    %2345 = vmatprep.subr.mxu0 0.0
    %2346 = vmatpush1.msra.mxu0 %v76
    %2347 = vmatprep.subr.mxu0 0.0
    %2348 = vmatpush1.msra.mxu0 %v75
    %2349 = vmatprep.subr.mxu0 0.0
    %2350 = vmatpush1.msra.mxu0 %v74
    %2351 = vmatprep.subr.mxu0 0.0
    %2352 = vmatpush1.msra.mxu0 %v73
    %2353 = vmatprep.subr.mxu0 0.0
    %2354 = vmatpush1.msra.mxu0 %v72
    %2355 = vmatprep.subr.mxu0 0.0
    %2356 = vmatpush1.msra.mxu0 %v71
    %2357 = vmatprep.subr.mxu0 0.0
    %2358 = vmatpush1.msra.mxu0 %v70
    %2359 = vmatprep.subr.mxu0 0.0
    %2360 = vmatpush1.msra.mxu0 %v69
    %2361 = vmatprep.subr.mxu0 0.0
    %2362 = vmatpush2.msra.mxu0 0.0
    %2363 = vmatprep.subr.mxu0 0.0
    %2364 = vmatpush2.msra.mxu0 0.0
    %2365 = vmatprep.subr.mxu0 0.0
    %2366 = vmatpush2.msra.mxu0 0.0
    %2367 = vmatprep.subr.mxu0 0.0
    %2368 = vmatpush2.msra.mxu0 0.0
    %2369 = vmatprep.subr.mxu0 0.0
    %2370 = vmatpush2.msra.mxu0 0.0
    %2371 = vmatprep.subr.mxu0 0.0
    %2372 = vmatpush2.msra.mxu0 0.0
    %2373 = vmatprep.subr.mxu0 0.0
    %2374 = vmatpush2.msra.mxu0 0.0
    %2375 = vmatprep.subr.mxu0 0.0
    %2376 = vmatpush2.msra.mxu0 0.0
    %2377 = vmatprep.subr.mxu0 0.0
    %2378 = vmatpush2.msra.mxu0 0.0
    %2379 = vmatprep.subr.mxu0 0.0
    %2380 = vmatpush2.msra.mxu0 0.0
    %2381 = vmatprep.subr.mxu0 0.0
    %2382 = vmatpush2.msra.mxu0 0.0
    %2383 = vmatprep.subr.mxu0 0.0
    %2384 = vmatpush2.msra.mxu0 0.0
    %2385 = vmatprep.subr.mxu0 0.0
    %2386 = vmatpush2.msra.mxu0 0.0
    %2387 = vmatprep.subr.mxu0 0.0
    %2388 = vmatpush2.msra.mxu0 0.0
    %2389 = vmatprep.subr.mxu0 0.0
    %2390 = vmatpush2.msra.mxu0 0.0
    %2391 = vmatprep.subr.mxu0 0.0
    %2392 = vmatpush2.msra.mxu0 0.0
    %2393 = vmatprep.mubr.f32.mxu0 0.0
    %2394 = vmatmul.mubr.f32.gmra.mxu0 %v2327
    %v2395 = vpop.f32.mrf.mxu0
    %v2396 = vadd.f32 %v83, %v2395
    %v2397 = vpop.f32.mrf.mxu0
    %2398 = vdwg.mxu0
    %v2399 = vmul.f32 %v2325, %v297
    %v2400 = vsel %vm174, %v2399, 0.0
    %2401 = vadd.xlane.f32.xlu0 %v2400
    %v2402 = vpop.xlane.xlu0 %2401
    %v2403 = vadd.f32 %v2402, %v90
    %v2404 = vxor.u32 %v2396, 2147483648
    %v2405 = vmul.f32 %v2404, 1.442695
    %v2406 = vpow.pop %v2405
    %v2407 = vadd.f32 %v2406, 1.0
    %v2408 = vrcp.pop %v2407
    %v2409 = vmul.f32 1.0, %v2408
    %v2410 = vtanh.pop %v2396
    %v2411 = vadd.f32 %v2403, 1.0
    %v2412 = vmul.f32 %v2411, 0.5
    %v2413 = vmax.f32 %v2412, 0.0
    %v2414 = vmin.f32 %v2413, 1.0
    %2416 = vrot.lane.b32.xlu0 %v2410, 64
    %v2417 = vpop.permute.xlu0 %2416
    %v2419 = vmul.f32 %v2409, %v2417
    %v2420 = vmul.f32 %v2304, %v2281
    %v2421 = vsub.f32 %v2304, %v2420
    %v2422 = vmul.f32 %v2169, %v2419
    %2424 = vset.pattern.permute.xlu0 0
    %2425 = vperm.xlu0 %2424, %v2421
    %v2426 = vpop.permute.xlu0 %2425
    %v2428 = vmul.f32 %v2426, %v2150
    %v2429 = vadd.f32 %v2422, %v2428
    %2431 = vrot.lane.b32.xlu0 %v2150, 96
    %v2432 = vpop.permute.xlu0 %2431
    %v2434 = vmul.f32 %v2409, %v2432
    %2436 = vrot.lane.b32.xlu0 %v2419, 96
    %v2437 = vpop.permute.xlu0 %2436
    %v2439 = vadd.f32 %v2434, %v2437
    %2441 = vset.pattern.permute.xlu0 0
    %2442 = vperm.xlu0 %2441, %v2420
    %v2443 = vpop.permute.xlu0 %2442
    %v2445 = vmul.f32 %v2443, %v2439
    %2447 = vrot.lane.b32.xlu0 %v2445, 32
    %v2448 = vpop.permute.xlu0 %2447
    %v2450 = vadd.f32 %v2429, %v2448
    %v2451 = vsub.f32 1.0, %v2421
    %2453 = vset.pattern.permute.xlu0 0
    %2454 = vperm.xlu0 %2453, %v2451
    %v2455 = vpop.permute.xlu0 %2454
    %v2457 = vmul.f32 %v2455, %v2409
    %v2458 = vtanh.pop %v2450
    %2460 = vrot.lane.b32.xlu0 %v2458, 32
    %v2461 = vpop.permute.xlu0 %2460
    %v2463 = vmul.f32 %v2457, %v2461
    %v2464 = vmul.f32 %v2426, %v2165
    %v2465 = vadd.f32 %v2463, %v2464
    %2467 = vset.pattern.permute.xlu0 0
    %2468 = vperm.xlu0 %2467, %v2414
    %v2469 = vpop.permute.xlu0 %2468
    %v2471 = vmul.f32 %v2465, %v2469
    %2473 = vrot.lane.b32.xlu0 %v1571, 64
    %v2474 = vpop.permute.xlu0 %2473
    %2477 = vrot.lane.b32.xlu0 %v1871, 96
    %v2478 = vpop.permute.xlu0 %2477
    %2481 = vrot.lane.b32.xlu0 %v2471, 32
    %v2482 = vpop.permute.xlu0 %2481
    %v2484 = vsel %vm218, %v2474, %v2478
    %v2485 = vsel %vm93, %v2484, %v2171
    %v2486 = vsel %vm1269, %v2485, %v2482
    %s2487 = scalar_lea.vmem [#allocation8], 2
    %2488 = vst [vmem:[%s2487] sm:$0x3] %v2486
    // Predicated region
    $region42: #{tpu_custom_call.1} parent=1 // pred_check
      _
    $region43: #{tpu_custom_call.1} parent=1 // pred_check_branch
      %2490 = sbr.rel (0) target = $region45
    $region44: #{tpu_custom_call.1} parent=1 // pred_region
      %s2492 = ssub.s32 64, 64
      %2493 = vsyncadd [#allocation5], %s2492
      %s2494 = sshll.u32 [#allocation8], 4
      %s2495 = int_to_ptr.vmem [resolvable:$true] %s2494
      %2500 = dma.vmem_to_hbm [thread:$0]  %s2495, 64, %s8, [#allocation5], 32, 32, 2
    $region45: #{tpu_custom_call.1} parent=1 // pred_fallthru
      _
    // Predicated region
    $region46: #{tpu_custom_call.1} parent=1 // pred_check
      _
    $region47: #{tpu_custom_call.1} parent=1 // pred_check_branch
      %2502 = sbr.rel (0) target = $region49
    $region48: #{tpu_custom_call.1} parent=1 // pred_region
      %2503 = dma.done [#allocation5], 64
    $region49: #{tpu_custom_call.1} parent=1 // pred_fallthru
      _
    %2504 = vsyncpa [#allocation4], 1
    %2505 = vsyncpa [#allocation7], 1
    %2506 = vsyncpa [#allocation5], 1

</llo_original>
